<compile_context>
chip_gen: v7x
topology: tpu7x:2x2x1
jax: 0.10.0
libtpu: 0.0.40
codegen_flags: <defaults>
</compile_context>

<pallas_src>
import math

import jax
import jax.numpy as jnp
import numpy as np
from jax.experimental import pallas as pl
from jax.experimental.pallas import tpu as pltpu

# ---------------- config (small, consistent with the module) ----------------
BATCH       = 2
N_CHANNELS  = 4
SPATIAL     = 16
PATCH       = 4
GRID        = SPATIAL // PATCH             # 4
N_PATCHES   = GRID * GRID                  # 16
PATCH_DIM   = N_CHANNELS * PATCH * PATCH   # 64
HIDDEN      = PATCH_DIM                    # must equal n_channels*P*P for the fc head
MLP_DIM     = 128
NUM_HEADS   = 4
HEAD_DIM    = HIDDEN // NUM_HEADS          # 16
NUM_LAYERS  = 2
N_CLASSES   = 3
FC1_DIM     = N_CLASSES * 128              # 384
FC2_DIM     = N_CLASSES * 8                # 24
EPS         = 1e-5

S_TOK       = N_PATCHES + 1                # 17 tokens per sample (16 patches + cls)
REAL_ROWS   = BATCH * S_TOK                # 34
ROWS        = 40                           # padded slab height (sublane multiple)
NEG_INF     = -1e30

# rowdata slab column layout (ROWS x ROWDATA_COLS)
R_ADD  = 0                                 # additive embedding rows      (HIDDEN wide)
R_BIAS = R_ADD + HIDDEN                    # attention additive bias      (ROWS wide)
R_PAIR = R_BIAS + ROWS                     # BatchNorm pairing matrix     (ROWS wide)
R_BNG  = R_PAIR + ROWS                     # per-row BN gamma             (1 wide)
R_BNB  = R_BNG + 1                         # per-row BN beta              (1 wide)
ROWDATA_COLS = R_BNB + 1                   # 146

# 64-row weight slab column layout (HIDDEN x W64_COLS), 128-aligned offsets
C_PW   = 0                                 # patch embedding weight       (64 wide)
C_QKV  = 128                               # + 256*l, fused QKV weight    (192 wide)
C_WO   = C_QKV + 256 * NUM_LAYERS          # + 128*l, attention out proj  (64 wide)
C_W1   = C_WO + 128 * NUM_LAYERS           # + 128*l, MLP up proj         (128 wide)
C_FC1  = C_W1 + 128 * NUM_LAYERS           # head fc1 weight              (384 wide)
W64_COLS = C_FC1 + FC1_DIM                 # 1536

# bias / small-vector slab row layout (B_ROWS x BWID)
B_LN1G, B_LN1B, B_BQKV, B_BO, B_LN2G, B_LN2B, B_B1, B_B2 = range(8)   # + 8*l per layer
B_ENCG = 8 * NUM_LAYERS
B_ENCB = B_ENCG + 1
B_FC1B = B_ENCB + 1
B_FC2B = B_FC1B + 1
B_FC3B = B_FC2B + 1
B_SEL  = B_FC3B + 1                        # BATCH mean-pool selection rows
B_ROWS = ((B_SEL + BATCH + 7) // 8) * 8    # 24
BWID   = FC1_DIM                           # 384

_VMEM = pl.BlockSpec(memory_space=pltpu.MemorySpace.VMEM)

# ---------------- static mask tables (trace-time constants) ----------------
_r      = np.arange(ROWS)
_valid  = _r < REAL_ROWS
_samp   = np.where(_valid, _r // S_TOK, 0)         # pad query rows attend sample 0 (no NaN)
_tok    = np.where(_valid, _r % S_TOK, S_TOK)
_is_pat = _valid & (_tok < N_PATCHES)

# additive attention bias: key valid iff real token of the query's sample
ATTN_BIAS_NP = np.where(_valid[None, :] & (_samp[None, :] == _samp[:, None]),
                        0.0, NEG_INF).astype(np.float32)              # (40, 40)

# BatchNorm1d pairing: patch rows with the same patch index share stats over (batch, hidden)
PAIR_NP = np.where(_is_pat[:, None] & _is_pat[None, :] & (_tok[:, None] == _tok[None, :]),
                   1.0 / (BATCH * HIDDEN), 0.0).astype(np.float32)    # (40, 40)

# mean-pool selection: average the 16 patch rows of each sample
SEL_NP = np.zeros((BATCH, ROWS), np.float32)
for _b in range(BATCH):
    SEL_NP[_b, _b * S_TOK:_b * S_TOK + N_PATCHES] = 1.0 / N_PATCHES   # (2, 40)


# ---------------- the fused Pallas kernel ----------------
def _fused_forward_kernel(patches_ref, rowdata_ref, bias_ref, w64_ref, w2s_ref,
                          whead_ref, out_ref):
    f32 = jnp.float32
    scale = 1.0 / math.sqrt(HEAD_DIM)

    def brow(r, w):                          # one packed bias row as a (1, w) broadcastable
        return bias_ref[r:r + 1, 0:w]

    def layer_norm(x, g, b):
        mu = jnp.mean(x, axis=-1, keepdims=True)
        d = x - mu
        var = jnp.mean(d * d, axis=-1, keepdims=True)
        return d * jax.lax.rsqrt(var + EPS) * g + b

    add_rows  = rowdata_ref[:, R_ADD:R_ADD + HIDDEN]
    attn_bias = rowdata_ref[:, R_BIAS:R_BIAS + ROWS]
    pair      = rowdata_ref[:, R_PAIR:R_PAIR + ROWS]
    bn_g      = rowdata_ref[:, R_BNG:R_BNG + 1]
    bn_b      = rowdata_ref[:, R_BNB:R_BNB + 1]

    # ---- patch embedding; patch bias / pos emb / cls token folded into add_rows ----
    # row layout: sample b occupies rows [b*17, b*17+17): patches 0..15, then cls; rows
    # 34..39 are zero padding (masked everywhere downstream).
    x = jnp.dot(patches_ref[...], w64_ref[:, C_PW:C_PW + HIDDEN],
                preferred_element_type=f32) + add_rows

    # stacked-head constants (hoisted out of the layer loop)
    bias_s = jnp.concatenate([attn_bias] * NUM_HEADS, axis=0)         # (4*ROWS, ROWS)
    col = jax.lax.broadcasted_iota(jnp.int32, (1, HIDDEN), 1)
    head_masks = [((col >= h * HEAD_DIM) & (col < (h + 1) * HEAD_DIM)).astype(f32)
                  for h in range(NUM_HEADS)]

    # ---- transformer encoder blocks (unrolled; weights stay VMEM-resident) ----
    for l in range(NUM_LAYERS):
        base = 8 * l

        # pre-norm multi-head self-attention (all heads stacked along rows)
        xn = layer_norm(x, brow(base + B_LN1G, HIDDEN), brow(base + B_LN1B, HIDDEN))
        qkv = jnp.dot(xn, w64_ref[:, C_QKV + 256 * l:C_QKV + 256 * l + 3 * HIDDEN],
                      preferred_element_type=f32) + brow(base + B_BQKV, 3 * HIDDEN)
        q = qkv[:, 0:HIDDEN]
        k = qkv[:, HIDDEN:2 * HIDDEN]
        v = qkv[:, 2 * HIDDEN:3 * HIDDEN]

        qs = jnp.concatenate([q * hm for hm in head_masks], axis=0)   # (4*ROWS, HIDDEN)
        s = jax.lax.dot_general(qs, k, (((1,), (1,)), ((), ())),
                                preferred_element_type=f32) * scale + bias_s
        m = jnp.max(s, axis=-1, keepdims=True)
        p = jnp.exp(s - m)
        p = p * pl.reciprocal(jnp.sum(p, axis=-1, keepdims=True), approx=True)
        c = jnp.dot(p, v, preferred_element_type=f32)                 # (4*ROWS, HIDDEN)
        ctx = jnp.zeros((ROWS, HIDDEN), f32)
        for h in range(NUM_HEADS):
            ctx = ctx + c[h * ROWS:(h + 1) * ROWS, :] * head_masks[h]

        x = x + jnp.dot(ctx, w64_ref[:, C_WO + 128 * l:C_WO + 128 * l + HIDDEN],
                        preferred_element_type=f32) + brow(base + B_BO, HIDDEN)

        # pre-norm MLP
        xn = layer_norm(x, brow(base + B_LN2G, HIDDEN), brow(base + B_LN2B, HIDDEN))
        h1 = jnp.dot(xn, w64_ref[:, C_W1 + 128 * l:C_W1 + 128 * l + MLP_DIM],
                     preferred_element_type=f32) + brow(base + B_B1, MLP_DIM)
        h1 = jax.nn.gelu(h1, approximate=True)  # TODO(synk): PyTorch nn.GELU default is exact erf
        x = x + jnp.dot(h1, w2s_ref[MLP_DIM * l:MLP_DIM * (l + 1), :],
                        preferred_element_type=f32) + brow(base + B_B2, HIDDEN)

    # ---- final encoder LayerNorm ----
    x = layer_norm(x, brow(B_ENCG, HIDDEN), brow(B_ENCB, HIDDEN))

    # ---- BatchNorm1d(n_patches) (training-mode batch stats, biased var) + mean pool ----
    rs  = jnp.sum(x, axis=-1, keepdims=True)
    rs2 = jnp.sum(x * x, axis=-1, keepdims=True)
    agg = jnp.dot(pair, jnp.concatenate([rs, rs2], axis=-1),
                  preferred_element_type=f32)                          # (ROWS, 2)
    mu  = agg[:, 0:1]
    var = jnp.maximum(agg[:, 1:2] - mu * mu, 0.0)
    y = (x - mu) * jax.lax.rsqrt(var + EPS) * bn_g + bn_b
    sel = bias_ref[B_SEL:B_SEL + BATCH, 0:ROWS]                        # (B, ROWS)
    pooled = jnp.dot(sel, y, preferred_element_type=f32)               # (B, HIDDEN)

    # ---- classification head: Linear -> ReLU -> (Dropout=id) -> ... -> Linear ----
    h1 = jnp.maximum(jnp.dot(pooled, w64_ref[:, C_FC1:C_FC1 + FC1_DIM],
                             preferred_element_type=f32) + brow(B_FC1B, FC1_DIM), 0.0)
    h2 = jnp.maximum(jnp.dot(h1, whead_ref[0:FC1_DIM, :],
                             preferred_element_type=f32) + brow(B_FC2B, FC2_DIM), 0.0)
    out_ref[...] = jnp.dot(h2, whead_ref[FC1_DIM:FC1_DIM + FC2_DIM, 0:N_CLASSES],
                           preferred_element_type=f32) + brow(B_FC3B, N_CLASSES)


# ---------------- plain-JAX glue ----------------
def patchify(x, p):
    # equivalent of monai GridPatch + permute + view: (B, C, H, W) -> (B, n_patches, C*p*p)
    B, C, H, W = x.shape
    gh, gw = H // p, W // p
    x = x.reshape(B, C, gh, p, gw, p)
    x = jnp.transpose(x, (0, 2, 4, 1, 3, 5))      # (B, gh, gw, C, p, p)
    return x.reshape(B, gh * gw, C * p * p)


def sincos_pos_embedding(hidden, grid_size, cls_token=True):
    # exact port of PositionalEncoding (torch.meshgrid default 'ij' indexing)
    def sincos_1d(d, pos):
        omega = np.arange(d // 2, dtype=np.float32) / (d / 2.0)
        omega = 1.0 / (10000.0 ** omega)
        out = np.einsum("m,d->md", pos.reshape(-1).astype(np.float32), omega)
        return np.concatenate([np.sin(out), np.cos(out)], axis=1)

    gw, gh = np.meshgrid(np.arange(grid_size), np.arange(grid_size), indexing="ij")
    emb_h = sincos_1d(hidden // 2, gw)
    emb_w = sincos_1d(hidden // 2, gh)
    emb = np.concatenate([emb_h, emb_w], axis=1)
    if cls_token:
        emb = np.concatenate([np.zeros((1, hidden), np.float32), emb], axis=0)
    return jnp.asarray(emb, jnp.float32)          # (n_patches+1, hidden)


def pack_params(params):
    """One-time packing of all parameters + static masks into a few DMA-friendly slabs."""
    f32 = jnp.float32
    L = NUM_LAYERS

    # row-aligned constants (40 x 146): additive embedding, attn bias, BN pair, BN g/b
    blk = jnp.concatenate([params["pos_emb"][1:] + params["patch_b"][None, :],
                           params["cls_token"] + params["pos_emb"][:1]], axis=0)   # (17, H)
    add_rows = jnp.pad(jnp.tile(blk, (BATCH, 1)), ((0, ROWS - REAL_ROWS), (0, 0)))
    bn_g_rows = jnp.pad(jnp.tile(jnp.pad(params["bn_g"], (0, 1)), BATCH),
                        (0, ROWS - REAL_ROWS))[:, None]
    bn_b_rows = jnp.pad(jnp.tile(jnp.pad(params["bn_b"], (0, 1)), BATCH),
                        (0, ROWS - REAL_ROWS))[:, None]
    rowdata = jnp.concatenate(
        [add_rows, jnp.asarray(ATTN_BIAS_NP), jnp.asarray(PAIR_NP), bn_g_rows, bn_b_rows],
        axis=1).astype(f32)

    # bias / small-vector slab (24 x 384)
    def row(v):
        v = jnp.asarray(v, f32).reshape(-1)
        return jnp.pad(v, (0, BWID - v.shape[0]))

    rows = []
    for l in range(L):
        rows += [row(params["ln1_g"][l]), row(params["ln1_b"][l]),
                 row(params["bqkv"][l]), row(params["bo"][l]),
                 row(params["ln2_g"][l]), row(params["ln2_b"][l]),
                 row(params["b1"][l]), row(params["b2"][l])]
    rows += [row(params["enc_g"]), row(params["enc_b"]),
             row(params["fc1_b"]), row(params["fc2_b"]), row(params["fc3_b"])]
    rows += [row(SEL_NP[b]) for b in range(BATCH)]
    while len(rows) < B_ROWS:
        rows.append(jnp.zeros((BWID,), f32))
    biases = jnp.stack(rows, axis=0)

    # all 64-row weights in one slab with 128-aligned columns (64 x 1536)
    w64 = jnp.zeros((HIDDEN, W64_COLS), f32)
    w64 = w64.at[:, C_PW:C_PW + HIDDEN].set(params["patch_w"])
    for l in range(L):
        w64 = w64.at[:, C_QKV + 256 * l:C_QKV + 256 * l + 3 * HIDDEN].set(params["wqkv"][l])
        w64 = w64.at[:, C_WO + 128 * l:C_WO + 128 * l + HIDDEN].set(params["wo"][l])
        w64 = w64.at[:, C_W1 + 128 * l:C_W1 + 128 * l + MLP_DIM].set(params["w1"][l])
    w64 = w64.at[:, C_FC1:C_FC1 + FC1_DIM].set(params["fc1_w"])

    w2s = params["w2"].reshape(L * MLP_DIM, HIDDEN).astype(f32)                     # (256, 64)
    whead = jnp.concatenate(
        [params["fc2_w"],
         jnp.pad(params["fc3_w"], ((0, 0), (0, FC2_DIM - N_CLASSES)))],
        axis=0).astype(f32)                                                         # (408, 24)

    return {"rowdata": rowdata, "biases": biases, "w64": w64, "w2s": w2s, "whead": whead}


@jax.jit
def mae_finetune_forward(x, packed):
    # per-call work is only patch extraction + padding into the 40-row slab
    patches = patchify(x, PATCH)                                             # (B, 16, 64)
    patches = jnp.pad(patches, ((0, 0), (0, S_TOK - N_PATCHES), (0, 0)))     # cls row = 0
    patches = patches.reshape(BATCH * S_TOK, PATCH_DIM)
    patches = jnp.pad(patches, ((0, ROWS - REAL_ROWS), (0, 0)))              # (40, 64)

    args = (patches, packed["rowdata"], packed["biases"], packed["w64"],
            packed["w2s"], packed["whead"])
    return pl.pallas_call(
        _fused_forward_kernel,
        out_shape=jax.ShapeDtypeStruct((BATCH, N_CLASSES), jnp.float32),
        in_specs=[_VMEM] * len(args),
        out_specs=_VMEM,
    )(*args)


# ---------------- deterministic parameter init ----------------
def init_params(key):
    keys = iter(jax.random.split(key, 24))

    def w(shape, scale=0.02):
        return scale * jax.random.normal(next(keys), shape, jnp.float32)

    L = NUM_LAYERS
    return {
        "patch_w": w((PATCH_DIM, HIDDEN)),
        "patch_b": jnp.zeros((HIDDEN,), jnp.float32),
        "cls_token": jnp.zeros((1, HIDDEN), jnp.float32),
        "pos_emb": sincos_pos_embedding(HIDDEN, GRID, cls_token=True),
        "ln1_g": jnp.ones((L, HIDDEN), jnp.float32),
        "ln1_b": jnp.zeros((L, HIDDEN), jnp.float32),
        "wqkv": w((L, HIDDEN, 3 * HIDDEN)),
        "bqkv": jnp.zeros((L, 3 * HIDDEN), jnp.float32),
        "wo": w((L, HIDDEN, HIDDEN)),
        "bo": jnp.zeros((L, HIDDEN), jnp.float32),
        "ln2_g": jnp.ones((L, HIDDEN), jnp.float32),
        "ln2_b": jnp.zeros((L, HIDDEN), jnp.float32),
        "w1": w((L, HIDDEN, MLP_DIM)),
        "b1": jnp.zeros((L, MLP_DIM), jnp.float32),
        "w2": w((L, MLP_DIM, HIDDEN)),
        "b2": jnp.zeros((L, HIDDEN), jnp.float32),
        "enc_g": jnp.ones((HIDDEN,), jnp.float32),
        "enc_b": jnp.zeros((HIDDEN,), jnp.float32),
        "bn_g": jnp.ones((N_PATCHES,), jnp.float32),
        "bn_b": jnp.zeros((N_PATCHES,), jnp.float32),
        "fc1_w": w((HIDDEN, FC1_DIM)),
        "fc1_b": jnp.zeros((FC1_DIM,), jnp.float32),
        "fc2_w": w((FC1_DIM, FC2_DIM)),
        "fc2_b": jnp.zeros((FC2_DIM,), jnp.float32),
        "fc3_w": w((FC2_DIM, N_CLASSES)),
        "fc3_b": jnp.zeros((N_CLASSES,), jnp.float32),
    }


if __name__ == "__main__":
    key = jax.random.PRNGKey(0)
    pkey, xkey = jax.random.split(key)
    params = init_params(pkey)
    packed = pack_params(params)          # one-time prep; NOT in the per-call jitted path
    x = jax.random.normal(xkey, (BATCH, N_CHANNELS, SPATIAL, SPATIAL), jnp.float32)

    out = jax.block_until_ready(mae_finetune_forward(x, packed))
    assert out.shape == (BATCH, N_CLASSES), out.shape
    assert bool(jnp.all(jnp.isfinite(out)))
    print("KERNEL_OK")
</pallas_src>

<mosaic_0001>
module attributes {stable_mosaic.version = 11 : i64} {
  func.func @_fused_forward_kernel(%arg0: memref<40x64xf32, #tpu.memory_space<vmem>>, %arg1: memref<40x146xf32, #tpu.memory_space<vmem>>, %arg2: memref<24x384xf32, #tpu.memory_space<vmem>>, %arg3: memref<64x1536xf32, #tpu.memory_space<vmem>>, %arg4: memref<256x64xf32, #tpu.memory_space<vmem>>, %arg5: memref<408x24xf32, #tpu.memory_space<vmem>>, %arg6: memref<2x3xf32, #tpu.memory_space<vmem>>) attributes {dimension_semantics = [], scalar_prefetch = 0 : i64, scratch_operands = 0 : i64, tpu.core_type = #tpu.core_type<tc>} {
    %c0 = arith.constant 0 : index
    %c0_0 = arith.constant 0 : index
    %0 = vector.load %arg1[%c0, %c0_0] : memref<40x146xf32, #tpu.memory_space<vmem>>, vector<40x64xf32>
    %c0_1 = arith.constant 0 : index
    %c64 = arith.constant 64 : index
    %1 = vector.load %arg1[%c0_1, %c64] : memref<40x146xf32, #tpu.memory_space<vmem>>, vector<40x40xf32>
    %c0_2 = arith.constant 0 : index
    %c104 = arith.constant 104 : index
    %2 = vector.load %arg1[%c0_2, %c104] : memref<40x146xf32, #tpu.memory_space<vmem>>, vector<40x40xf32>
    %c0_3 = arith.constant 0 : index
    %c144 = arith.constant 144 : index
    %3 = vector.load %arg1[%c0_3, %c144] : memref<40x146xf32, #tpu.memory_space<vmem>>, vector<40x1xf32>
    %c0_4 = arith.constant 0 : index
    %c145 = arith.constant 145 : index
    %4 = vector.load %arg1[%c0_4, %c145] : memref<40x146xf32, #tpu.memory_space<vmem>>, vector<40x1xf32>
    %c0_5 = arith.constant 0 : index
    %c0_6 = arith.constant 0 : index
    %5 = vector.load %arg0[%c0_5, %c0_6] : memref<40x64xf32, #tpu.memory_space<vmem>>, vector<40x64xf32>
    %c0_7 = arith.constant 0 : index
    %c0_8 = arith.constant 0 : index
    %6 = vector.load %arg3[%c0_7, %c0_8] : memref<64x1536xf32, #tpu.memory_space<vmem>>, vector<64x64xf32>
    %cst = arith.constant dense<0.000000e+00> : vector<40x64xf32>
    %7 = tpu.matmul %5, %6, %cst {dimension_numbers = #tpu.dot_dimension_numbers<[1], [0], [0], [1], [0, 0, 1, 1], [], []>} : vector<40x64xf32>, vector<64x64xf32>, vector<40x64xf32> -> vector<40x64xf32>
    %8 = arith.addf %7, %0 : vector<40x64xf32>
    %9 = tpu.concatenate %1, %1, %1, %1 in 0 : vector<40x40xf32>, vector<40x40xf32>, vector<40x40xf32>, vector<40x40xf32> -> vector<160x40xf32>
    %10 = tpu.iota {dimensions = array<i32: 1>} : vector<1x64xi32>
    %c0_i32 = arith.constant 0 : i32
    %11 = vector.broadcast %c0_i32 : i32 to vector<1x64xi32>
    %12 = arith.cmpi sge, %10, %11 : vector<1x64xi32>
    %c16_i32 = arith.constant 16 : i32
    %13 = vector.broadcast %c16_i32 : i32 to vector<1x64xi32>
    %14 = arith.cmpi slt, %10, %13 : vector<1x64xi32>
    %15 = arith.andi %12, %14 : vector<1x64xi1>
    %16 = arith.extui %15 : vector<1x64xi1> to vector<1x64xi32>
    %17 = arith.sitofp %16 : vector<1x64xi32> to vector<1x64xf32>
    %c16_i32_9 = arith.constant 16 : i32
    %18 = vector.broadcast %c16_i32_9 : i32 to vector<1x64xi32>
    %19 = arith.cmpi sge, %10, %18 : vector<1x64xi32>
    %c32_i32 = arith.constant 32 : i32
    %20 = vector.broadcast %c32_i32 : i32 to vector<1x64xi32>
    %21 = arith.cmpi slt, %10, %20 : vector<1x64xi32>
    %22 = arith.andi %19, %21 : vector<1x64xi1>
    %23 = arith.extui %22 : vector<1x64xi1> to vector<1x64xi32>
    %24 = arith.sitofp %23 : vector<1x64xi32> to vector<1x64xf32>
    %c32_i32_10 = arith.constant 32 : i32
    %25 = vector.broadcast %c32_i32_10 : i32 to vector<1x64xi32>
    %26 = arith.cmpi sge, %10, %25 : vector<1x64xi32>
    %c48_i32 = arith.constant 48 : i32
    %27 = vector.broadcast %c48_i32 : i32 to vector<1x64xi32>
    %28 = arith.cmpi slt, %10, %27 : vector<1x64xi32>
    %29 = arith.andi %26, %28 : vector<1x64xi1>
    %30 = arith.extui %29 : vector<1x64xi1> to vector<1x64xi32>
    %31 = arith.sitofp %30 : vector<1x64xi32> to vector<1x64xf32>
    %c48_i32_11 = arith.constant 48 : i32
    %32 = vector.broadcast %c48_i32_11 : i32 to vector<1x64xi32>
    %33 = arith.cmpi sge, %10, %32 : vector<1x64xi32>
    %c64_i32 = arith.constant 64 : i32
    %34 = vector.broadcast %c64_i32 : i32 to vector<1x64xi32>
    %35 = arith.cmpi slt, %10, %34 : vector<1x64xi32>
    %36 = arith.andi %33, %35 : vector<1x64xi1>
    %37 = arith.extui %36 : vector<1x64xi1> to vector<1x64xi32>
    %38 = arith.sitofp %37 : vector<1x64xi32> to vector<1x64xf32>
    %c0_12 = arith.constant 0 : index
    %c0_13 = arith.constant 0 : index
    %39 = vector.load %arg2[%c0_12, %c0_13] : memref<24x384xf32, #tpu.memory_space<vmem>>, vector<1x64xf32>
    %c1 = arith.constant 1 : index
    %c0_14 = arith.constant 0 : index
    %40 = vector.load %arg2[%c1, %c0_14] : memref<24x384xf32, #tpu.memory_space<vmem>>, vector<1x64xf32>
    %cst_15 = arith.constant dense<0.000000e+00> : vector<40xf32>
    %41 = vector.multi_reduction <add>, %8, %cst_15 [1] : vector<40x64xf32> to vector<40xf32>
    %42 = vector.shape_cast %41 : vector<40xf32> to vector<40x1xf32>
    %cst_16 = arith.constant 6.400000e+01 : f32
    %43 = vector.broadcast %cst_16 : f32 to vector<40x1xf32>
    %44 = arith.divf %42, %43 : vector<40x1xf32>
    %45 = vector.broadcast %44 : vector<40x1xf32> to vector<40x64xf32>
    %46 = arith.subf %8, %45 : vector<40x64xf32>
    %47 = arith.mulf %46, %46 : vector<40x64xf32>
    %cst_17 = arith.constant dense<0.000000e+00> : vector<40xf32>
    %48 = vector.multi_reduction <add>, %47, %cst_17 [1] : vector<40x64xf32> to vector<40xf32>
    %49 = vector.shape_cast %48 : vector<40xf32> to vector<40x1xf32>
    %cst_18 = arith.constant 6.400000e+01 : f32
    %50 = vector.broadcast %cst_18 : f32 to vector<40x1xf32>
    %51 = arith.divf %49, %50 : vector<40x1xf32>
    %cst_19 = arith.constant 9.99999974E-6 : f32
    %52 = vector.broadcast %cst_19 : f32 to vector<40x1xf32>
    %53 = arith.addf %51, %52 : vector<40x1xf32>
    %54 = math.rsqrt %53 : vector<40x1xf32>
    %55 = vector.broadcast %54 : vector<40x1xf32> to vector<40x64xf32>
    %56 = arith.mulf %46, %55 : vector<40x64xf32>
    %57 = vector.broadcast %39 : vector<1x64xf32> to vector<40x64xf32>
    %58 = arith.mulf %56, %57 : vector<40x64xf32>
    %59 = vector.broadcast %40 : vector<1x64xf32> to vector<40x64xf32>
    %60 = arith.addf %58, %59 : vector<40x64xf32>
    %c0_20 = arith.constant 0 : index
    %c128 = arith.constant 128 : index
    %61 = vector.load %arg3[%c0_20, %c128] : memref<64x1536xf32, #tpu.memory_space<vmem>>, vector<64x192xf32>
    %cst_21 = arith.constant dense<0.000000e+00> : vector<40x192xf32>
    %62 = tpu.matmul %60, %61, %cst_21 {dimension_numbers = #tpu.dot_dimension_numbers<[1], [0], [0], [1], [0, 0, 1, 1], [], []>} : vector<40x64xf32>, vector<64x192xf32>, vector<40x192xf32> -> vector<40x192xf32>
    %c2 = arith.constant 2 : index
    %c0_22 = arith.constant 0 : index
    %63 = vector.load %arg2[%c2, %c0_22] : memref<24x384xf32, #tpu.memory_space<vmem>>, vector<1x192xf32>
    %64 = vector.broadcast %63 : vector<1x192xf32> to vector<40x192xf32>
    %65 = arith.addf %62, %64 : vector<40x192xf32>
    %66 = vector.extract_strided_slice %65 {offsets = [0, 0], sizes = [40, 64], strides = [1, 1]} : vector<40x192xf32> to vector<40x64xf32>
    %67 = vector.extract_strided_slice %65 {offsets = [0, 64], sizes = [40, 64], strides = [1, 1]} : vector<40x192xf32> to vector<40x64xf32>
    %68 = vector.extract_strided_slice %65 {offsets = [0, 128], sizes = [40, 64], strides = [1, 1]} : vector<40x192xf32> to vector<40x64xf32>
    %69 = vector.broadcast %17 : vector<1x64xf32> to vector<40x64xf32>
    %70 = arith.mulf %66, %69 : vector<40x64xf32>
    %71 = vector.broadcast %24 : vector<1x64xf32> to vector<40x64xf32>
    %72 = arith.mulf %66, %71 : vector<40x64xf32>
    %73 = vector.broadcast %31 : vector<1x64xf32> to vector<40x64xf32>
    %74 = arith.mulf %66, %73 : vector<40x64xf32>
    %75 = vector.broadcast %38 : vector<1x64xf32> to vector<40x64xf32>
    %76 = arith.mulf %66, %75 : vector<40x64xf32>
    %77 = tpu.concatenate %70, %72, %74, %76 in 0 : vector<40x64xf32>, vector<40x64xf32>, vector<40x64xf32>, vector<40x64xf32> -> vector<160x64xf32>
    %cst_23 = arith.constant dense<0.000000e+00> : vector<160x40xf32>
    %78 = tpu.matmul %77, %67, %cst_23 {dimension_numbers = #tpu.dot_dimension_numbers<[1], [1], [0], [0], [0, 0, 1, 0], [], []>} : vector<160x64xf32>, vector<40x64xf32>, vector<160x40xf32> -> vector<160x40xf32>
    %cst_24 = arith.constant 2.500000e-01 : f32
    %79 = vector.broadcast %cst_24 : f32 to vector<160x40xf32>
    %80 = arith.mulf %78, %79 : vector<160x40xf32>
    %81 = arith.addf %80, %9 : vector<160x40xf32>
    %cst_25 = arith.constant dense<0xFF800000> : vector<160xf32>
    %82 = vector.multi_reduction <maximumf>, %81, %cst_25 [1] : vector<160x40xf32> to vector<160xf32>
    %83 = vector.shape_cast %82 : vector<160xf32> to vector<160x1xf32>
    %84 = vector.broadcast %83 : vector<160x1xf32> to vector<160x40xf32>
    %85 = arith.subf %81, %84 : vector<160x40xf32>
    %86 = math.exp %85 : vector<160x40xf32>
    %cst_26 = arith.constant dense<0.000000e+00> : vector<160xf32>
    %87 = vector.multi_reduction <add>, %86, %cst_26 [1] : vector<160x40xf32> to vector<160xf32>
    %88 = vector.shape_cast %87 : vector<160xf32> to vector<160x1xf32>
    %89 = tpu.reciprocal %88 {approx = true} : vector<160x1xf32> -> vector<160x1xf32>
    %90 = vector.broadcast %89 : vector<160x1xf32> to vector<160x40xf32>
    %91 = arith.mulf %86, %90 : vector<160x40xf32>
    %cst_27 = arith.constant dense<0.000000e+00> : vector<160x64xf32>
    %92 = tpu.matmul %91, %68, %cst_27 {dimension_numbers = #tpu.dot_dimension_numbers<[1], [0], [0], [1], [0, 0, 1, 1], [], []>} : vector<160x40xf32>, vector<40x64xf32>, vector<160x64xf32> -> vector<160x64xf32>
    %cst_28 = arith.constant 0.000000e+00 : f32
    %93 = vector.broadcast %cst_28 : f32 to vector<40x64xf32>
    %94 = vector.extract_strided_slice %92 {offsets = [0, 0], sizes = [40, 64], strides = [1, 1]} : vector<160x64xf32> to vector<40x64xf32>
    %95 = vector.broadcast %17 : vector<1x64xf32> to vector<40x64xf32>
    %96 = arith.mulf %94, %95 : vector<40x64xf32>
    %97 = arith.addf %93, %96 : vector<40x64xf32>
    %98 = vector.extract_strided_slice %92 {offsets = [40, 0], sizes = [40, 64], strides = [1, 1]} : vector<160x64xf32> to vector<40x64xf32>
    %99 = vector.broadcast %24 : vector<1x64xf32> to vector<40x64xf32>
    %100 = arith.mulf %98, %99 : vector<40x64xf32>
    %101 = arith.addf %97, %100 : vector<40x64xf32>
    %102 = vector.extract_strided_slice %92 {offsets = [80, 0], sizes = [40, 64], strides = [1, 1]} : vector<160x64xf32> to vector<40x64xf32>
    %103 = vector.broadcast %31 : vector<1x64xf32> to vector<40x64xf32>
    %104 = arith.mulf %102, %103 : vector<40x64xf32>
    %105 = arith.addf %101, %104 : vector<40x64xf32>
    %106 = vector.extract_strided_slice %92 {offsets = [120, 0], sizes = [40, 64], strides = [1, 1]} : vector<160x64xf32> to vector<40x64xf32>
    %107 = vector.broadcast %38 : vector<1x64xf32> to vector<40x64xf32>
    %108 = arith.mulf %106, %107 : vector<40x64xf32>
    %109 = arith.addf %105, %108 : vector<40x64xf32>
    %c0_29 = arith.constant 0 : index
    %c640 = arith.constant 640 : index
    %110 = vector.load %arg3[%c0_29, %c640] : memref<64x1536xf32, #tpu.memory_space<vmem>>, vector<64x64xf32>
    %cst_30 = arith.constant dense<0.000000e+00> : vector<40x64xf32>
    %111 = tpu.matmul %109, %110, %cst_30 {dimension_numbers = #tpu.dot_dimension_numbers<[1], [0], [0], [1], [0, 0, 1, 1], [], []>} : vector<40x64xf32>, vector<64x64xf32>, vector<40x64xf32> -> vector<40x64xf32>
    %112 = arith.addf %8, %111 : vector<40x64xf32>
    %c3 = arith.constant 3 : index
    %c0_31 = arith.constant 0 : index
    %113 = vector.load %arg2[%c3, %c0_31] : memref<24x384xf32, #tpu.memory_space<vmem>>, vector<1x64xf32>
    %114 = vector.broadcast %113 : vector<1x64xf32> to vector<40x64xf32>
    %115 = arith.addf %112, %114 : vector<40x64xf32>
    %c4 = arith.constant 4 : index
    %c0_32 = arith.constant 0 : index
    %116 = vector.load %arg2[%c4, %c0_32] : memref<24x384xf32, #tpu.memory_space<vmem>>, vector<1x64xf32>
    %c5 = arith.constant 5 : index
    %c0_33 = arith.constant 0 : index
    %117 = vector.load %arg2[%c5, %c0_33] : memref<24x384xf32, #tpu.memory_space<vmem>>, vector<1x64xf32>
    %cst_34 = arith.constant dense<0.000000e+00> : vector<40xf32>
    %118 = vector.multi_reduction <add>, %115, %cst_34 [1] : vector<40x64xf32> to vector<40xf32>
    %119 = vector.shape_cast %118 : vector<40xf32> to vector<40x1xf32>
    %cst_35 = arith.constant 6.400000e+01 : f32
    %120 = vector.broadcast %cst_35 : f32 to vector<40x1xf32>
    %121 = arith.divf %119, %120 : vector<40x1xf32>
    %122 = vector.broadcast %121 : vector<40x1xf32> to vector<40x64xf32>
    %123 = arith.subf %115, %122 : vector<40x64xf32>
    %124 = arith.mulf %123, %123 : vector<40x64xf32>
    %cst_36 = arith.constant dense<0.000000e+00> : vector<40xf32>
    %125 = vector.multi_reduction <add>, %124, %cst_36 [1] : vector<40x64xf32> to vector<40xf32>
    %126 = vector.shape_cast %125 : vector<40xf32> to vector<40x1xf32>
    %cst_37 = arith.constant 6.400000e+01 : f32
    %127 = vector.broadcast %cst_37 : f32 to vector<40x1xf32>
    %128 = arith.divf %126, %127 : vector<40x1xf32>
    %cst_38 = arith.constant 9.99999974E-6 : f32
    %129 = vector.broadcast %cst_38 : f32 to vector<40x1xf32>
    %130 = arith.addf %128, %129 : vector<40x1xf32>
    %131 = math.rsqrt %130 : vector<40x1xf32>
    %132 = vector.broadcast %131 : vector<40x1xf32> to vector<40x64xf32>
    %133 = arith.mulf %123, %132 : vector<40x64xf32>
    %134 = vector.broadcast %116 : vector<1x64xf32> to vector<40x64xf32>
    %135 = arith.mulf %133, %134 : vector<40x64xf32>
    %136 = vector.broadcast %117 : vector<1x64xf32> to vector<40x64xf32>
    %137 = arith.addf %135, %136 : vector<40x64xf32>
    %c0_39 = arith.constant 0 : index
    %c896 = arith.constant 896 : index
    %138 = vector.load %arg3[%c0_39, %c896] : memref<64x1536xf32, #tpu.memory_space<vmem>>, vector<64x128xf32>
    %cst_40 = arith.constant dense<0.000000e+00> : vector<40x128xf32>
    %139 = tpu.matmul %137, %138, %cst_40 {dimension_numbers = #tpu.dot_dimension_numbers<[1], [0], [0], [1], [0, 0, 1, 1], [], []>} : vector<40x64xf32>, vector<64x128xf32>, vector<40x128xf32> -> vector<40x128xf32>
    %c6 = arith.constant 6 : index
    %c0_41 = arith.constant 0 : index
    %140 = vector.load %arg2[%c6, %c0_41] : memref<24x384xf32, #tpu.memory_space<vmem>>, vector<1x128xf32>
    %141 = vector.broadcast %140 : vector<1x128xf32> to vector<40x128xf32>
    %142 = arith.addf %139, %141 : vector<40x128xf32>
    %143 = arith.mulf %142, %142 : vector<40x128xf32>
    %144 = arith.mulf %142, %143 : vector<40x128xf32>
    %cst_42 = arith.constant 4.471500e-02 : f32
    %145 = vector.broadcast %cst_42 : f32 to vector<40x128xf32>
    %146 = arith.mulf %145, %144 : vector<40x128xf32>
    %147 = arith.addf %142, %146 : vector<40x128xf32>
    %cst_43 = arith.constant 0.797884583 : f32
    %148 = vector.broadcast %cst_43 : f32 to vector<40x128xf32>
    %149 = arith.mulf %148, %147 : vector<40x128xf32>
    %150 = math.tanh %149 : vector<40x128xf32>
    %cst_44 = arith.constant 1.000000e+00 : f32
    %151 = vector.broadcast %cst_44 : f32 to vector<40x128xf32>
    %152 = arith.addf %151, %150 : vector<40x128xf32>
    %cst_45 = arith.constant 5.000000e-01 : f32
    %153 = vector.broadcast %cst_45 : f32 to vector<40x128xf32>
    %154 = arith.mulf %153, %152 : vector<40x128xf32>
    %155 = arith.mulf %142, %154 : vector<40x128xf32>
    %c0_46 = arith.constant 0 : index
    %c0_47 = arith.constant 0 : index
    %156 = vector.load %arg4[%c0_46, %c0_47] : memref<256x64xf32, #tpu.memory_space<vmem>>, vector<128x64xf32>
    %cst_48 = arith.constant dense<0.000000e+00> : vector<40x64xf32>
    %157 = tpu.matmul %155, %156, %cst_48 {dimension_numbers = #tpu.dot_dimension_numbers<[1], [0], [0], [1], [0, 0, 1, 1], [], []>} : vector<40x128xf32>, vector<128x64xf32>, vector<40x64xf32> -> vector<40x64xf32>
    %158 = arith.addf %115, %157 : vector<40x64xf32>
    %c7 = arith.constant 7 : index
    %c0_49 = arith.constant 0 : index
    %159 = vector.load %arg2[%c7, %c0_49] : memref<24x384xf32, #tpu.memory_space<vmem>>, vector<1x64xf32>
    %160 = vector.broadcast %159 : vector<1x64xf32> to vector<40x64xf32>
    %161 = arith.addf %158, %160 : vector<40x64xf32>
    %c8 = arith.constant 8 : index
    %c0_50 = arith.constant 0 : index
    %162 = vector.load %arg2[%c8, %c0_50] : memref<24x384xf32, #tpu.memory_space<vmem>>, vector<1x64xf32>
    %c9 = arith.constant 9 : index
    %c0_51 = arith.constant 0 : index
    %163 = vector.load %arg2[%c9, %c0_51] : memref<24x384xf32, #tpu.memory_space<vmem>>, vector<1x64xf32>
    %cst_52 = arith.constant dense<0.000000e+00> : vector<40xf32>
    %164 = vector.multi_reduction <add>, %161, %cst_52 [1] : vector<40x64xf32> to vector<40xf32>
    %165 = vector.shape_cast %164 : vector<40xf32> to vector<40x1xf32>
    %cst_53 = arith.constant 6.400000e+01 : f32
    %166 = vector.broadcast %cst_53 : f32 to vector<40x1xf32>
    %167 = arith.divf %165, %166 : vector<40x1xf32>
    %168 = vector.broadcast %167 : vector<40x1xf32> to vector<40x64xf32>
    %169 = arith.subf %161, %168 : vector<40x64xf32>
    %170 = arith.mulf %169, %169 : vector<40x64xf32>
    %cst_54 = arith.constant dense<0.000000e+00> : vector<40xf32>
    %171 = vector.multi_reduction <add>, %170, %cst_54 [1] : vector<40x64xf32> to vector<40xf32>
    %172 = vector.shape_cast %171 : vector<40xf32> to vector<40x1xf32>
    %cst_55 = arith.constant 6.400000e+01 : f32
    %173 = vector.broadcast %cst_55 : f32 to vector<40x1xf32>
    %174 = arith.divf %172, %173 : vector<40x1xf32>
    %cst_56 = arith.constant 9.99999974E-6 : f32
    %175 = vector.broadcast %cst_56 : f32 to vector<40x1xf32>
    %176 = arith.addf %174, %175 : vector<40x1xf32>
    %177 = math.rsqrt %176 : vector<40x1xf32>
    %178 = vector.broadcast %177 : vector<40x1xf32> to vector<40x64xf32>
    %179 = arith.mulf %169, %178 : vector<40x64xf32>
    %180 = vector.broadcast %162 : vector<1x64xf32> to vector<40x64xf32>
    %181 = arith.mulf %179, %180 : vector<40x64xf32>
    %182 = vector.broadcast %163 : vector<1x64xf32> to vector<40x64xf32>
    %183 = arith.addf %181, %182 : vector<40x64xf32>
    %c0_57 = arith.constant 0 : index
    %c384 = arith.constant 384 : index
    %184 = vector.load %arg3[%c0_57, %c384] : memref<64x1536xf32, #tpu.memory_space<vmem>>, vector<64x192xf32>
    %cst_58 = arith.constant dense<0.000000e+00> : vector<40x192xf32>
    %185 = tpu.matmul %183, %184, %cst_58 {dimension_numbers = #tpu.dot_dimension_numbers<[1], [0], [0], [1], [0, 0, 1, 1], [], []>} : vector<40x64xf32>, vector<64x192xf32>, vector<40x192xf32> -> vector<40x192xf32>
    %c10 = arith.constant 10 : index
    %c0_59 = arith.constant 0 : index
    %186 = vector.load %arg2[%c10, %c0_59] : memref<24x384xf32, #tpu.memory_space<vmem>>, vector<1x192xf32>
    %187 = vector.broadcast %186 : vector<1x192xf32> to vector<40x192xf32>
    %188 = arith.addf %185, %187 : vector<40x192xf32>
    %189 = vector.extract_strided_slice %188 {offsets = [0, 0], sizes = [40, 64], strides = [1, 1]} : vector<40x192xf32> to vector<40x64xf32>
    %190 = vector.extract_strided_slice %188 {offsets = [0, 64], sizes = [40, 64], strides = [1, 1]} : vector<40x192xf32> to vector<40x64xf32>
    %191 = vector.extract_strided_slice %188 {offsets = [0, 128], sizes = [40, 64], strides = [1, 1]} : vector<40x192xf32> to vector<40x64xf32>
    %192 = vector.broadcast %17 : vector<1x64xf32> to vector<40x64xf32>
    %193 = arith.mulf %189, %192 : vector<40x64xf32>
    %194 = vector.broadcast %24 : vector<1x64xf32> to vector<40x64xf32>
    %195 = arith.mulf %189, %194 : vector<40x64xf32>
    %196 = vector.broadcast %31 : vector<1x64xf32> to vector<40x64xf32>
    %197 = arith.mulf %189, %196 : vector<40x64xf32>
    %198 = vector.broadcast %38 : vector<1x64xf32> to vector<40x64xf32>
    %199 = arith.mulf %189, %198 : vector<40x64xf32>
    %200 = tpu.concatenate %193, %195, %197, %199 in 0 : vector<40x64xf32>, vector<40x64xf32>, vector<40x64xf32>, vector<40x64xf32> -> vector<160x64xf32>
    %cst_60 = arith.constant dense<0.000000e+00> : vector<160x40xf32>
    %201 = tpu.matmul %200, %190, %cst_60 {dimension_numbers = #tpu.dot_dimension_numbers<[1], [1], [0], [0], [0, 0, 1, 0], [], []>} : vector<160x64xf32>, vector<40x64xf32>, vector<160x40xf32> -> vector<160x40xf32>
    %cst_61 = arith.constant 2.500000e-01 : f32
    %202 = vector.broadcast %cst_61 : f32 to vector<160x40xf32>
    %203 = arith.mulf %201, %202 : vector<160x40xf32>
    %204 = arith.addf %203, %9 : vector<160x40xf32>
    %cst_62 = arith.constant dense<0xFF800000> : vector<160xf32>
    %205 = vector.multi_reduction <maximumf>, %204, %cst_62 [1] : vector<160x40xf32> to vector<160xf32>
    %206 = vector.shape_cast %205 : vector<160xf32> to vector<160x1xf32>
    %207 = vector.broadcast %206 : vector<160x1xf32> to vector<160x40xf32>
    %208 = arith.subf %204, %207 : vector<160x40xf32>
    %209 = math.exp %208 : vector<160x40xf32>
    %cst_63 = arith.constant dense<0.000000e+00> : vector<160xf32>
    %210 = vector.multi_reduction <add>, %209, %cst_63 [1] : vector<160x40xf32> to vector<160xf32>
    %211 = vector.shape_cast %210 : vector<160xf32> to vector<160x1xf32>
    %212 = tpu.reciprocal %211 {approx = true} : vector<160x1xf32> -> vector<160x1xf32>
    %213 = vector.broadcast %212 : vector<160x1xf32> to vector<160x40xf32>
    %214 = arith.mulf %209, %213 : vector<160x40xf32>
    %cst_64 = arith.constant dense<0.000000e+00> : vector<160x64xf32>
    %215 = tpu.matmul %214, %191, %cst_64 {dimension_numbers = #tpu.dot_dimension_numbers<[1], [0], [0], [1], [0, 0, 1, 1], [], []>} : vector<160x40xf32>, vector<40x64xf32>, vector<160x64xf32> -> vector<160x64xf32>
    %cst_65 = arith.constant 0.000000e+00 : f32
    %216 = vector.broadcast %cst_65 : f32 to vector<40x64xf32>
    %217 = vector.extract_strided_slice %215 {offsets = [0, 0], sizes = [40, 64], strides = [1, 1]} : vector<160x64xf32> to vector<40x64xf32>
    %218 = vector.broadcast %17 : vector<1x64xf32> to vector<40x64xf32>
    %219 = arith.mulf %217, %218 : vector<40x64xf32>
    %220 = arith.addf %216, %219 : vector<40x64xf32>
    %221 = vector.extract_strided_slice %215 {offsets = [40, 0], sizes = [40, 64], strides = [1, 1]} : vector<160x64xf32> to vector<40x64xf32>
    %222 = vector.broadcast %24 : vector<1x64xf32> to vector<40x64xf32>
    %223 = arith.mulf %221, %222 : vector<40x64xf32>
    %224 = arith.addf %220, %223 : vector<40x64xf32>
    %225 = vector.extract_strided_slice %215 {offsets = [80, 0], sizes = [40, 64], strides = [1, 1]} : vector<160x64xf32> to vector<40x64xf32>
    %226 = vector.broadcast %31 : vector<1x64xf32> to vector<40x64xf32>
    %227 = arith.mulf %225, %226 : vector<40x64xf32>
    %228 = arith.addf %224, %227 : vector<40x64xf32>
    %229 = vector.extract_strided_slice %215 {offsets = [120, 0], sizes = [40, 64], strides = [1, 1]} : vector<160x64xf32> to vector<40x64xf32>
    %230 = vector.broadcast %38 : vector<1x64xf32> to vector<40x64xf32>
    %231 = arith.mulf %229, %230 : vector<40x64xf32>
    %232 = arith.addf %228, %231 : vector<40x64xf32>
    %c0_66 = arith.constant 0 : index
    %c768 = arith.constant 768 : index
    %233 = vector.load %arg3[%c0_66, %c768] : memref<64x1536xf32, #tpu.memory_space<vmem>>, vector<64x64xf32>
    %cst_67 = arith.constant dense<0.000000e+00> : vector<40x64xf32>
    %234 = tpu.matmul %232, %233, %cst_67 {dimension_numbers = #tpu.dot_dimension_numbers<[1], [0], [0], [1], [0, 0, 1, 1], [], []>} : vector<40x64xf32>, vector<64x64xf32>, vector<40x64xf32> -> vector<40x64xf32>
    %235 = arith.addf %161, %234 : vector<40x64xf32>
    %c11 = arith.constant 11 : index
    %c0_68 = arith.constant 0 : index
    %236 = vector.load %arg2[%c11, %c0_68] : memref<24x384xf32, #tpu.memory_space<vmem>>, vector<1x64xf32>
    %237 = vector.broadcast %236 : vector<1x64xf32> to vector<40x64xf32>
    %238 = arith.addf %235, %237 : vector<40x64xf32>
    %c12 = arith.constant 12 : index
    %c0_69 = arith.constant 0 : index
    %239 = vector.load %arg2[%c12, %c0_69] : memref<24x384xf32, #tpu.memory_space<vmem>>, vector<1x64xf32>
    %c13 = arith.constant 13 : index
    %c0_70 = arith.constant 0 : index
    %240 = vector.load %arg2[%c13, %c0_70] : memref<24x384xf32, #tpu.memory_space<vmem>>, vector<1x64xf32>
    %cst_71 = arith.constant dense<0.000000e+00> : vector<40xf32>
    %241 = vector.multi_reduction <add>, %238, %cst_71 [1] : vector<40x64xf32> to vector<40xf32>
    %242 = vector.shape_cast %241 : vector<40xf32> to vector<40x1xf32>
    %cst_72 = arith.constant 6.400000e+01 : f32
    %243 = vector.broadcast %cst_72 : f32 to vector<40x1xf32>
    %244 = arith.divf %242, %243 : vector<40x1xf32>
    %245 = vector.broadcast %244 : vector<40x1xf32> to vector<40x64xf32>
    %246 = arith.subf %238, %245 : vector<40x64xf32>
    %247 = arith.mulf %246, %246 : vector<40x64xf32>
    %cst_73 = arith.constant dense<0.000000e+00> : vector<40xf32>
    %248 = vector.multi_reduction <add>, %247, %cst_73 [1] : vector<40x64xf32> to vector<40xf32>
    %249 = vector.shape_cast %248 : vector<40xf32> to vector<40x1xf32>
    %cst_74 = arith.constant 6.400000e+01 : f32
    %250 = vector.broadcast %cst_74 : f32 to vector<40x1xf32>
    %251 = arith.divf %249, %250 : vector<40x1xf32>
    %cst_75 = arith.constant 9.99999974E-6 : f32
    %252 = vector.broadcast %cst_75 : f32 to vector<40x1xf32>
    %253 = arith.addf %251, %252 : vector<40x1xf32>
    %254 = math.rsqrt %253 : vector<40x1xf32>
    %255 = vector.broadcast %254 : vector<40x1xf32> to vector<40x64xf32>
    %256 = arith.mulf %246, %255 : vector<40x64xf32>
    %257 = vector.broadcast %239 : vector<1x64xf32> to vector<40x64xf32>
    %258 = arith.mulf %256, %257 : vector<40x64xf32>
    %259 = vector.broadcast %240 : vector<1x64xf32> to vector<40x64xf32>
    %260 = arith.addf %258, %259 : vector<40x64xf32>
    %c0_76 = arith.constant 0 : index
    %c1024 = arith.constant 1024 : index
    %261 = vector.load %arg3[%c0_76, %c1024] : memref<64x1536xf32, #tpu.memory_space<vmem>>, vector<64x128xf32>
    %cst_77 = arith.constant dense<0.000000e+00> : vector<40x128xf32>
    %262 = tpu.matmul %260, %261, %cst_77 {dimension_numbers = #tpu.dot_dimension_numbers<[1], [0], [0], [1], [0, 0, 1, 1], [], []>} : vector<40x64xf32>, vector<64x128xf32>, vector<40x128xf32> -> vector<40x128xf32>
    %c14 = arith.constant 14 : index
    %c0_78 = arith.constant 0 : index
    %263 = vector.load %arg2[%c14, %c0_78] : memref<24x384xf32, #tpu.memory_space<vmem>>, vector<1x128xf32>
    %264 = vector.broadcast %263 : vector<1x128xf32> to vector<40x128xf32>
    %265 = arith.addf %262, %264 : vector<40x128xf32>
    %266 = arith.mulf %265, %265 : vector<40x128xf32>
    %267 = arith.mulf %265, %266 : vector<40x128xf32>
    %cst_79 = arith.constant 4.471500e-02 : f32
    %268 = vector.broadcast %cst_79 : f32 to vector<40x128xf32>
    %269 = arith.mulf %268, %267 : vector<40x128xf32>
    %270 = arith.addf %265, %269 : vector<40x128xf32>
    %cst_80 = arith.constant 0.797884583 : f32
    %271 = vector.broadcast %cst_80 : f32 to vector<40x128xf32>
    %272 = arith.mulf %271, %270 : vector<40x128xf32>
    %273 = math.tanh %272 : vector<40x128xf32>
    %cst_81 = arith.constant 1.000000e+00 : f32
    %274 = vector.broadcast %cst_81 : f32 to vector<40x128xf32>
    %275 = arith.addf %274, %273 : vector<40x128xf32>
    %cst_82 = arith.constant 5.000000e-01 : f32
    %276 = vector.broadcast %cst_82 : f32 to vector<40x128xf32>
    %277 = arith.mulf %276, %275 : vector<40x128xf32>
    %278 = arith.mulf %265, %277 : vector<40x128xf32>
    %c128_83 = arith.constant 128 : index
    %c0_84 = arith.constant 0 : index
    %279 = vector.load %arg4[%c128_83, %c0_84] : memref<256x64xf32, #tpu.memory_space<vmem>>, vector<128x64xf32>
    %cst_85 = arith.constant dense<0.000000e+00> : vector<40x64xf32>
    %280 = tpu.matmul %278, %279, %cst_85 {dimension_numbers = #tpu.dot_dimension_numbers<[1], [0], [0], [1], [0, 0, 1, 1], [], []>} : vector<40x128xf32>, vector<128x64xf32>, vector<40x64xf32> -> vector<40x64xf32>
    %281 = arith.addf %238, %280 : vector<40x64xf32>
    %c15 = arith.constant 15 : index
    %c0_86 = arith.constant 0 : index
    %282 = vector.load %arg2[%c15, %c0_86] : memref<24x384xf32, #tpu.memory_space<vmem>>, vector<1x64xf32>
    %283 = vector.broadcast %282 : vector<1x64xf32> to vector<40x64xf32>
    %284 = arith.addf %281, %283 : vector<40x64xf32>
    %c16 = arith.constant 16 : index
    %c0_87 = arith.constant 0 : index
    %285 = vector.load %arg2[%c16, %c0_87] : memref<24x384xf32, #tpu.memory_space<vmem>>, vector<1x64xf32>
    %c17 = arith.constant 17 : index
    %c0_88 = arith.constant 0 : index
    %286 = vector.load %arg2[%c17, %c0_88] : memref<24x384xf32, #tpu.memory_space<vmem>>, vector<1x64xf32>
    %cst_89 = arith.constant dense<0.000000e+00> : vector<40xf32>
    %287 = vector.multi_reduction <add>, %284, %cst_89 [1] : vector<40x64xf32> to vector<40xf32>
    %288 = vector.shape_cast %287 : vector<40xf32> to vector<40x1xf32>
    %cst_90 = arith.constant 6.400000e+01 : f32
    %289 = vector.broadcast %cst_90 : f32 to vector<40x1xf32>
    %290 = arith.divf %288, %289 : vector<40x1xf32>
    %291 = vector.broadcast %290 : vector<40x1xf32> to vector<40x64xf32>
    %292 = arith.subf %284, %291 : vector<40x64xf32>
    %293 = arith.mulf %292, %292 : vector<40x64xf32>
    %cst_91 = arith.constant dense<0.000000e+00> : vector<40xf32>
    %294 = vector.multi_reduction <add>, %293, %cst_91 [1] : vector<40x64xf32> to vector<40xf32>
    %295 = vector.shape_cast %294 : vector<40xf32> to vector<40x1xf32>
    %cst_92 = arith.constant 6.400000e+01 : f32
    %296 = vector.broadcast %cst_92 : f32 to vector<40x1xf32>
    %297 = arith.divf %295, %296 : vector<40x1xf32>
    %cst_93 = arith.constant 9.99999974E-6 : f32
    %298 = vector.broadcast %cst_93 : f32 to vector<40x1xf32>
    %299 = arith.addf %297, %298 : vector<40x1xf32>
    %300 = math.rsqrt %299 : vector<40x1xf32>
    %301 = vector.broadcast %300 : vector<40x1xf32> to vector<40x64xf32>
    %302 = arith.mulf %292, %301 : vector<40x64xf32>
    %303 = vector.broadcast %285 : vector<1x64xf32> to vector<40x64xf32>
    %304 = arith.mulf %302, %303 : vector<40x64xf32>
    %305 = vector.broadcast %286 : vector<1x64xf32> to vector<40x64xf32>
    %306 = arith.addf %304, %305 : vector<40x64xf32>
    %cst_94 = arith.constant dense<0.000000e+00> : vector<40xf32>
    %307 = vector.multi_reduction <add>, %306, %cst_94 [1] : vector<40x64xf32> to vector<40xf32>
    %308 = vector.shape_cast %307 : vector<40xf32> to vector<40x1xf32>
    %309 = arith.mulf %306, %306 : vector<40x64xf32>
    %cst_95 = arith.constant dense<0.000000e+00> : vector<40xf32>
    %310 = vector.multi_reduction <add>, %309, %cst_95 [1] : vector<40x64xf32> to vector<40xf32>
    %311 = vector.shape_cast %310 : vector<40xf32> to vector<40x1xf32>
    %312 = tpu.concatenate %308, %311 in 1 : vector<40x1xf32>, vector<40x1xf32> -> vector<40x2xf32>
    %cst_96 = arith.constant dense<0.000000e+00> : vector<40x2xf32>
    %313 = tpu.matmul %2, %312, %cst_96 {dimension_numbers = #tpu.dot_dimension_numbers<[1], [0], [0], [1], [0, 0, 1, 1], [], []>} : vector<40x40xf32>, vector<40x2xf32>, vector<40x2xf32> -> vector<40x2xf32>
    %314 = vector.extract_strided_slice %313 {offsets = [0, 0], sizes = [40, 1], strides = [1, 1]} : vector<40x2xf32> to vector<40x1xf32>
    %315 = vector.extract_strided_slice %313 {offsets = [0, 1], sizes = [40, 1], strides = [1, 1]} : vector<40x2xf32> to vector<40x1xf32>
    %316 = arith.mulf %314, %314 : vector<40x1xf32>
    %317 = arith.subf %315, %316 : vector<40x1xf32>
    %cst_97 = arith.constant 0.000000e+00 : f32
    %318 = vector.broadcast %cst_97 : f32 to vector<40x1xf32>
    %319 = arith.maximumf %317, %318 : vector<40x1xf32>
    %320 = vector.broadcast %314 : vector<40x1xf32> to vector<40x64xf32>
    %321 = arith.subf %306, %320 : vector<40x64xf32>
    %cst_98 = arith.constant 9.99999974E-6 : f32
    %322 = vector.broadcast %cst_98 : f32 to vector<40x1xf32>
    %323 = arith.addf %319, %322 : vector<40x1xf32>
    %324 = math.rsqrt %323 : vector<40x1xf32>
    %325 = vector.broadcast %324 : vector<40x1xf32> to vector<40x64xf32>
    %326 = arith.mulf %321, %325 : vector<40x64xf32>
    %327 = vector.broadcast %3 : vector<40x1xf32> to vector<40x64xf32>
    %328 = arith.mulf %326, %327 : vector<40x64xf32>
    %329 = vector.broadcast %4 : vector<40x1xf32> to vector<40x64xf32>
    %330 = arith.addf %328, %329 : vector<40x64xf32>
    %c21 = arith.constant 21 : index
    %c0_99 = arith.constant 0 : index
    %331 = vector.load %arg2[%c21, %c0_99] : memref<24x384xf32, #tpu.memory_space<vmem>>, vector<2x40xf32>
    %cst_100 = arith.constant dense<0.000000e+00> : vector<2x64xf32>
    %332 = tpu.matmul %331, %330, %cst_100 {dimension_numbers = #tpu.dot_dimension_numbers<[1], [0], [0], [1], [0, 0, 1, 1], [], []>} : vector<2x40xf32>, vector<40x64xf32>, vector<2x64xf32> -> vector<2x64xf32>
    %c0_101 = arith.constant 0 : index
    %c1152 = arith.constant 1152 : index
    %333 = vector.load %arg3[%c0_101, %c1152] : memref<64x1536xf32, #tpu.memory_space<vmem>>, vector<64x384xf32>
    %cst_102 = arith.constant dense<0.000000e+00> : vector<2x384xf32>
    %334 = tpu.matmul %332, %333, %cst_102 {dimension_numbers = #tpu.dot_dimension_numbers<[1], [0], [0], [1], [0, 0, 1, 1], [], []>} : vector<2x64xf32>, vector<64x384xf32>, vector<2x384xf32> -> vector<2x384xf32>
    %c18 = arith.constant 18 : index
    %c0_103 = arith.constant 0 : index
    %335 = vector.load %arg2[%c18, %c0_103] : memref<24x384xf32, #tpu.memory_space<vmem>>, vector<1x384xf32>
    %336 = vector.broadcast %335 : vector<1x384xf32> to vector<2x384xf32>
    %337 = arith.addf %334, %336 : vector<2x384xf32>
    %cst_104 = arith.constant 0.000000e+00 : f32
    %338 = vector.broadcast %cst_104 : f32 to vector<2x384xf32>
    %339 = arith.maximumf %337, %338 : vector<2x384xf32>
    %c0_105 = arith.constant 0 : index
    %c0_106 = arith.constant 0 : index
    %340 = vector.load %arg5[%c0_105, %c0_106] : memref<408x24xf32, #tpu.memory_space<vmem>>, vector<384x24xf32>
    %cst_107 = arith.constant dense<0.000000e+00> : vector<2x24xf32>
    %341 = tpu.matmul %339, %340, %cst_107 {dimension_numbers = #tpu.dot_dimension_numbers<[1], [0], [0], [1], [0, 0, 1, 1], [], []>} : vector<2x384xf32>, vector<384x24xf32>, vector<2x24xf32> -> vector<2x24xf32>
    %c19 = arith.constant 19 : index
    %c0_108 = arith.constant 0 : index
    %342 = vector.load %arg2[%c19, %c0_108] : memref<24x384xf32, #tpu.memory_space<vmem>>, vector<1x24xf32>
    %343 = vector.broadcast %342 : vector<1x24xf32> to vector<2x24xf32>
    %344 = arith.addf %341, %343 : vector<2x24xf32>
    %cst_109 = arith.constant 0.000000e+00 : f32
    %345 = vector.broadcast %cst_109 : f32 to vector<2x24xf32>
    %346 = arith.maximumf %344, %345 : vector<2x24xf32>
    %c384_110 = arith.constant 384 : index
    %c0_111 = arith.constant 0 : index
    %347 = vector.load %arg5[%c384_110, %c0_111] : memref<408x24xf32, #tpu.memory_space<vmem>>, vector<24x3xf32>
    %cst_112 = arith.constant dense<0.000000e+00> : vector<2x3xf32>
    %348 = tpu.matmul %346, %347, %cst_112 {dimension_numbers = #tpu.dot_dimension_numbers<[1], [0], [0], [1], [0, 0, 1, 1], [], []>} : vector<2x24xf32>, vector<24x3xf32>, vector<2x3xf32> -> vector<2x3xf32>
    %c20 = arith.constant 20 : index
    %c0_113 = arith.constant 0 : index
    %349 = vector.load %arg2[%c20, %c0_113] : memref<24x384xf32, #tpu.memory_space<vmem>>, vector<1x3xf32>
    %350 = vector.broadcast %349 : vector<1x3xf32> to vector<2x3xf32>
    %351 = arith.addf %348, %350 : vector<2x3xf32>
    %c0_114 = arith.constant 0 : index
    %c0_115 = arith.constant 0 : index
    %352 = vector.load %arg6[%c0_114, %c0_115] : memref<2x3xf32, #tpu.memory_space<vmem>>, vector<2x3xf32>
    tpu.vector_store %arg6[%c0_114, %c0_115], %351 {strides = array<i32>} : memref<2x3xf32, #tpu.memory_space<vmem>>, vector<2x3xf32>,
    return
  }
}

</mosaic_0001>

<llo_original>
// kernel: mae_finetune_forward.1
$region0: #{mae_finetune_forward.1}
  #allocation0 [shape = 'u32[]', space=smem, size = 0x4, offset = 0x4, fixed_abs, tag = 'smem constant byte address 0x4 - core index']
  #allocation1 [shape = 'u32[144,128]{1,0:T(1,128)}', space=vmem, size = 0x12000, scoped, tag = 'internal scratch']
  %s0 = inlined_call_operand.vmem [shape: f32[40,64], index: 0, kind: input, shape index: {}]
  %s1 = inlined_call_operand.vmem [shape: f32[40,146], index: 1, kind: input, shape index: {}]
  %s2 = inlined_call_operand.vmem [shape: f32[24,384], index: 2, kind: input, shape index: {}]
  %s3 = inlined_call_operand.vmem [shape: f32[64,1536], index: 3, kind: input, shape index: {}]
  %s4 = inlined_call_operand.vmem [shape: f32[256,64], index: 4, kind: input, shape index: {}]
  %s5 = inlined_call_operand.vmem [shape: f32[408,24], index: 5, kind: input, shape index: {}]
  %s6 = inlined_call_operand.hbm [shape: f32[2,3], index: 6, kind: output, shape index: {}]
  %s7 = sld [smem:[#allocation0]]
  $region34: #{mae_finetune_forward.1} parent=0
    _
  %s9 = ssub.s32 1, %s7
  %s10 = scalar_select 0, %s9, %s7
  $region1: #{mae_finetune_forward.1} parent=0
    #allocation2 [shape = 'u8[1024]{0}', space=vmem, size = 0x400, scoped, tag = 'output window, operand 0, single buffered']
    #allocation3 [shape = 's32[1]{0}', space=sflag, size = 0x4, scoped, tag = 'scoped memory for mae_finetune_forward.1']
    %11 = vsyncpa [#allocation3], 0
    // Predicated region
    $region2: #{mae_finetune_forward.1} parent=1 // pred_check
      _
    $region3: #{mae_finetune_forward.1} parent=1 // pred_check_branch
      %13 = sbr.rel (0) target = $region5
    $region4: #{mae_finetune_forward.1} parent=1 // pred_region
      _
    $region5: #{mae_finetune_forward.1} parent=1 // pred_fallthru
      _
    // Predicated region
    $region6: #{mae_finetune_forward.1} parent=1 // pred_check
      _
    $region7: #{mae_finetune_forward.1} parent=1 // pred_check_branch
      %15 = sbr.rel (0) target = $region9
    $region8: #{mae_finetune_forward.1} parent=1 // pred_region
      _
    $region9: #{mae_finetune_forward.1} parent=1 // pred_fallthru
      _
    // Predicated region
    $region10: #{mae_finetune_forward.1} parent=1 // pred_check
      _
    $region11: #{mae_finetune_forward.1} parent=1 // pred_check_branch
      %17 = sbr.rel (0) target = $region13
    $region12: #{mae_finetune_forward.1} parent=1 // pred_region
      _
    $region13: #{mae_finetune_forward.1} parent=1 // pred_fallthru
      _
    // Predicated region
    $region14: #{mae_finetune_forward.1} parent=1 // pred_check
      _
    $region15: #{mae_finetune_forward.1} parent=1 // pred_check_branch
      %19 = sbr.rel (0) target = $region17
    $region16: #{mae_finetune_forward.1} parent=1 // pred_region
      _
    $region17: #{mae_finetune_forward.1} parent=1 // pred_fallthru
      _
    // Predicated region
    $region18: #{mae_finetune_forward.1} parent=1 // pred_check
      _
    $region19: #{mae_finetune_forward.1} parent=1 // pred_check_branch
      %21 = sbr.rel (0) target = $region21
    $region20: #{mae_finetune_forward.1} parent=1 // pred_region
      _
    $region21: #{mae_finetune_forward.1} parent=1 // pred_fallthru
      _
    // Predicated region
    $region22: #{mae_finetune_forward.1} parent=1 // pred_check
      _
    $region23: #{mae_finetune_forward.1} parent=1 // pred_check_branch
      %23 = sbr.rel (0) target = $region25
    $region24: #{mae_finetune_forward.1} parent=1 // pred_region
      _
    $region25: #{mae_finetune_forward.1} parent=1 // pred_fallthru
      _
    %v24 = vld [vmem:[%s1] sm:$0xff]
    %v25 = vld [vmem:[%s1 + $0x10] sm:$0xff]
    %v26 = vld [vmem:[%s1 + $0x20] sm:$0xff]
    %v27 = vld [vmem:[%s1 + $0x30] sm:$0xff]
    %v28 = vld [vmem:[%s1 + $0x40] sm:$0xff]
    %v29 = vld [vmem:[%s1 + $0x8] sm:$0xff]
    %v30 = vld [vmem:[%s1 + $0x18] sm:$0xff]
    %v31 = vld [vmem:[%s1 + $0x28] sm:$0xff]
    %v32 = vld [vmem:[%s1 + $0x38] sm:$0xff]
    %v33 = vld [vmem:[%s1 + $0x48] sm:$0xff]
    %v34 = vld [vmem:[%s0] sm:$0xff]
    %v35 = vld [vmem:[%s0 + $0x8] sm:$0xff]
    %v36 = vld [vmem:[%s0 + $0x10] sm:$0xff]
    %v37 = vld [vmem:[%s0 + $0x18] sm:$0xff]
    %v38 = vld [vmem:[%s0 + $0x20] sm:$0xff]
    %v39 = vld [vmem:[%s3] sm:$0xff]
    %v40 = vld [vmem:[%s3 + $0x60] sm:$0xff]
    %v41 = vld [vmem:[%s3 + $0xc0] sm:$0xff]
    %v42 = vld [vmem:[%s3 + $0x120] sm:$0xff]
    %v43 = vld [vmem:[%s3 + $0x180] sm:$0xff]
    %v44 = vld [vmem:[%s3 + $0x1e0] sm:$0xff]
    %v45 = vld [vmem:[%s3 + $0x240] sm:$0xff]
    %v46 = vld [vmem:[%s3 + $0x2a0] sm:$0xff]
    %vm47 = vcmask 523264
    %v49 = vsel %vm47, %v34, 0
    %v52 = vsel %vm47, %v35, 0
    %v55 = vsel %vm47, %v36, 0
    %v58 = vsel %vm47, %v37, 0
    %v61 = vsel %vm47, %v38, 0
    %63 = vmatprep.subr.mxu0 0.0
    %64 = vmatpush1.msra.mxu0 %v39
    %65 = vmatprep.subr.mxu0 0.0
    %66 = vmatpush1.msra.mxu0 %v40
    %67 = vmatprep.subr.mxu0 0.0
    %68 = vmatpush1.msra.mxu0 %v41
    %69 = vmatprep.subr.mxu0 0.0
    %70 = vmatpush1.msra.mxu0 %v42
    %71 = vmatprep.subr.mxu0 0.0
    %72 = vmatpush1.msra.mxu0 %v43
    %73 = vmatprep.subr.mxu0 0.0
    %74 = vmatpush1.msra.mxu0 %v44
    %75 = vmatprep.subr.mxu0 0.0
    %76 = vmatpush1.msra.mxu0 %v45
    %77 = vmatprep.subr.mxu0 0.0
    %78 = vmatpush1.msra.mxu0 %v46
    %79 = vmatprep.subr.mxu0 0.0
    %80 = vmatpush1.msra.mxu0 0.0
    %81 = vmatprep.subr.mxu0 0.0
    %82 = vmatpush1.msra.mxu0 0.0
    %83 = vmatprep.subr.mxu0 0.0
    %84 = vmatpush1.msra.mxu0 0.0
    %85 = vmatprep.subr.mxu0 0.0
    %86 = vmatpush1.msra.mxu0 0.0
    %87 = vmatprep.subr.mxu0 0.0
    %88 = vmatpush1.msra.mxu0 0.0
    %89 = vmatprep.subr.mxu0 0.0
    %90 = vmatpush1.msra.mxu0 0.0
    %91 = vmatprep.subr.mxu0 0.0
    %92 = vmatpush1.msra.mxu0 0.0
    %93 = vmatprep.subr.mxu0 0.0
    %94 = vmatpush1.msra.mxu0 0.0
    %95 = vmatprep.subr.mxu0 0.0
    %96 = vmatpush1.msra.mxu0 0.0
    %97 = vmatprep.subr.mxu0 0.0
    %98 = vmatpush1.msra.mxu0 0.0
    %99 = vmatprep.subr.mxu0 0.0
    %100 = vmatpush1.msra.mxu0 0.0
    %101 = vmatprep.subr.mxu0 0.0
    %102 = vmatpush1.msra.mxu0 0.0
    %103 = vmatprep.subr.mxu0 0.0
    %104 = vmatpush1.msra.mxu0 0.0
    %105 = vmatprep.subr.mxu0 0.0
    %106 = vmatpush1.msra.mxu0 0.0
    %107 = vmatprep.subr.mxu0 0.0
    %108 = vmatpush1.msra.mxu0 0.0
    %109 = vmatprep.subr.mxu0 0.0
    %110 = vmatpush1.msra.mxu0 0.0
    %111 = vmatprep.subr.mxu0 0.0
    %112 = vmatpush1.msra.mxu0 0.0
    %113 = vmatprep.subr.mxu0 0.0
    %114 = vmatpush1.msra.mxu0 0.0
    %115 = vmatprep.subr.mxu0 0.0
    %116 = vmatpush1.msra.mxu0 0.0
    %117 = vmatprep.subr.mxu0 0.0
    %118 = vmatpush1.msra.mxu0 0.0
    %119 = vmatprep.subr.mxu0 0.0
    %120 = vmatpush1.msra.mxu0 0.0
    %121 = vmatprep.subr.mxu0 0.0
    %122 = vmatpush1.msra.mxu0 0.0
    %123 = vmatprep.subr.mxu0 0.0
    %124 = vmatpush1.msra.mxu0 0.0
    %125 = vmatprep.subr.mxu0 0.0
    %126 = vmatpush1.msra.mxu0 0.0
    %127 = vmatprep.mubr.f32.mxu0 0.0
    %128 = vmatmul.mubr.f32.gmra.mrb[0].mxu0 %v49
    %v129 = vpop.f32.mrb[0].mxu0
    %v130 = vadd.f32 %v24, %v129
    %v131 = vpop.f32.mrb[0].mxu0
    %132 = vmatprep.mubr.f32.mxu0 0.0
    %133 = vmatmul.mubr.f32.gmra.mrb[0].mxu0 %v52
    %v134 = vpop.f32.mrb[0].mxu0
    %v135 = vadd.f32 %v25, %v134
    %v136 = vpop.f32.mrb[0].mxu0
    %137 = vmatprep.mubr.f32.mxu0 0.0
    %138 = vmatmul.mubr.f32.gmra.mrb[0].mxu0 %v55
    %v139 = vpop.f32.mrb[0].mxu0
    %v140 = vadd.f32 %v26, %v139
    %v141 = vpop.f32.mrb[0].mxu0
    %142 = vmatprep.mubr.f32.mxu0 0.0
    %143 = vmatmul.mubr.f32.gmra.mrb[0].mxu0 %v58
    %v144 = vpop.f32.mrb[0].mxu0
    %v145 = vadd.f32 %v27, %v144
    %v146 = vpop.f32.mrb[0].mxu0
    %147 = vmatprep.mubr.f32.mxu0 0.0
    %148 = vmatmul.mubr.f32.gmra.mrb[0].mxu0 %v61
    %v149 = vpop.f32.mrb[0].mxu0
    %v150 = vadd.f32 %v28, %v149
    %v151 = vpop.f32.mrb[0].mxu0
    %152 = vdwg.mxu0
    %v153 = vlaneseq
    %v154 = vand.u32 %v153, 127
    %vm155 = vcmp.ge.s32.totalorder %v154, 0
    %vm156 = vcmp.lt.s32.totalorder %v154, 16
    %vm157 = vmand %vm155, %vm156
    %v158 = vsel %vm157, 1, 0
    %v159 = vcvt.s32.f32 %v158
    %vm160 = vcmp.ge.s32.totalorder %v154, 16
    %vm161 = vcmp.lt.s32.totalorder %v154, 32
    %vm162 = vmand %vm160, %vm161
    %v163 = vsel %vm162, 1, 0
    %v164 = vcvt.s32.f32 %v163
    %vm165 = vcmp.ge.s32.totalorder %v154, 32
    %vm166 = vcmp.lt.s32.totalorder %v154, 48
    %vm167 = vmand %vm165, %vm166
    %v168 = vsel %vm167, 1, 0
    %v169 = vcvt.s32.f32 %v168
    %vm170 = vcmp.ge.s32.totalorder %v154, 48
    %vm171 = vcmp.lt.s32.totalorder %v154, 64
    %vm172 = vmand %vm170, %vm171
    %v173 = vsel %vm172, 1, 0
    %v174 = vcvt.s32.f32 %v173
    %v175 = vld [vmem:[%s2] ss:$0 sm:$0xff]
    %v176 = vld [vmem:[%s2 + $0x1] ss:$0 sm:$0xff]
    %v177 = vsel %vm47, %v130, 0.0
    %178 = vadd.xlane.f32.xlu0 %v177
    %v179 = vpop.xlane.xlu0 %178
    %v180 = vsel %vm47, %v135, 0.0
    %181 = vadd.xlane.f32.xlu0 %v180
    %v182 = vpop.xlane.xlu0 %181
    %v183 = vsel %vm47, %v140, 0.0
    %184 = vadd.xlane.f32.xlu0 %v183
    %v185 = vpop.xlane.xlu0 %184
    %v186 = vsel %vm47, %v145, 0.0
    %187 = vadd.xlane.f32.xlu0 %v186
    %v188 = vpop.xlane.xlu0 %187
    %v189 = vsel %vm47, %v150, 0.0
    %190 = vadd.xlane.f32.xlu0 %v189
    %v191 = vpop.xlane.xlu0 %190
    %v192 = vrcp.pop 64.0
    %v193 = vmul.f32 %v179, %v192
    %v194 = vmul.f32 %v182, %v192
    %v195 = vmul.f32 %v185, %v192
    %v196 = vmul.f32 %v188, %v192
    %v197 = vmul.f32 %v191, %v192
    %v198 = vsub.f32 %v130, %v193
    %v199 = vsub.f32 %v135, %v194
    %v200 = vsub.f32 %v140, %v195
    %v201 = vsub.f32 %v145, %v196
    %v202 = vsub.f32 %v150, %v197
    %v203 = vmul.f32 %v198, %v198
    %v204 = vmul.f32 %v199, %v199
    %v205 = vmul.f32 %v200, %v200
    %v206 = vmul.f32 %v201, %v201
    %v207 = vmul.f32 %v202, %v202
    %v208 = vsel %vm47, %v203, 0.0
    %209 = vadd.xlane.f32.xlu0 %v208
    %v210 = vpop.xlane.xlu0 %209
    %v211 = vsel %vm47, %v204, 0.0
    %212 = vadd.xlane.f32.xlu0 %v211
    %v213 = vpop.xlane.xlu0 %212
    %v214 = vsel %vm47, %v205, 0.0
    %215 = vadd.xlane.f32.xlu0 %v214
    %v216 = vpop.xlane.xlu0 %215
    %v217 = vsel %vm47, %v206, 0.0
    %218 = vadd.xlane.f32.xlu0 %v217
    %v219 = vpop.xlane.xlu0 %218
    %v220 = vsel %vm47, %v207, 0.0
    %221 = vadd.xlane.f32.xlu0 %v220
    %v222 = vpop.xlane.xlu0 %221
    %v223 = vmul.f32 %v210, %v192
    %v224 = vmul.f32 %v213, %v192
    %v225 = vmul.f32 %v216, %v192
    %v226 = vmul.f32 %v219, %v192
    %v227 = vmul.f32 %v222, %v192
    %v228 = vadd.f32 %v223, 1e-05
    %v229 = vadd.f32 %v224, 1e-05
    %v230 = vadd.f32 %v225, 1e-05
    %v231 = vadd.f32 %v226, 1e-05
    %v232 = vadd.f32 %v227, 1e-05
    %v233 = vrsqrt.pop %v228
    %v234 = vrsqrt.pop %v229
    %v235 = vrsqrt.pop %v230
    %v236 = vrsqrt.pop %v231
    %v237 = vrsqrt.pop %v232
    %v238 = vmul.f32 %v198, %v233
    %v239 = vmul.f32 %v199, %v234
    %v240 = vmul.f32 %v200, %v235
    %v241 = vmul.f32 %v201, %v236
    %v242 = vmul.f32 %v202, %v237
    %v243 = vmul.f32 %v238, %v175
    %v244 = vmul.f32 %v239, %v175
    %v245 = vmul.f32 %v240, %v175
    %v246 = vmul.f32 %v241, %v175
    %v247 = vmul.f32 %v242, %v175
    %v248 = vadd.f32 %v243, %v176
    %v249 = vadd.f32 %v244, %v176
    %v250 = vadd.f32 %v245, %v176
    %v251 = vadd.f32 %v246, %v176
    %v252 = vadd.f32 %v247, %v176
    %v253 = vld [vmem:[%s3 + $0x8] sm:$0xff]
    %v254 = vld [vmem:[%s3 + $0x10] sm:$0xff]
    %v255 = vld [vmem:[%s3 + $0x68] sm:$0xff]
    %v256 = vld [vmem:[%s3 + $0x70] sm:$0xff]
    %v257 = vld [vmem:[%s3 + $0xc8] sm:$0xff]
    %v258 = vld [vmem:[%s3 + $0xd0] sm:$0xff]
    %v259 = vld [vmem:[%s3 + $0x128] sm:$0xff]
    %v260 = vld [vmem:[%s3 + $0x130] sm:$0xff]
    %v261 = vld [vmem:[%s3 + $0x188] sm:$0xff]
    %v262 = vld [vmem:[%s3 + $0x190] sm:$0xff]
    %v263 = vld [vmem:[%s3 + $0x1e8] sm:$0xff]
    %v264 = vld [vmem:[%s3 + $0x1f0] sm:$0xff]
    %v265 = vld [vmem:[%s3 + $0x248] sm:$0xff]
    %v266 = vld [vmem:[%s3 + $0x250] sm:$0xff]
    %v267 = vld [vmem:[%s3 + $0x2a8] sm:$0xff]
    %v268 = vld [vmem:[%s3 + $0x2b0] sm:$0xff]
    %s269 = scalar_lea.vmem %s2, 2
    %v270 = vld [vmem:[%s269] ss:$8 sm:$0x3]
    %v272 = vlaneseq
    %v273 = vshrl.u32 %v272, 7
    %v274 = vsub.s32 0, %v273
    %v275 = vrot.slane %v270, %v274
    %v276 = vlaneseq
    %v277 = vshrl.u32 %v276, 7
    %v278 = vsub.s32 1, %v277
    %v279 = vrot.slane %v270, %v278
    %v283 = vsel %vm47, %v248, 0
    %v286 = vsel %vm47, %v249, 0
    %v289 = vsel %vm47, %v250, 0
    %v292 = vsel %vm47, %v251, 0
    %v295 = vsel %vm47, %v252, 0
    %297 = vmatprep.subr.mxu0 %v254
    %298 = vmatpush1.msra.mxu0 %v253
    %299 = vmatprep.subr.mxu0 %v256
    %300 = vmatpush1.msra.mxu0 %v255
    %301 = vmatprep.subr.mxu0 %v258
    %302 = vmatpush1.msra.mxu0 %v257
    %303 = vmatprep.subr.mxu0 %v260
    %304 = vmatpush1.msra.mxu0 %v259
    %305 = vmatprep.subr.mxu0 %v262
    %306 = vmatpush1.msra.mxu0 %v261
    %307 = vmatprep.subr.mxu0 %v264
    %308 = vmatpush1.msra.mxu0 %v263
    %309 = vmatprep.subr.mxu0 %v266
    %310 = vmatpush1.msra.mxu0 %v265
    %311 = vmatprep.subr.mxu0 %v268
    %312 = vmatpush1.msra.mxu0 %v267
    %313 = vmatprep.subr.mxu0 0.0
    %314 = vmatpush1.msra.mxu0 0.0
    %315 = vmatprep.subr.mxu0 0.0
    %316 = vmatpush1.msra.mxu0 0.0
    %317 = vmatprep.subr.mxu0 0.0
    %318 = vmatpush1.msra.mxu0 0.0
    %319 = vmatprep.subr.mxu0 0.0
    %320 = vmatpush1.msra.mxu0 0.0
    %321 = vmatprep.subr.mxu0 0.0
    %322 = vmatpush1.msra.mxu0 0.0
    %323 = vmatprep.subr.mxu0 0.0
    %324 = vmatpush1.msra.mxu0 0.0
    %325 = vmatprep.subr.mxu0 0.0
    %326 = vmatpush1.msra.mxu0 0.0
    %327 = vmatprep.subr.mxu0 0.0
    %328 = vmatpush1.msra.mxu0 0.0
    %329 = vmatprep.subr.mxu0 0.0
    %330 = vmatpush1.msra.mxu0 0.0
    %331 = vmatprep.subr.mxu0 0.0
    %332 = vmatpush1.msra.mxu0 0.0
    %333 = vmatprep.subr.mxu0 0.0
    %334 = vmatpush1.msra.mxu0 0.0
    %335 = vmatprep.subr.mxu0 0.0
    %336 = vmatpush1.msra.mxu0 0.0
    %337 = vmatprep.subr.mxu0 0.0
    %338 = vmatpush1.msra.mxu0 0.0
    %339 = vmatprep.subr.mxu0 0.0
    %340 = vmatpush1.msra.mxu0 0.0
    %341 = vmatprep.subr.mxu0 0.0
    %342 = vmatpush1.msra.mxu0 0.0
    %343 = vmatprep.subr.mxu0 0.0
    %344 = vmatpush1.msra.mxu0 0.0
    %345 = vmatprep.subr.mxu0 0.0
    %346 = vmatpush1.msra.mxu0 0.0
    %347 = vmatprep.subr.mxu0 0.0
    %348 = vmatpush1.msra.mxu0 0.0
    %349 = vmatprep.subr.mxu0 0.0
    %350 = vmatpush1.msra.mxu0 0.0
    %351 = vmatprep.subr.mxu0 0.0
    %352 = vmatpush1.msra.mxu0 0.0
    %353 = vmatprep.subr.mxu0 0.0
    %354 = vmatpush1.msra.mxu0 0.0
    %355 = vmatprep.subr.mxu0 0.0
    %356 = vmatpush1.msra.mxu0 0.0
    %357 = vmatprep.subr.mxu0 0.0
    %358 = vmatpush1.msra.mxu0 0.0
    %359 = vmatprep.subr.mxu0 0.0
    %360 = vmatpush1.msra.mxu0 0.0
    %361 = vmatprep.mubr.f32.mxu0 0.0
    %362 = vmatmul.mubr.f32.gmra.mrb[0].mxu0 %v283
    %v363 = vpop.f32.mrb[0].mxu0
    %v364 = vadd.f32 %v275, %v363
    %v365 = vpop.f32.mrb[0].mxu0
    %v366 = vadd.f32 %v279, %v365
    %367 = vmatprep.mubr.f32.mxu0 0.0
    %368 = vmatmul.mubr.f32.gmra.mrb[0].mxu0 %v286
    %v369 = vpop.f32.mrb[0].mxu0
    %v370 = vadd.f32 %v275, %v369
    %v371 = vpop.f32.mrb[0].mxu0
    %v372 = vadd.f32 %v279, %v371
    %373 = vmatprep.mubr.f32.mxu0 0.0
    %374 = vmatmul.mubr.f32.gmra.mrb[0].mxu0 %v289
    %v375 = vpop.f32.mrb[0].mxu0
    %v376 = vadd.f32 %v275, %v375
    %v377 = vpop.f32.mrb[0].mxu0
    %v378 = vadd.f32 %v279, %v377
    %379 = vmatprep.mubr.f32.mxu0 0.0
    %380 = vmatmul.mubr.f32.gmra.mrb[0].mxu0 %v292
    %v381 = vpop.f32.mrb[0].mxu0
    %v382 = vadd.f32 %v275, %v381
    %v383 = vpop.f32.mrb[0].mxu0
    %v384 = vadd.f32 %v279, %v383
    %385 = vmatprep.mubr.f32.mxu0 0.0
    %386 = vmatmul.mubr.f32.gmra.mrb[0].mxu0 %v295
    %v387 = vpop.f32.mrb[0].mxu0
    %v388 = vadd.f32 %v275, %v387
    %v389 = vpop.f32.mrb[0].mxu0
    %v390 = vadd.f32 %v279, %v389
    %391 = vdwg.mxu0
    %v392 = vmul.f32 %v364, %v159
    %v393 = vmul.f32 %v370, %v159
    %v394 = vmul.f32 %v376, %v159
    %v395 = vmul.f32 %v382, %v159
    %v396 = vmul.f32 %v388, %v159
    %v397 = vmul.f32 %v364, %v164
    %v398 = vmul.f32 %v370, %v164
    %v399 = vmul.f32 %v376, %v164
    %v400 = vmul.f32 %v382, %v164
    %v401 = vmul.f32 %v388, %v164
    %v402 = vmul.f32 %v364, %v169
    %v403 = vmul.f32 %v370, %v169
    %v404 = vmul.f32 %v376, %v169
    %v405 = vmul.f32 %v382, %v169
    %v406 = vmul.f32 %v388, %v169
    %v407 = vmul.f32 %v364, %v174
    %v408 = vmul.f32 %v370, %v174
    %v409 = vmul.f32 %v376, %v174
    %v410 = vmul.f32 %v382, %v174
    %v411 = vmul.f32 %v388, %v174
    %417 = vrot.lane.b32.xlu0 %v364, 64
    %v418 = vpop.permute.xlu0 %417
    %419 = vrot.lane.b32.xlu0 %v370, 64
    %v420 = vpop.permute.xlu0 %419
    %421 = vrot.lane.b32.xlu0 %v376, 64
    %v422 = vpop.permute.xlu0 %421
    %423 = vrot.lane.b32.xlu0 %v382, 64
    %v424 = vpop.permute.xlu0 %423
    %425 = vrot.lane.b32.xlu0 %v388, 64
    %v426 = vpop.permute.xlu0 %425
    %v428 = vsel %vm47, %v392, 0
    %v431 = vsel %vm47, %v393, 0
    %v434 = vsel %vm47, %v394, 0
    %v437 = vsel %vm47, %v395, 0
    %v440 = vsel %vm47, %v396, 0
    %v443 = vsel %vm47, %v397, 0
    %v446 = vsel %vm47, %v398, 0
    %v449 = vsel %vm47, %v399, 0
    %v452 = vsel %vm47, %v400, 0
    %v455 = vsel %vm47, %v401, 0
    %v458 = vsel %vm47, %v402, 0
    %v461 = vsel %vm47, %v403, 0
    %v464 = vsel %vm47, %v404, 0
    %v467 = vsel %vm47, %v405, 0
    %v470 = vsel %vm47, %v406, 0
    %v473 = vsel %vm47, %v407, 0
    %v476 = vsel %vm47, %v408, 0
    %v479 = vsel %vm47, %v409, 0
    %v482 = vsel %vm47, %v410, 0
    %v485 = vsel %vm47, %v411, 0
    %v487 = vsel %vm47, %v418, 0
    %v489 = vsel %vm47, %v420, 0
    %v491 = vsel %vm47, %v422, 0
    %v493 = vsel %vm47, %v424, 0
    %v495 = vsel %vm47, %v426, 0
    %497 = vmatprep.subr.mxu0 0.0
    %498 = vmatpush1.xpose.msra.mxu0 %v487
    %499 = vmatprep.subr.mxu0 0.0
    %500 = vmatpush1.xpose.msra.mxu0 %v489
    %501 = vmatprep.subr.mxu0 0.0
    %502 = vmatpush1.xpose.msra.mxu0 %v491
    %503 = vmatprep.subr.mxu0 0.0
    %504 = vmatpush1.xpose.msra.mxu0 %v493
    %505 = vmatprep.subr.mxu0 0.0
    %506 = vmatpush1.xpose.msra.mxu0 %v495
    %507 = vmatprep.subr.mxu0 0.0
    %508 = vmatpush1.xpose.msra.mxu0 0.0
    %509 = vmatprep.subr.mxu0 0.0
    %510 = vmatpush1.xpose.msra.mxu0 0.0
    %511 = vmatprep.subr.mxu0 0.0
    %512 = vmatpush1.xpose.msra.mxu0 0.0
    %513 = vmatprep.subr.mxu0 0.0
    %514 = vmatpush1.xpose.msra.mxu0 0.0
    %515 = vmatprep.subr.mxu0 0.0
    %516 = vmatpush1.xpose.msra.mxu0 0.0
    %517 = vmatprep.subr.mxu0 0.0
    %518 = vmatpush1.xpose.msra.mxu0 0.0
    %519 = vmatprep.subr.mxu0 0.0
    %520 = vmatpush1.xpose.msra.mxu0 0.0
    %521 = vmatprep.subr.mxu0 0.0
    %522 = vmatpush1.xpose.msra.mxu0 0.0
    %523 = vmatprep.subr.mxu0 0.0
    %524 = vmatpush1.xpose.msra.mxu0 0.0
    %525 = vmatprep.subr.mxu0 0.0
    %526 = vmatpush1.xpose.msra.mxu0 0.0
    %527 = vmatprep.subr.mxu0 0.0
    %528 = vmatpush1.xpose.msra.mxu0 0.0
    %529 = vmatprep.subr.mxu0 0.0
    %530 = vmatpush1.xpose.msra.mxu0 0.0
    %531 = vmatprep.subr.mxu0 0.0
    %532 = vmatpush1.xpose.msra.mxu0 0.0
    %533 = vmatprep.subr.mxu0 0.0
    %534 = vmatpush1.xpose.msra.mxu0 0.0
    %535 = vmatprep.subr.mxu0 0.0
    %536 = vmatpush1.xpose.msra.mxu0 0.0
    %537 = vmatprep.subr.mxu0 0.0
    %538 = vmatpush1.xpose.msra.mxu0 0.0
    %539 = vmatprep.subr.mxu0 0.0
    %540 = vmatpush1.xpose.msra.mxu0 0.0
    %541 = vmatprep.subr.mxu0 0.0
    %542 = vmatpush1.xpose.msra.mxu0 0.0
    %543 = vmatprep.subr.mxu0 0.0
    %544 = vmatpush1.xpose.msra.mxu0 0.0
    %545 = vmatprep.subr.mxu0 0.0
    %546 = vmatpush1.xpose.msra.mxu0 0.0
    %547 = vmatprep.subr.mxu0 0.0
    %548 = vmatpush1.xpose.msra.mxu0 0.0
    %549 = vmatprep.subr.mxu0 0.0
    %550 = vmatpush1.xpose.msra.mxu0 0.0
    %551 = vmatprep.subr.mxu0 0.0
    %552 = vmatpush1.xpose.msra.mxu0 0.0
    %553 = vmatprep.subr.mxu0 0.0
    %554 = vmatpush1.xpose.msra.mxu0 0.0
    %555 = vmatprep.subr.mxu0 0.0
    %556 = vmatpush1.xpose.msra.mxu0 0.0
    %557 = vmatprep.subr.mxu0 0.0
    %558 = vmatpush1.xpose.msra.mxu0 0.0
    %559 = vmatprep.subr.mxu0 0.0
    %560 = vmatpush1.xpose.msra.mxu0 0.0
    %561 = vmatprep.mubr.f32.mxu0 0.0
    %562 = vmatmul.mubr.f32.gmra.mrb[0].mxu0 %v428
    %v563 = vpop.f32.mrb[0].mxu0
    %v564 = vadd.f32 0.0, %v563
    %v565 = vpop.f32.mrb[0].mxu0
    %566 = vmatprep.mubr.f32.mxu0 0.0
    %567 = vmatmul.mubr.f32.gmra.mrb[0].mxu0 %v431
    %v568 = vpop.f32.mrb[0].mxu0
    %v569 = vadd.f32 0.0, %v568
    %v570 = vpop.f32.mrb[0].mxu0
    %571 = vmatprep.mubr.f32.mxu0 0.0
    %572 = vmatmul.mubr.f32.gmra.mrb[0].mxu0 %v434
    %v573 = vpop.f32.mrb[0].mxu0
    %v574 = vadd.f32 0.0, %v573
    %v575 = vpop.f32.mrb[0].mxu0
    %576 = vmatprep.mubr.f32.mxu0 0.0
    %577 = vmatmul.mubr.f32.gmra.mrb[0].mxu0 %v437
    %v578 = vpop.f32.mrb[0].mxu0
    %v579 = vadd.f32 0.0, %v578
    %v580 = vpop.f32.mrb[0].mxu0
    %581 = vmatprep.mubr.f32.mxu0 0.0
    %582 = vmatmul.mubr.f32.gmra.mrb[0].mxu0 %v440
    %v583 = vpop.f32.mrb[0].mxu0
    %v584 = vadd.f32 0.0, %v583
    %v585 = vpop.f32.mrb[0].mxu0
    %586 = vmatprep.mubr.f32.mxu0 0.0
    %587 = vmatmul.mubr.f32.gmra.mrb[0].mxu0 %v443
    %v588 = vpop.f32.mrb[0].mxu0
    %v589 = vadd.f32 0.0, %v588
    %v590 = vpop.f32.mrb[0].mxu0
    %591 = vmatprep.mubr.f32.mxu0 0.0
    %592 = vmatmul.mubr.f32.gmra.mrb[0].mxu0 %v446
    %v593 = vpop.f32.mrb[0].mxu0
    %v594 = vadd.f32 0.0, %v593
    %v595 = vpop.f32.mrb[0].mxu0
    %596 = vmatprep.mubr.f32.mxu0 0.0
    %597 = vmatmul.mubr.f32.gmra.mrb[0].mxu0 %v449
    %v598 = vpop.f32.mrb[0].mxu0
    %v599 = vadd.f32 0.0, %v598
    %v600 = vpop.f32.mrb[0].mxu0
    %601 = vmatprep.mubr.f32.mxu0 0.0
    %602 = vmatmul.mubr.f32.gmra.mrb[0].mxu0 %v452
    %v603 = vpop.f32.mrb[0].mxu0
    %v604 = vadd.f32 0.0, %v603
    %v605 = vpop.f32.mrb[0].mxu0
    %606 = vmatprep.mubr.f32.mxu0 0.0
    %607 = vmatmul.mubr.f32.gmra.mrb[0].mxu0 %v455
    %v608 = vpop.f32.mrb[0].mxu0
    %v609 = vadd.f32 0.0, %v608
    %v610 = vpop.f32.mrb[0].mxu0
    %611 = vmatprep.mubr.f32.mxu0 0.0
    %612 = vmatmul.mubr.f32.gmra.mrb[0].mxu0 %v458
    %v613 = vpop.f32.mrb[0].mxu0
    %v614 = vadd.f32 0.0, %v613
    %v615 = vpop.f32.mrb[0].mxu0
    %616 = vmatprep.mubr.f32.mxu0 0.0
    %617 = vmatmul.mubr.f32.gmra.mrb[0].mxu0 %v461
    %v618 = vpop.f32.mrb[0].mxu0
    %v619 = vadd.f32 0.0, %v618
    %v620 = vpop.f32.mrb[0].mxu0
    %621 = vmatprep.mubr.f32.mxu0 0.0
    %622 = vmatmul.mubr.f32.gmra.mrb[0].mxu0 %v464
    %v623 = vpop.f32.mrb[0].mxu0
    %v624 = vadd.f32 0.0, %v623
    %v625 = vpop.f32.mrb[0].mxu0
    %626 = vmatprep.mubr.f32.mxu0 0.0
    %627 = vmatmul.mubr.f32.gmra.mrb[0].mxu0 %v467
    %v628 = vpop.f32.mrb[0].mxu0
    %v629 = vadd.f32 0.0, %v628
    %v630 = vpop.f32.mrb[0].mxu0
    %631 = vmatprep.mubr.f32.mxu0 0.0
    %632 = vmatmul.mubr.f32.gmra.mrb[0].mxu0 %v470
    %v633 = vpop.f32.mrb[0].mxu0
    %v634 = vadd.f32 0.0, %v633
    %v635 = vpop.f32.mrb[0].mxu0
    %636 = vmatprep.mubr.f32.mxu0 0.0
    %637 = vmatmul.mubr.f32.gmra.mrb[0].mxu0 %v473
    %v638 = vpop.f32.mrb[0].mxu0
    %v639 = vadd.f32 0.0, %v638
    %v640 = vpop.f32.mrb[0].mxu0
    %641 = vmatprep.mubr.f32.mxu0 0.0
    %642 = vmatmul.mubr.f32.gmra.mrb[0].mxu0 %v476
    %v643 = vpop.f32.mrb[0].mxu0
    %v644 = vadd.f32 0.0, %v643
    %v645 = vpop.f32.mrb[0].mxu0
    %646 = vmatprep.mubr.f32.mxu0 0.0
    %647 = vmatmul.mubr.f32.gmra.mrb[0].mxu0 %v479
    %v648 = vpop.f32.mrb[0].mxu0
    %v649 = vadd.f32 0.0, %v648
    %v650 = vpop.f32.mrb[0].mxu0
    %651 = vmatprep.mubr.f32.mxu0 0.0
    %652 = vmatmul.mubr.f32.gmra.mrb[0].mxu0 %v482
    %v653 = vpop.f32.mrb[0].mxu0
    %v654 = vadd.f32 0.0, %v653
    %v655 = vpop.f32.mrb[0].mxu0
    %656 = vmatprep.mubr.f32.mxu0 0.0
    %657 = vmatmul.mubr.f32.gmra.mrb[0].mxu0 %v485
    %v658 = vpop.f32.mrb[0].mxu0
    %v659 = vadd.f32 0.0, %v658
    %v660 = vpop.f32.mrb[0].mxu0
    %661 = vdwg.mxu0
    %v662 = vmul.f32 %v564, 0.25
    %v663 = vmul.f32 %v569, 0.25
    %v664 = vmul.f32 %v574, 0.25
    %v665 = vmul.f32 %v579, 0.25
    %v666 = vmul.f32 %v584, 0.25
    %v667 = vmul.f32 %v589, 0.25
    %v668 = vmul.f32 %v594, 0.25
    %v669 = vmul.f32 %v599, 0.25
    %v670 = vmul.f32 %v604, 0.25
    %v671 = vmul.f32 %v609, 0.25
    %v672 = vmul.f32 %v614, 0.25
    %v673 = vmul.f32 %v619, 0.25
    %v674 = vmul.f32 %v624, 0.25
    %v675 = vmul.f32 %v629, 0.25
    %v676 = vmul.f32 %v634, 0.25
    %v677 = vmul.f32 %v639, 0.25
    %v678 = vmul.f32 %v644, 0.25
    %v679 = vmul.f32 %v649, 0.25
    %v680 = vmul.f32 %v654, 0.25
    %v681 = vmul.f32 %v659, 0.25
    %687 = vrot.lane.b32.xlu0 %v24, 64
    %v688 = vpop.permute.xlu0 %687
    %689 = vrot.lane.b32.xlu0 %v25, 64
    %v690 = vpop.permute.xlu0 %689
    %691 = vrot.lane.b32.xlu0 %v26, 64
    %v692 = vpop.permute.xlu0 %691
    %693 = vrot.lane.b32.xlu0 %v27, 64
    %v694 = vpop.permute.xlu0 %693
    %695 = vrot.lane.b32.xlu0 %v28, 64
    %v696 = vpop.permute.xlu0 %695
    %v702 = vadd.f32 %v662, %v688
    %v703 = vadd.f32 %v663, %v690
    %v704 = vadd.f32 %v664, %v692
    %v705 = vadd.f32 %v665, %v694
    %v706 = vadd.f32 %v666, %v696
    %v707 = vadd.f32 %v667, %v688
    %v708 = vadd.f32 %v668, %v690
    %v709 = vadd.f32 %v669, %v692
    %v710 = vadd.f32 %v670, %v694
    %v711 = vadd.f32 %v671, %v696
    %v712 = vadd.f32 %v672, %v688
    %v713 = vadd.f32 %v673, %v690
    %v714 = vadd.f32 %v674, %v692
    %v715 = vadd.f32 %v675, %v694
    %v716 = vadd.f32 %v676, %v696
    %v717 = vadd.f32 %v677, %v688
    %v718 = vadd.f32 %v678, %v690
    %v719 = vadd.f32 %v679, %v692
    %v720 = vadd.f32 %v680, %v694
    %v721 = vadd.f32 %v681, %v696
    %vm722 = vcmask 326656
    %v723 = vsel %vm722, %v702, -inf
    %724 = vmax.xlane.f32.xlu0 %v723
    %v725 = vpop.xlane.xlu0 %724
    %v726 = vsel %vm722, %v703, -inf
    %727 = vmax.xlane.f32.xlu0 %v726
    %v728 = vpop.xlane.xlu0 %727
    %v729 = vsel %vm722, %v704, -inf
    %730 = vmax.xlane.f32.xlu0 %v729
    %v731 = vpop.xlane.xlu0 %730
    %v732 = vsel %vm722, %v705, -inf
    %733 = vmax.xlane.f32.xlu0 %v732
    %v734 = vpop.xlane.xlu0 %733
    %v735 = vsel %vm722, %v706, -inf
    %736 = vmax.xlane.f32.xlu0 %v735
    %v737 = vpop.xlane.xlu0 %736
    %v738 = vsel %vm722, %v707, -inf
    %739 = vmax.xlane.f32.xlu0 %v738
    %v740 = vpop.xlane.xlu0 %739
    %v741 = vsel %vm722, %v708, -inf
    %742 = vmax.xlane.f32.xlu0 %v741
    %v743 = vpop.xlane.xlu0 %742
    %v744 = vsel %vm722, %v709, -inf
    %745 = vmax.xlane.f32.xlu0 %v744
    %v746 = vpop.xlane.xlu0 %745
    %v747 = vsel %vm722, %v710, -inf
    %748 = vmax.xlane.f32.xlu0 %v747
    %v749 = vpop.xlane.xlu0 %748
    %v750 = vsel %vm722, %v711, -inf
    %751 = vmax.xlane.f32.xlu0 %v750
    %v752 = vpop.xlane.xlu0 %751
    %v753 = vsel %vm722, %v712, -inf
    %754 = vmax.xlane.f32.xlu0 %v753
    %v755 = vpop.xlane.xlu0 %754
    %v756 = vsel %vm722, %v713, -inf
    %757 = vmax.xlane.f32.xlu0 %v756
    %v758 = vpop.xlane.xlu0 %757
    %v759 = vsel %vm722, %v714, -inf
    %760 = vmax.xlane.f32.xlu0 %v759
    %v761 = vpop.xlane.xlu0 %760
    %v762 = vsel %vm722, %v715, -inf
    %763 = vmax.xlane.f32.xlu0 %v762
    %v764 = vpop.xlane.xlu0 %763
    %v765 = vsel %vm722, %v716, -inf
    %766 = vmax.xlane.f32.xlu0 %v765
    %v767 = vpop.xlane.xlu0 %766
    %v768 = vsel %vm722, %v717, -inf
    %769 = vmax.xlane.f32.xlu0 %v768
    %v770 = vpop.xlane.xlu0 %769
    %v771 = vsel %vm722, %v718, -inf
    %772 = vmax.xlane.f32.xlu0 %v771
    %v773 = vpop.xlane.xlu0 %772
    %v774 = vsel %vm722, %v719, -inf
    %775 = vmax.xlane.f32.xlu0 %v774
    %v776 = vpop.xlane.xlu0 %775
    %v777 = vsel %vm722, %v720, -inf
    %778 = vmax.xlane.f32.xlu0 %v777
    %v779 = vpop.xlane.xlu0 %778
    %v780 = vsel %vm722, %v721, -inf
    %781 = vmax.xlane.f32.xlu0 %v780
    %v782 = vpop.xlane.xlu0 %781
    %v783 = vsub.f32 %v702, %v725
    %v784 = vsub.f32 %v703, %v728
    %v785 = vsub.f32 %v704, %v731
    %v786 = vsub.f32 %v705, %v734
    %v787 = vsub.f32 %v706, %v737
    %v788 = vsub.f32 %v707, %v740
    %v789 = vsub.f32 %v708, %v743
    %v790 = vsub.f32 %v709, %v746
    %v791 = vsub.f32 %v710, %v749
    %v792 = vsub.f32 %v711, %v752
    %v793 = vsub.f32 %v712, %v755
    %v794 = vsub.f32 %v713, %v758
    %v795 = vsub.f32 %v714, %v761
    %v796 = vsub.f32 %v715, %v764
    %v797 = vsub.f32 %v716, %v767
    %v798 = vsub.f32 %v717, %v770
    %v799 = vsub.f32 %v718, %v773
    %v800 = vsub.f32 %v719, %v776
    %v801 = vsub.f32 %v720, %v779
    %v802 = vsub.f32 %v721, %v782
    %v803 = vmul.f32 %v783, 1.442695
    %v804 = vpow.pop %v803
    %v805 = vmul.f32 %v784, 1.442695
    %v806 = vpow.pop %v805
    %v807 = vmul.f32 %v785, 1.442695
    %v808 = vpow.pop %v807
    %v809 = vmul.f32 %v786, 1.442695
    %v810 = vpow.pop %v809
    %v811 = vmul.f32 %v787, 1.442695
    %v812 = vpow.pop %v811
    %v813 = vmul.f32 %v788, 1.442695
    %v814 = vpow.pop %v813
    %v815 = vmul.f32 %v789, 1.442695
    %v816 = vpow.pop %v815
    %v817 = vmul.f32 %v790, 1.442695
    %v818 = vpow.pop %v817
    %v819 = vmul.f32 %v791, 1.442695
    %v820 = vpow.pop %v819
    %v821 = vmul.f32 %v792, 1.442695
    %v822 = vpow.pop %v821
    %v823 = vmul.f32 %v793, 1.442695
    %v824 = vpow.pop %v823
    %v825 = vmul.f32 %v794, 1.442695
    %v826 = vpow.pop %v825
    %v827 = vmul.f32 %v795, 1.442695
    %v828 = vpow.pop %v827
    %v829 = vmul.f32 %v796, 1.442695
    %v830 = vpow.pop %v829
    %v831 = vmul.f32 %v797, 1.442695
    %v832 = vpow.pop %v831
    %v833 = vmul.f32 %v798, 1.442695
    %v834 = vpow.pop %v833
    %v835 = vmul.f32 %v799, 1.442695
    %v836 = vpow.pop %v835
    %v837 = vmul.f32 %v800, 1.442695
    %v838 = vpow.pop %v837
    %v839 = vmul.f32 %v801, 1.442695
    %v840 = vpow.pop %v839
    %v841 = vmul.f32 %v802, 1.442695
    %v842 = vpow.pop %v841
    %v843 = vsel %vm722, %v804, 0.0
    %844 = vadd.xlane.f32.xlu0 %v843
    %v845 = vpop.xlane.xlu0 %844
    %v846 = vsel %vm722, %v806, 0.0
    %847 = vadd.xlane.f32.xlu0 %v846
    %v848 = vpop.xlane.xlu0 %847
    %v849 = vsel %vm722, %v808, 0.0
    %850 = vadd.xlane.f32.xlu0 %v849
    %v851 = vpop.xlane.xlu0 %850
    %v852 = vsel %vm722, %v810, 0.0
    %853 = vadd.xlane.f32.xlu0 %v852
    %v854 = vpop.xlane.xlu0 %853
    %v855 = vsel %vm722, %v812, 0.0
    %856 = vadd.xlane.f32.xlu0 %v855
    %v857 = vpop.xlane.xlu0 %856
    %v858 = vsel %vm722, %v814, 0.0
    %859 = vadd.xlane.f32.xlu0 %v858
    %v860 = vpop.xlane.xlu0 %859
    %v861 = vsel %vm722, %v816, 0.0
    %862 = vadd.xlane.f32.xlu0 %v861
    %v863 = vpop.xlane.xlu0 %862
    %v864 = vsel %vm722, %v818, 0.0
    %865 = vadd.xlane.f32.xlu0 %v864
    %v866 = vpop.xlane.xlu0 %865
    %v867 = vsel %vm722, %v820, 0.0
    %868 = vadd.xlane.f32.xlu0 %v867
    %v869 = vpop.xlane.xlu0 %868
    %v870 = vsel %vm722, %v822, 0.0
    %871 = vadd.xlane.f32.xlu0 %v870
    %v872 = vpop.xlane.xlu0 %871
    %v873 = vsel %vm722, %v824, 0.0
    %874 = vadd.xlane.f32.xlu0 %v873
    %v875 = vpop.xlane.xlu0 %874
    %v876 = vsel %vm722, %v826, 0.0
    %877 = vadd.xlane.f32.xlu0 %v876
    %v878 = vpop.xlane.xlu0 %877
    %v879 = vsel %vm722, %v828, 0.0
    %880 = vadd.xlane.f32.xlu0 %v879
    %v881 = vpop.xlane.xlu0 %880
    %v882 = vsel %vm722, %v830, 0.0
    %883 = vadd.xlane.f32.xlu0 %v882
    %v884 = vpop.xlane.xlu0 %883
    %v885 = vsel %vm722, %v832, 0.0
    %886 = vadd.xlane.f32.xlu0 %v885
    %v887 = vpop.xlane.xlu0 %886
    %v888 = vsel %vm722, %v834, 0.0
    %889 = vadd.xlane.f32.xlu0 %v888
    %v890 = vpop.xlane.xlu0 %889
    %v891 = vsel %vm722, %v836, 0.0
    %892 = vadd.xlane.f32.xlu0 %v891
    %v893 = vpop.xlane.xlu0 %892
    %v894 = vsel %vm722, %v838, 0.0
    %895 = vadd.xlane.f32.xlu0 %v894
    %v896 = vpop.xlane.xlu0 %895
    %v897 = vsel %vm722, %v840, 0.0
    %898 = vadd.xlane.f32.xlu0 %v897
    %v899 = vpop.xlane.xlu0 %898
    %v900 = vsel %vm722, %v842, 0.0
    %901 = vadd.xlane.f32.xlu0 %v900
    %v902 = vpop.xlane.xlu0 %901
    %v903 = vrcp.pop %v845
    %v904 = vrcp.pop %v848
    %v905 = vrcp.pop %v851
    %v906 = vrcp.pop %v854
    %v907 = vrcp.pop %v857
    %v908 = vrcp.pop %v860
    %v909 = vrcp.pop %v863
    %v910 = vrcp.pop %v866
    %v911 = vrcp.pop %v869
    %v912 = vrcp.pop %v872
    %v913 = vrcp.pop %v875
    %v914 = vrcp.pop %v878
    %v915 = vrcp.pop %v881
    %v916 = vrcp.pop %v884
    %v917 = vrcp.pop %v887
    %v918 = vrcp.pop %v890
    %v919 = vrcp.pop %v893
    %v920 = vrcp.pop %v896
    %v921 = vrcp.pop %v899
    %v922 = vrcp.pop %v902
    %v923 = vmul.f32 %v804, %v903
    %v924 = vmul.f32 %v806, %v904
    %v925 = vmul.f32 %v808, %v905
    %v926 = vmul.f32 %v810, %v906
    %v927 = vmul.f32 %v812, %v907
    %v928 = vmul.f32 %v814, %v908
    %v929 = vmul.f32 %v816, %v909
    %v930 = vmul.f32 %v818, %v910
    %v931 = vmul.f32 %v820, %v911
    %v932 = vmul.f32 %v822, %v912
    %v933 = vmul.f32 %v824, %v913
    %v934 = vmul.f32 %v826, %v914
    %v935 = vmul.f32 %v828, %v915
    %v936 = vmul.f32 %v830, %v916
    %v937 = vmul.f32 %v832, %v917
    %v938 = vmul.f32 %v834, %v918
    %v939 = vmul.f32 %v836, %v919
    %v940 = vmul.f32 %v838, %v920
    %v941 = vmul.f32 %v840, %v921
    %v942 = vmul.f32 %v842, %v922
    %v944 = vsel %vm722, %v923, 0
    %v947 = vsel %vm722, %v924, 0
    %v950 = vsel %vm722, %v925, 0
    %v953 = vsel %vm722, %v926, 0
    %v956 = vsel %vm722, %v927, 0
    %v959 = vsel %vm722, %v928, 0
    %v962 = vsel %vm722, %v929, 0
    %v965 = vsel %vm722, %v930, 0
    %v968 = vsel %vm722, %v931, 0
    %v971 = vsel %vm722, %v932, 0
    %v974 = vsel %vm722, %v933, 0
    %v977 = vsel %vm722, %v934, 0
    %v980 = vsel %vm722, %v935, 0
    %v983 = vsel %vm722, %v936, 0
    %v986 = vsel %vm722, %v937, 0
    %v989 = vsel %vm722, %v938, 0
    %v992 = vsel %vm722, %v939, 0
    %v995 = vsel %vm722, %v940, 0
    %v998 = vsel %vm722, %v941, 0
    %v1001 = vsel %vm722, %v942, 0
    %1003 = vmatprep.subr.mxu0 0.0
    %1004 = vmatpush1.msra.mxu0 %v366
    %1005 = vmatprep.subr.mxu0 0.0
    %1006 = vmatpush1.msra.mxu0 %v372
    %1007 = vmatprep.subr.mxu0 0.0
    %1008 = vmatpush1.msra.mxu0 %v378
    %1009 = vmatprep.subr.mxu0 0.0
    %1010 = vmatpush1.msra.mxu0 %v384
    %1011 = vmatprep.subr.mxu0 0.0
    %1012 = vmatpush1.msra.mxu0 %v390
    %1013 = vmatprep.subr.mxu0 0.0
    %1014 = vmatpush1.msra.mxu0 0.0
    %1015 = vmatprep.subr.mxu0 0.0
    %1016 = vmatpush1.msra.mxu0 0.0
    %1017 = vmatprep.subr.mxu0 0.0
    %1018 = vmatpush1.msra.mxu0 0.0
    %1019 = vmatprep.subr.mxu0 0.0
    %1020 = vmatpush1.msra.mxu0 0.0
    %1021 = vmatprep.subr.mxu0 0.0
    %1022 = vmatpush1.msra.mxu0 0.0
    %1023 = vmatprep.subr.mxu0 0.0
    %1024 = vmatpush1.msra.mxu0 0.0
    %1025 = vmatprep.subr.mxu0 0.0
    %1026 = vmatpush1.msra.mxu0 0.0
    %1027 = vmatprep.subr.mxu0 0.0
    %1028 = vmatpush1.msra.mxu0 0.0
    %1029 = vmatprep.subr.mxu0 0.0
    %1030 = vmatpush1.msra.mxu0 0.0
    %1031 = vmatprep.subr.mxu0 0.0
    %1032 = vmatpush1.msra.mxu0 0.0
    %1033 = vmatprep.subr.mxu0 0.0
    %1034 = vmatpush1.msra.mxu0 0.0
    %1035 = vmatprep.subr.mxu0 0.0
    %1036 = vmatpush1.msra.mxu0 0.0
    %1037 = vmatprep.subr.mxu0 0.0
    %1038 = vmatpush1.msra.mxu0 0.0
    %1039 = vmatprep.subr.mxu0 0.0
    %1040 = vmatpush1.msra.mxu0 0.0
    %1041 = vmatprep.subr.mxu0 0.0
    %1042 = vmatpush1.msra.mxu0 0.0
    %1043 = vmatprep.subr.mxu0 0.0
    %1044 = vmatpush1.msra.mxu0 0.0
    %1045 = vmatprep.subr.mxu0 0.0
    %1046 = vmatpush1.msra.mxu0 0.0
    %1047 = vmatprep.subr.mxu0 0.0
    %1048 = vmatpush1.msra.mxu0 0.0
    %1049 = vmatprep.subr.mxu0 0.0
    %1050 = vmatpush1.msra.mxu0 0.0
    %1051 = vmatprep.subr.mxu0 0.0
    %1052 = vmatpush1.msra.mxu0 0.0
    %1053 = vmatprep.subr.mxu0 0.0
    %1054 = vmatpush1.msra.mxu0 0.0
    %1055 = vmatprep.subr.mxu0 0.0
    %1056 = vmatpush1.msra.mxu0 0.0
    %1057 = vmatprep.subr.mxu0 0.0
    %1058 = vmatpush1.msra.mxu0 0.0
    %1059 = vmatprep.subr.mxu0 0.0
    %1060 = vmatpush1.msra.mxu0 0.0
    %1061 = vmatprep.subr.mxu0 0.0
    %1062 = vmatpush1.msra.mxu0 0.0
    %1063 = vmatprep.subr.mxu0 0.0
    %1064 = vmatpush1.msra.mxu0 0.0
    %1065 = vmatprep.subr.mxu0 0.0
    %1066 = vmatpush1.msra.mxu0 0.0
    %1067 = vmatprep.mubr.f32.mxu0 0.0
    %1068 = vmatmul.mubr.f32.gmra.mrb[0].mxu0 %v944
    %v1069 = vpop.f32.mrb[0].mxu0
    %v1070 = vadd.f32 0.0, %v1069
    %v1071 = vpop.f32.mrb[0].mxu0
    %1072 = vmatprep.mubr.f32.mxu0 0.0
    %1073 = vmatmul.mubr.f32.gmra.mrb[0].mxu0 %v947
    %v1074 = vpop.f32.mrb[0].mxu0
    %v1075 = vadd.f32 0.0, %v1074
    %v1076 = vpop.f32.mrb[0].mxu0
    %1077 = vmatprep.mubr.f32.mxu0 0.0
    %1078 = vmatmul.mubr.f32.gmra.mrb[0].mxu0 %v950
    %v1079 = vpop.f32.mrb[0].mxu0
    %v1080 = vadd.f32 0.0, %v1079
    %v1081 = vpop.f32.mrb[0].mxu0
    %1082 = vmatprep.mubr.f32.mxu0 0.0
    %1083 = vmatmul.mubr.f32.gmra.mrb[0].mxu0 %v953
    %v1084 = vpop.f32.mrb[0].mxu0
    %v1085 = vadd.f32 0.0, %v1084
    %v1086 = vpop.f32.mrb[0].mxu0
    %1087 = vmatprep.mubr.f32.mxu0 0.0
    %1088 = vmatmul.mubr.f32.gmra.mrb[0].mxu0 %v956
    %v1089 = vpop.f32.mrb[0].mxu0
    %v1090 = vadd.f32 0.0, %v1089
    %v1091 = vpop.f32.mrb[0].mxu0
    %1092 = vmatprep.mubr.f32.mxu0 0.0
    %1093 = vmatmul.mubr.f32.gmra.mrb[0].mxu0 %v959
    %v1094 = vpop.f32.mrb[0].mxu0
    %v1095 = vadd.f32 0.0, %v1094
    %v1096 = vpop.f32.mrb[0].mxu0
    %1097 = vmatprep.mubr.f32.mxu0 0.0
    %1098 = vmatmul.mubr.f32.gmra.mrb[0].mxu0 %v962
    %v1099 = vpop.f32.mrb[0].mxu0
    %v1100 = vadd.f32 0.0, %v1099
    %v1101 = vpop.f32.mrb[0].mxu0
    %1102 = vmatprep.mubr.f32.mxu0 0.0
    %1103 = vmatmul.mubr.f32.gmra.mrb[0].mxu0 %v965
    %v1104 = vpop.f32.mrb[0].mxu0
    %v1105 = vadd.f32 0.0, %v1104
    %v1106 = vpop.f32.mrb[0].mxu0
    %1107 = vmatprep.mubr.f32.mxu0 0.0
    %1108 = vmatmul.mubr.f32.gmra.mrb[0].mxu0 %v968
    %v1109 = vpop.f32.mrb[0].mxu0
    %v1110 = vadd.f32 0.0, %v1109
    %v1111 = vpop.f32.mrb[0].mxu0
    %1112 = vmatprep.mubr.f32.mxu0 0.0
    %1113 = vmatmul.mubr.f32.gmra.mrb[0].mxu0 %v971
    %v1114 = vpop.f32.mrb[0].mxu0
    %v1115 = vadd.f32 0.0, %v1114
    %v1116 = vpop.f32.mrb[0].mxu0
    %1117 = vmatprep.mubr.f32.mxu0 0.0
    %1118 = vmatmul.mubr.f32.gmra.mrb[0].mxu0 %v974
    %v1119 = vpop.f32.mrb[0].mxu0
    %v1120 = vadd.f32 0.0, %v1119
    %v1121 = vpop.f32.mrb[0].mxu0
    %1122 = vmatprep.mubr.f32.mxu0 0.0
    %1123 = vmatmul.mubr.f32.gmra.mrb[0].mxu0 %v977
    %v1124 = vpop.f32.mrb[0].mxu0
    %v1125 = vadd.f32 0.0, %v1124
    %v1126 = vpop.f32.mrb[0].mxu0
    %1127 = vmatprep.mubr.f32.mxu0 0.0
    %1128 = vmatmul.mubr.f32.gmra.mrb[0].mxu0 %v980
    %v1129 = vpop.f32.mrb[0].mxu0
    %v1130 = vadd.f32 0.0, %v1129
    %v1131 = vpop.f32.mrb[0].mxu0
    %1132 = vmatprep.mubr.f32.mxu0 0.0
    %1133 = vmatmul.mubr.f32.gmra.mrb[0].mxu0 %v983
    %v1134 = vpop.f32.mrb[0].mxu0
    %v1135 = vadd.f32 0.0, %v1134
    %v1136 = vpop.f32.mrb[0].mxu0
    %1137 = vmatprep.mubr.f32.mxu0 0.0
    %1138 = vmatmul.mubr.f32.gmra.mrb[0].mxu0 %v986
    %v1139 = vpop.f32.mrb[0].mxu0
    %v1140 = vadd.f32 0.0, %v1139
    %v1141 = vpop.f32.mrb[0].mxu0
    %1142 = vmatprep.mubr.f32.mxu0 0.0
    %1143 = vmatmul.mubr.f32.gmra.mrb[0].mxu0 %v989
    %v1144 = vpop.f32.mrb[0].mxu0
    %v1145 = vadd.f32 0.0, %v1144
    %v1146 = vpop.f32.mrb[0].mxu0
    %1147 = vmatprep.mubr.f32.mxu0 0.0
    %1148 = vmatmul.mubr.f32.gmra.mrb[0].mxu0 %v992
    %v1149 = vpop.f32.mrb[0].mxu0
    %v1150 = vadd.f32 0.0, %v1149
    %v1151 = vpop.f32.mrb[0].mxu0
    %1152 = vmatprep.mubr.f32.mxu0 0.0
    %1153 = vmatmul.mubr.f32.gmra.mrb[0].mxu0 %v995
    %v1154 = vpop.f32.mrb[0].mxu0
    %v1155 = vadd.f32 0.0, %v1154
    %v1156 = vpop.f32.mrb[0].mxu0
    %1157 = vmatprep.mubr.f32.mxu0 0.0
    %1158 = vmatmul.mubr.f32.gmra.mrb[0].mxu0 %v998
    %v1159 = vpop.f32.mrb[0].mxu0
    %v1160 = vadd.f32 0.0, %v1159
    %v1161 = vpop.f32.mrb[0].mxu0
    %1162 = vmatprep.mubr.f32.mxu0 0.0
    %1163 = vmatmul.mubr.f32.gmra.mrb[0].mxu0 %v1001
    %v1164 = vpop.f32.mrb[0].mxu0
    %v1165 = vadd.f32 0.0, %v1164
    %v1166 = vpop.f32.mrb[0].mxu0
    %1167 = vdwg.mxu0
    %v1168 = vmul.f32 %v1070, %v159
    %v1169 = vmul.f32 %v1075, %v159
    %v1170 = vmul.f32 %v1080, %v159
    %v1171 = vmul.f32 %v1085, %v159
    %v1172 = vmul.f32 %v1090, %v159
    %v1173 = vadd.f32 %v1168, 0.0
    %v1174 = vadd.f32 %v1169, 0.0
    %v1175 = vadd.f32 %v1170, 0.0
    %v1176 = vadd.f32 %v1171, 0.0
    %v1177 = vadd.f32 %v1172, 0.0
    %v1178 = vmul.f32 %v1095, %v164
    %v1179 = vmul.f32 %v1100, %v164
    %v1180 = vmul.f32 %v1105, %v164
    %v1181 = vmul.f32 %v1110, %v164
    %v1182 = vmul.f32 %v1115, %v164
    %v1183 = vadd.f32 %v1173, %v1178
    %v1184 = vadd.f32 %v1174, %v1179
    %v1185 = vadd.f32 %v1175, %v1180
    %v1186 = vadd.f32 %v1176, %v1181
    %v1187 = vadd.f32 %v1177, %v1182
    %v1188 = vmul.f32 %v1120, %v169
    %v1189 = vmul.f32 %v1125, %v169
    %v1190 = vmul.f32 %v1130, %v169
    %v1191 = vmul.f32 %v1135, %v169
    %v1192 = vmul.f32 %v1140, %v169
    %v1193 = vadd.f32 %v1183, %v1188
    %v1194 = vadd.f32 %v1184, %v1189
    %v1195 = vadd.f32 %v1185, %v1190
    %v1196 = vadd.f32 %v1186, %v1191
    %v1197 = vadd.f32 %v1187, %v1192
    %v1198 = vmul.f32 %v1145, %v174
    %v1199 = vmul.f32 %v1150, %v174
    %v1200 = vmul.f32 %v1155, %v174
    %v1201 = vmul.f32 %v1160, %v174
    %v1202 = vmul.f32 %v1165, %v174
    %v1203 = vadd.f32 %v1193, %v1198
    %v1204 = vadd.f32 %v1194, %v1199
    %v1205 = vadd.f32 %v1195, %v1200
    %v1206 = vadd.f32 %v1196, %v1201
    %v1207 = vadd.f32 %v1197, %v1202
    %v1208 = vld [vmem:[%s3 + $0x28] sm:$0xff]
    %v1209 = vld [vmem:[%s3 + $0x88] sm:$0xff]
    %v1210 = vld [vmem:[%s3 + $0xe8] sm:$0xff]
    %v1211 = vld [vmem:[%s3 + $0x148] sm:$0xff]
    %v1212 = vld [vmem:[%s3 + $0x1a8] sm:$0xff]
    %v1213 = vld [vmem:[%s3 + $0x208] sm:$0xff]
    %v1214 = vld [vmem:[%s3 + $0x268] sm:$0xff]
    %v1215 = vld [vmem:[%s3 + $0x2c8] sm:$0xff]
    %v1217 = vsel %vm47, %v1203, 0
    %v1220 = vsel %vm47, %v1204, 0
    %v1223 = vsel %vm47, %v1205, 0
    %v1226 = vsel %vm47, %v1206, 0
    %v1229 = vsel %vm47, %v1207, 0
    %1231 = vmatprep.subr.mxu0 0.0
    %1232 = vmatpush1.msra.mxu0 %v1208
    %1233 = vmatprep.subr.mxu0 0.0
    %1234 = vmatpush1.msra.mxu0 %v1209
    %1235 = vmatprep.subr.mxu0 0.0
    %1236 = vmatpush1.msra.mxu0 %v1210
    %1237 = vmatprep.subr.mxu0 0.0
    %1238 = vmatpush1.msra.mxu0 %v1211
    %1239 = vmatprep.subr.mxu0 0.0
    %1240 = vmatpush1.msra.mxu0 %v1212
    %1241 = vmatprep.subr.mxu0 0.0
    %1242 = vmatpush1.msra.mxu0 %v1213
    %1243 = vmatprep.subr.mxu0 0.0
    %1244 = vmatpush1.msra.mxu0 %v1214
    %1245 = vmatprep.subr.mxu0 0.0
    %1246 = vmatpush1.msra.mxu0 %v1215
    %1247 = vmatprep.subr.mxu0 0.0
    %1248 = vmatpush1.msra.mxu0 0.0
    %1249 = vmatprep.subr.mxu0 0.0
    %1250 = vmatpush1.msra.mxu0 0.0
    %1251 = vmatprep.subr.mxu0 0.0
    %1252 = vmatpush1.msra.mxu0 0.0
    %1253 = vmatprep.subr.mxu0 0.0
    %1254 = vmatpush1.msra.mxu0 0.0
    %1255 = vmatprep.subr.mxu0 0.0
    %1256 = vmatpush1.msra.mxu0 0.0
    %1257 = vmatprep.subr.mxu0 0.0
    %1258 = vmatpush1.msra.mxu0 0.0
    %1259 = vmatprep.subr.mxu0 0.0
    %1260 = vmatpush1.msra.mxu0 0.0
    %1261 = vmatprep.subr.mxu0 0.0
    %1262 = vmatpush1.msra.mxu0 0.0
    %1263 = vmatprep.subr.mxu0 0.0
    %1264 = vmatpush1.msra.mxu0 0.0
    %1265 = vmatprep.subr.mxu0 0.0
    %1266 = vmatpush1.msra.mxu0 0.0
    %1267 = vmatprep.subr.mxu0 0.0
    %1268 = vmatpush1.msra.mxu0 0.0
    %1269 = vmatprep.subr.mxu0 0.0
    %1270 = vmatpush1.msra.mxu0 0.0
    %1271 = vmatprep.subr.mxu0 0.0
    %1272 = vmatpush1.msra.mxu0 0.0
    %1273 = vmatprep.subr.mxu0 0.0
    %1274 = vmatpush1.msra.mxu0 0.0
    %1275 = vmatprep.subr.mxu0 0.0
    %1276 = vmatpush1.msra.mxu0 0.0
    %1277 = vmatprep.subr.mxu0 0.0
    %1278 = vmatpush1.msra.mxu0 0.0
    %1279 = vmatprep.subr.mxu0 0.0
    %1280 = vmatpush1.msra.mxu0 0.0
    %1281 = vmatprep.subr.mxu0 0.0
    %1282 = vmatpush1.msra.mxu0 0.0
    %1283 = vmatprep.subr.mxu0 0.0
    %1284 = vmatpush1.msra.mxu0 0.0
    %1285 = vmatprep.subr.mxu0 0.0
    %1286 = vmatpush1.msra.mxu0 0.0
    %1287 = vmatprep.subr.mxu0 0.0
    %1288 = vmatpush1.msra.mxu0 0.0
    %1289 = vmatprep.subr.mxu0 0.0
    %1290 = vmatpush1.msra.mxu0 0.0
    %1291 = vmatprep.subr.mxu0 0.0
    %1292 = vmatpush1.msra.mxu0 0.0
    %1293 = vmatprep.subr.mxu0 0.0
    %1294 = vmatpush1.msra.mxu0 0.0
    %1295 = vmatprep.mubr.f32.mxu0 0.0
    %1296 = vmatmul.mubr.f32.gmra.mrb[0].mxu0 %v1217
    %v1297 = vpop.f32.mrb[0].mxu0
    %v1298 = vadd.f32 0.0, %v1297
    %v1299 = vpop.f32.mrb[0].mxu0
    %1300 = vmatprep.mubr.f32.mxu0 0.0
    %1301 = vmatmul.mubr.f32.gmra.mrb[0].mxu0 %v1220
    %v1302 = vpop.f32.mrb[0].mxu0
    %v1303 = vadd.f32 0.0, %v1302
    %v1304 = vpop.f32.mrb[0].mxu0
    %1305 = vmatprep.mubr.f32.mxu0 0.0
    %1306 = vmatmul.mubr.f32.gmra.mrb[0].mxu0 %v1223
    %v1307 = vpop.f32.mrb[0].mxu0
    %v1308 = vadd.f32 0.0, %v1307
    %v1309 = vpop.f32.mrb[0].mxu0
    %1310 = vmatprep.mubr.f32.mxu0 0.0
    %1311 = vmatmul.mubr.f32.gmra.mrb[0].mxu0 %v1226
    %v1312 = vpop.f32.mrb[0].mxu0
    %v1313 = vadd.f32 0.0, %v1312
    %v1314 = vpop.f32.mrb[0].mxu0
    %1315 = vmatprep.mubr.f32.mxu0 0.0
    %1316 = vmatmul.mubr.f32.gmra.mrb[0].mxu0 %v1229
    %v1317 = vpop.f32.mrb[0].mxu0
    %v1318 = vadd.f32 0.0, %v1317
    %v1319 = vpop.f32.mrb[0].mxu0
    %1320 = vdwg.mxu0
    %v1321 = vadd.f32 %v130, %v1298
    %v1322 = vadd.f32 %v135, %v1303
    %v1323 = vadd.f32 %v140, %v1308
    %v1324 = vadd.f32 %v145, %v1313
    %v1325 = vadd.f32 %v150, %v1318
    %v1326 = vld [vmem:[%s2 + $0x3] ss:$0 sm:$0xff]
    %v1327 = vadd.f32 %v1321, %v1326
    %v1328 = vadd.f32 %v1322, %v1326
    %v1329 = vadd.f32 %v1323, %v1326
    %v1330 = vadd.f32 %v1324, %v1326
    %v1331 = vadd.f32 %v1325, %v1326
    %v1332 = vld [vmem:[%s2 + $0x4] ss:$0 sm:$0xff]
    %v1333 = vld [vmem:[%s2 + $0x5] ss:$0 sm:$0xff]
    %v1334 = vsel %vm47, %v1327, 0.0
    %1335 = vadd.xlane.f32.xlu0 %v1334
    %v1336 = vpop.xlane.xlu0 %1335
    %v1337 = vsel %vm47, %v1328, 0.0
    %1338 = vadd.xlane.f32.xlu0 %v1337
    %v1339 = vpop.xlane.xlu0 %1338
    %v1340 = vsel %vm47, %v1329, 0.0
    %1341 = vadd.xlane.f32.xlu0 %v1340
    %v1342 = vpop.xlane.xlu0 %1341
    %v1343 = vsel %vm47, %v1330, 0.0
    %1344 = vadd.xlane.f32.xlu0 %v1343
    %v1345 = vpop.xlane.xlu0 %1344
    %v1346 = vsel %vm47, %v1331, 0.0
    %1347 = vadd.xlane.f32.xlu0 %v1346
    %v1348 = vpop.xlane.xlu0 %1347
    %v1349 = vmul.f32 %v1336, %v192
    %v1350 = vmul.f32 %v1339, %v192
    %v1351 = vmul.f32 %v1342, %v192
    %v1352 = vmul.f32 %v1345, %v192
    %v1353 = vmul.f32 %v1348, %v192
    %v1354 = vsub.f32 %v1327, %v1349
    %v1355 = vsub.f32 %v1328, %v1350
    %v1356 = vsub.f32 %v1329, %v1351
    %v1357 = vsub.f32 %v1330, %v1352
    %v1358 = vsub.f32 %v1331, %v1353
    %v1359 = vmul.f32 %v1354, %v1354
    %v1360 = vmul.f32 %v1355, %v1355
    %v1361 = vmul.f32 %v1356, %v1356
    %v1362 = vmul.f32 %v1357, %v1357
    %v1363 = vmul.f32 %v1358, %v1358
    %v1364 = vsel %vm47, %v1359, 0.0
    %1365 = vadd.xlane.f32.xlu0 %v1364
    %v1366 = vpop.xlane.xlu0 %1365
    %v1367 = vsel %vm47, %v1360, 0.0
    %1368 = vadd.xlane.f32.xlu0 %v1367
    %v1369 = vpop.xlane.xlu0 %1368
    %v1370 = vsel %vm47, %v1361, 0.0
    %1371 = vadd.xlane.f32.xlu0 %v1370
    %v1372 = vpop.xlane.xlu0 %1371
    %v1373 = vsel %vm47, %v1362, 0.0
    %1374 = vadd.xlane.f32.xlu0 %v1373
    %v1375 = vpop.xlane.xlu0 %1374
    %v1376 = vsel %vm47, %v1363, 0.0
    %1377 = vadd.xlane.f32.xlu0 %v1376
    %v1378 = vpop.xlane.xlu0 %1377
    %v1379 = vmul.f32 %v1366, %v192
    %v1380 = vmul.f32 %v1369, %v192
    %v1381 = vmul.f32 %v1372, %v192
    %v1382 = vmul.f32 %v1375, %v192
    %v1383 = vmul.f32 %v1378, %v192
    %v1384 = vadd.f32 %v1379, 1e-05
    %v1385 = vadd.f32 %v1380, 1e-05
    %v1386 = vadd.f32 %v1381, 1e-05
    %v1387 = vadd.f32 %v1382, 1e-05
    %v1388 = vadd.f32 %v1383, 1e-05
    %v1389 = vrsqrt.pop %v1384
    %v1390 = vrsqrt.pop %v1385
    %v1391 = vrsqrt.pop %v1386
    %v1392 = vrsqrt.pop %v1387
    %v1393 = vrsqrt.pop %v1388
    %v1394 = vmul.f32 %v1354, %v1389
    %v1395 = vmul.f32 %v1355, %v1390
    %v1396 = vmul.f32 %v1356, %v1391
    %v1397 = vmul.f32 %v1357, %v1392
    %v1398 = vmul.f32 %v1358, %v1393
    %v1399 = vmul.f32 %v1394, %v1332
    %v1400 = vmul.f32 %v1395, %v1332
    %v1401 = vmul.f32 %v1396, %v1332
    %v1402 = vmul.f32 %v1397, %v1332
    %v1403 = vmul.f32 %v1398, %v1332
    %v1404 = vadd.f32 %v1399, %v1333
    %v1405 = vadd.f32 %v1400, %v1333
    %v1406 = vadd.f32 %v1401, %v1333
    %v1407 = vadd.f32 %v1402, %v1333
    %v1408 = vadd.f32 %v1403, %v1333
    %v1409 = vld [vmem:[%s3 + $0x38] sm:$0xff]
    %v1410 = vld [vmem:[%s3 + $0x98] sm:$0xff]
    %v1411 = vld [vmem:[%s3 + $0xf8] sm:$0xff]
    %v1412 = vld [vmem:[%s3 + $0x158] sm:$0xff]
    %v1413 = vld [vmem:[%s3 + $0x1b8] sm:$0xff]
    %v1414 = vld [vmem:[%s3 + $0x218] sm:$0xff]
    %v1415 = vld [vmem:[%s3 + $0x278] sm:$0xff]
    %v1416 = vld [vmem:[%s3 + $0x2d8] sm:$0xff]
    %v1417 = vld [vmem:[%s2 + $0x6] ss:$0 sm:$0xff]
    %v1419 = vsel %vm47, %v1404, 0
    %v1422 = vsel %vm47, %v1405, 0
    %v1425 = vsel %vm47, %v1406, 0
    %v1428 = vsel %vm47, %v1407, 0
    %v1431 = vsel %vm47, %v1408, 0
    %1433 = vmatprep.subr.mxu0 0.0
    %1434 = vmatpush1.msra.mxu0 %v1409
    %1435 = vmatprep.subr.mxu0 0.0
    %1436 = vmatpush1.msra.mxu0 %v1410
    %1437 = vmatprep.subr.mxu0 0.0
    %1438 = vmatpush1.msra.mxu0 %v1411
    %1439 = vmatprep.subr.mxu0 0.0
    %1440 = vmatpush1.msra.mxu0 %v1412
    %1441 = vmatprep.subr.mxu0 0.0
    %1442 = vmatpush1.msra.mxu0 %v1413
    %1443 = vmatprep.subr.mxu0 0.0
    %1444 = vmatpush1.msra.mxu0 %v1414
    %1445 = vmatprep.subr.mxu0 0.0
    %1446 = vmatpush1.msra.mxu0 %v1415
    %1447 = vmatprep.subr.mxu0 0.0
    %1448 = vmatpush1.msra.mxu0 %v1416
    %1449 = vmatprep.subr.mxu0 0.0
    %1450 = vmatpush1.msra.mxu0 0.0
    %1451 = vmatprep.subr.mxu0 0.0
    %1452 = vmatpush1.msra.mxu0 0.0
    %1453 = vmatprep.subr.mxu0 0.0
    %1454 = vmatpush1.msra.mxu0 0.0
    %1455 = vmatprep.subr.mxu0 0.0
    %1456 = vmatpush1.msra.mxu0 0.0
    %1457 = vmatprep.subr.mxu0 0.0
    %1458 = vmatpush1.msra.mxu0 0.0
    %1459 = vmatprep.subr.mxu0 0.0
    %1460 = vmatpush1.msra.mxu0 0.0
    %1461 = vmatprep.subr.mxu0 0.0
    %1462 = vmatpush1.msra.mxu0 0.0
    %1463 = vmatprep.subr.mxu0 0.0
    %1464 = vmatpush1.msra.mxu0 0.0
    %1465 = vmatprep.subr.mxu0 0.0
    %1466 = vmatpush1.msra.mxu0 0.0
    %1467 = vmatprep.subr.mxu0 0.0
    %1468 = vmatpush1.msra.mxu0 0.0
    %1469 = vmatprep.subr.mxu0 0.0
    %1470 = vmatpush1.msra.mxu0 0.0
    %1471 = vmatprep.subr.mxu0 0.0
    %1472 = vmatpush1.msra.mxu0 0.0
    %1473 = vmatprep.subr.mxu0 0.0
    %1474 = vmatpush1.msra.mxu0 0.0
    %1475 = vmatprep.subr.mxu0 0.0
    %1476 = vmatpush1.msra.mxu0 0.0
    %1477 = vmatprep.subr.mxu0 0.0
    %1478 = vmatpush1.msra.mxu0 0.0
    %1479 = vmatprep.subr.mxu0 0.0
    %1480 = vmatpush1.msra.mxu0 0.0
    %1481 = vmatprep.subr.mxu0 0.0
    %1482 = vmatpush1.msra.mxu0 0.0
    %1483 = vmatprep.subr.mxu0 0.0
    %1484 = vmatpush1.msra.mxu0 0.0
    %1485 = vmatprep.subr.mxu0 0.0
    %1486 = vmatpush1.msra.mxu0 0.0
    %1487 = vmatprep.subr.mxu0 0.0
    %1488 = vmatpush1.msra.mxu0 0.0
    %1489 = vmatprep.subr.mxu0 0.0
    %1490 = vmatpush1.msra.mxu0 0.0
    %1491 = vmatprep.subr.mxu0 0.0
    %1492 = vmatpush1.msra.mxu0 0.0
    %1493 = vmatprep.subr.mxu0 0.0
    %1494 = vmatpush1.msra.mxu0 0.0
    %1495 = vmatprep.subr.mxu0 0.0
    %1496 = vmatpush1.msra.mxu0 0.0
    %1497 = vmatprep.mubr.f32.mxu0 0.0
    %1498 = vmatmul.mubr.f32.gmra.mrb[0].mxu0 %v1419
    %v1499 = vpop.f32.mrb[0].mxu0
    %v1500 = vadd.f32 %v1417, %v1499
    %v1501 = vpop.f32.mrb[0].mxu0
    %1502 = vmatprep.mubr.f32.mxu0 0.0
    %1503 = vmatmul.mubr.f32.gmra.mrb[0].mxu0 %v1422
    %v1504 = vpop.f32.mrb[0].mxu0
    %v1505 = vadd.f32 %v1417, %v1504
    %v1506 = vpop.f32.mrb[0].mxu0
    %1507 = vmatprep.mubr.f32.mxu0 0.0
    %1508 = vmatmul.mubr.f32.gmra.mrb[0].mxu0 %v1425
    %v1509 = vpop.f32.mrb[0].mxu0
    %v1510 = vadd.f32 %v1417, %v1509
    %v1511 = vpop.f32.mrb[0].mxu0
    %1512 = vmatprep.mubr.f32.mxu0 0.0
    %1513 = vmatmul.mubr.f32.gmra.mrb[0].mxu0 %v1428
    %v1514 = vpop.f32.mrb[0].mxu0
    %v1515 = vadd.f32 %v1417, %v1514
    %v1516 = vpop.f32.mrb[0].mxu0
    %1517 = vmatprep.mubr.f32.mxu0 0.0
    %1518 = vmatmul.mubr.f32.gmra.mrb[0].mxu0 %v1431
    %v1519 = vpop.f32.mrb[0].mxu0
    %v1520 = vadd.f32 %v1417, %v1519
    %v1521 = vpop.f32.mrb[0].mxu0
    %1522 = vdwg.mxu0
    %v1523 = vmul.f32 %v1500, %v1500
    %v1524 = vmul.f32 %v1505, %v1505
    %v1525 = vmul.f32 %v1510, %v1510
    %v1526 = vmul.f32 %v1515, %v1515
    %v1527 = vmul.f32 %v1520, %v1520
    %v1528 = vmul.f32 %v1500, %v1523
    %v1529 = vmul.f32 %v1505, %v1524
    %v1530 = vmul.f32 %v1510, %v1525
    %v1531 = vmul.f32 %v1515, %v1526
    %v1532 = vmul.f32 %v1520, %v1527
    %v1533 = vmul.f32 %v1528, 0.044715
    %v1534 = vmul.f32 %v1529, 0.044715
    %v1535 = vmul.f32 %v1530, 0.044715
    %v1536 = vmul.f32 %v1531, 0.044715
    %v1537 = vmul.f32 %v1532, 0.044715
    %v1538 = vadd.f32 %v1500, %v1533
    %v1539 = vadd.f32 %v1505, %v1534
    %v1540 = vadd.f32 %v1510, %v1535
    %v1541 = vadd.f32 %v1515, %v1536
    %v1542 = vadd.f32 %v1520, %v1537
    %v1543 = vmul.f32 %v1538, 0.7978846
    %v1544 = vmul.f32 %v1539, 0.7978846
    %v1545 = vmul.f32 %v1540, 0.7978846
    %v1546 = vmul.f32 %v1541, 0.7978846
    %v1547 = vmul.f32 %v1542, 0.7978846
    %v1548 = vtanh.pop %v1543
    %v1549 = vtanh.pop %v1544
    %v1550 = vtanh.pop %v1545
    %v1551 = vtanh.pop %v1546
    %v1552 = vtanh.pop %v1547
    %v1553 = vadd.f32 %v1548, 1.0
    %v1554 = vadd.f32 %v1549, 1.0
    %v1555 = vadd.f32 %v1550, 1.0
    %v1556 = vadd.f32 %v1551, 1.0
    %v1557 = vadd.f32 %v1552, 1.0
    %v1558 = vmul.f32 %v1553, 0.5
    %v1559 = vmul.f32 %v1554, 0.5
    %v1560 = vmul.f32 %v1555, 0.5
    %v1561 = vmul.f32 %v1556, 0.5
    %v1562 = vmul.f32 %v1557, 0.5
    %v1563 = vmul.f32 %v1500, %v1558
    %v1564 = vmul.f32 %v1505, %v1559
    %v1565 = vmul.f32 %v1510, %v1560
    %v1566 = vmul.f32 %v1515, %v1561
    %v1567 = vmul.f32 %v1520, %v1562
    %v1568 = vld [vmem:[%s4] sm:$0xff]
    %v1569 = vld [vmem:[%s4 + $0x8] sm:$0xff]
    %v1570 = vld [vmem:[%s4 + $0x10] sm:$0xff]
    %v1571 = vld [vmem:[%s4 + $0x18] sm:$0xff]
    %v1572 = vld [vmem:[%s4 + $0x20] sm:$0xff]
    %v1573 = vld [vmem:[%s4 + $0x28] sm:$0xff]
    %v1574 = vld [vmem:[%s4 + $0x30] sm:$0xff]
    %v1575 = vld [vmem:[%s4 + $0x38] sm:$0xff]
    %v1576 = vld [vmem:[%s4 + $0x40] sm:$0xff]
    %v1577 = vld [vmem:[%s4 + $0x48] sm:$0xff]
    %v1578 = vld [vmem:[%s4 + $0x50] sm:$0xff]
    %v1579 = vld [vmem:[%s4 + $0x58] sm:$0xff]
    %v1580 = vld [vmem:[%s4 + $0x60] sm:$0xff]
    %v1581 = vld [vmem:[%s4 + $0x68] sm:$0xff]
    %v1582 = vld [vmem:[%s4 + $0x70] sm:$0xff]
    %v1583 = vld [vmem:[%s4 + $0x78] sm:$0xff]
    %1584 = vmatprep.subr.mxu0 0.0
    %1585 = vmatpush1.msra.mxu0 %v1568
    %1586 = vmatprep.subr.mxu0 0.0
    %1587 = vmatpush1.msra.mxu0 %v1569
    %1588 = vmatprep.subr.mxu0 0.0
    %1589 = vmatpush1.msra.mxu0 %v1570
    %1590 = vmatprep.subr.mxu0 0.0
    %1591 = vmatpush1.msra.mxu0 %v1571
    %1592 = vmatprep.subr.mxu0 0.0
    %1593 = vmatpush1.msra.mxu0 %v1572
    %1594 = vmatprep.subr.mxu0 0.0
    %1595 = vmatpush1.msra.mxu0 %v1573
    %1596 = vmatprep.subr.mxu0 0.0
    %1597 = vmatpush1.msra.mxu0 %v1574
    %1598 = vmatprep.subr.mxu0 0.0
    %1599 = vmatpush1.msra.mxu0 %v1575
    %1600 = vmatprep.subr.mxu0 0.0
    %1601 = vmatpush1.msra.mxu0 %v1576
    %1602 = vmatprep.subr.mxu0 0.0
    %1603 = vmatpush1.msra.mxu0 %v1577
    %1604 = vmatprep.subr.mxu0 0.0
    %1605 = vmatpush1.msra.mxu0 %v1578
    %1606 = vmatprep.subr.mxu0 0.0
    %1607 = vmatpush1.msra.mxu0 %v1579
    %1608 = vmatprep.subr.mxu0 0.0
    %1609 = vmatpush1.msra.mxu0 %v1580
    %1610 = vmatprep.subr.mxu0 0.0
    %1611 = vmatpush1.msra.mxu0 %v1581
    %1612 = vmatprep.subr.mxu0 0.0
    %1613 = vmatpush1.msra.mxu0 %v1582
    %1614 = vmatprep.subr.mxu0 0.0
    %1615 = vmatpush1.msra.mxu0 %v1583
    %1616 = vmatprep.subr.mxu0 0.0
    %1617 = vmatpush1.msra.mxu0 0.0
    %1618 = vmatprep.subr.mxu0 0.0
    %1619 = vmatpush1.msra.mxu0 0.0
    %1620 = vmatprep.subr.mxu0 0.0
    %1621 = vmatpush1.msra.mxu0 0.0
    %1622 = vmatprep.subr.mxu0 0.0
    %1623 = vmatpush1.msra.mxu0 0.0
    %1624 = vmatprep.subr.mxu0 0.0
    %1625 = vmatpush1.msra.mxu0 0.0
    %1626 = vmatprep.subr.mxu0 0.0
    %1627 = vmatpush1.msra.mxu0 0.0
    %1628 = vmatprep.subr.mxu0 0.0
    %1629 = vmatpush1.msra.mxu0 0.0
    %1630 = vmatprep.subr.mxu0 0.0
    %1631 = vmatpush1.msra.mxu0 0.0
    %1632 = vmatprep.subr.mxu0 0.0
    %1633 = vmatpush1.msra.mxu0 0.0
    %1634 = vmatprep.subr.mxu0 0.0
    %1635 = vmatpush1.msra.mxu0 0.0
    %1636 = vmatprep.subr.mxu0 0.0
    %1637 = vmatpush1.msra.mxu0 0.0
    %1638 = vmatprep.subr.mxu0 0.0
    %1639 = vmatpush1.msra.mxu0 0.0
    %1640 = vmatprep.subr.mxu0 0.0
    %1641 = vmatpush1.msra.mxu0 0.0
    %1642 = vmatprep.subr.mxu0 0.0
    %1643 = vmatpush1.msra.mxu0 0.0
    %1644 = vmatprep.subr.mxu0 0.0
    %1645 = vmatpush1.msra.mxu0 0.0
    %1646 = vmatprep.subr.mxu0 0.0
    %1647 = vmatpush1.msra.mxu0 0.0
    %1648 = vmatprep.mubr.f32.mxu0 0.0
    %1649 = vmatmul.mubr.f32.gmra.mrb[0].mxu0 %v1563
    %v1650 = vpop.f32.mrb[0].mxu0
    %v1651 = vadd.f32 0.0, %v1650
    %v1652 = vpop.f32.mrb[0].mxu0
    %1653 = vmatprep.mubr.f32.mxu0 0.0
    %1654 = vmatmul.mubr.f32.gmra.mrb[0].mxu0 %v1564
    %v1655 = vpop.f32.mrb[0].mxu0
    %v1656 = vadd.f32 0.0, %v1655
    %v1657 = vpop.f32.mrb[0].mxu0
    %1658 = vmatprep.mubr.f32.mxu0 0.0
    %1659 = vmatmul.mubr.f32.gmra.mrb[0].mxu0 %v1565
    %v1660 = vpop.f32.mrb[0].mxu0
    %v1661 = vadd.f32 0.0, %v1660
    %v1662 = vpop.f32.mrb[0].mxu0
    %1663 = vmatprep.mubr.f32.mxu0 0.0
    %1664 = vmatmul.mubr.f32.gmra.mrb[0].mxu0 %v1566
    %v1665 = vpop.f32.mrb[0].mxu0
    %v1666 = vadd.f32 0.0, %v1665
    %v1667 = vpop.f32.mrb[0].mxu0
    %1668 = vmatprep.mubr.f32.mxu0 0.0
    %1669 = vmatmul.mubr.f32.gmra.mrb[0].mxu0 %v1567
    %v1670 = vpop.f32.mrb[0].mxu0
    %v1671 = vadd.f32 0.0, %v1670
    %v1672 = vpop.f32.mrb[0].mxu0
    %1673 = vdwg.mxu0
    %v1674 = vadd.f32 %v1327, %v1651
    %v1675 = vadd.f32 %v1328, %v1656
    %v1676 = vadd.f32 %v1329, %v1661
    %v1677 = vadd.f32 %v1330, %v1666
    %v1678 = vadd.f32 %v1331, %v1671
    %v1679 = vld [vmem:[%s2 + $0x7] ss:$0 sm:$0xff]
    %v1680 = vadd.f32 %v1674, %v1679
    %v1681 = vadd.f32 %v1675, %v1679
    %v1682 = vadd.f32 %v1676, %v1679
    %v1683 = vadd.f32 %v1677, %v1679
    %v1684 = vadd.f32 %v1678, %v1679
    %v1685 = vld [vmem:[%s2 + $0x18] ss:$0 sm:$0xff]
    %v1686 = vld [vmem:[%s2 + $0x19] ss:$0 sm:$0xff]
    %v1687 = vsel %vm47, %v1680, 0.0
    %1688 = vadd.xlane.f32.xlu0 %v1687
    %v1689 = vpop.xlane.xlu0 %1688
    %v1690 = vsel %vm47, %v1681, 0.0
    %1691 = vadd.xlane.f32.xlu0 %v1690
    %v1692 = vpop.xlane.xlu0 %1691
    %v1693 = vsel %vm47, %v1682, 0.0
    %1694 = vadd.xlane.f32.xlu0 %v1693
    %v1695 = vpop.xlane.xlu0 %1694
    %v1696 = vsel %vm47, %v1683, 0.0
    %1697 = vadd.xlane.f32.xlu0 %v1696
    %v1698 = vpop.xlane.xlu0 %1697
    %v1699 = vsel %vm47, %v1684, 0.0
    %1700 = vadd.xlane.f32.xlu0 %v1699
    %v1701 = vpop.xlane.xlu0 %1700
    %v1702 = vmul.f32 %v1689, %v192
    %v1703 = vmul.f32 %v1692, %v192
    %v1704 = vmul.f32 %v1695, %v192
    %v1705 = vmul.f32 %v1698, %v192
    %v1706 = vmul.f32 %v1701, %v192
    %v1707 = vsub.f32 %v1680, %v1702
    %v1708 = vsub.f32 %v1681, %v1703
    %v1709 = vsub.f32 %v1682, %v1704
    %v1710 = vsub.f32 %v1683, %v1705
    %v1711 = vsub.f32 %v1684, %v1706
    %v1712 = vmul.f32 %v1707, %v1707
    %v1713 = vmul.f32 %v1708, %v1708
    %v1714 = vmul.f32 %v1709, %v1709
    %v1715 = vmul.f32 %v1710, %v1710
    %v1716 = vmul.f32 %v1711, %v1711
    %v1717 = vsel %vm47, %v1712, 0.0
    %1718 = vadd.xlane.f32.xlu0 %v1717
    %v1719 = vpop.xlane.xlu0 %1718
    %v1720 = vsel %vm47, %v1713, 0.0
    %1721 = vadd.xlane.f32.xlu0 %v1720
    %v1722 = vpop.xlane.xlu0 %1721
    %v1723 = vsel %vm47, %v1714, 0.0
    %1724 = vadd.xlane.f32.xlu0 %v1723
    %v1725 = vpop.xlane.xlu0 %1724
    %v1726 = vsel %vm47, %v1715, 0.0
    %1727 = vadd.xlane.f32.xlu0 %v1726
    %v1728 = vpop.xlane.xlu0 %1727
    %v1729 = vsel %vm47, %v1716, 0.0
    %1730 = vadd.xlane.f32.xlu0 %v1729
    %v1731 = vpop.xlane.xlu0 %1730
    %v1732 = vmul.f32 %v1719, %v192
    %v1733 = vmul.f32 %v1722, %v192
    %v1734 = vmul.f32 %v1725, %v192
    %v1735 = vmul.f32 %v1728, %v192
    %v1736 = vmul.f32 %v1731, %v192
    %v1737 = vadd.f32 %v1732, 1e-05
    %v1738 = vadd.f32 %v1733, 1e-05
    %v1739 = vadd.f32 %v1734, 1e-05
    %v1740 = vadd.f32 %v1735, 1e-05
    %v1741 = vadd.f32 %v1736, 1e-05
    %v1742 = vrsqrt.pop %v1737
    %v1743 = vrsqrt.pop %v1738
    %v1744 = vrsqrt.pop %v1739
    %v1745 = vrsqrt.pop %v1740
    %v1746 = vrsqrt.pop %v1741
    %v1747 = vmul.f32 %v1707, %v1742
    %v1748 = vmul.f32 %v1708, %v1743
    %v1749 = vmul.f32 %v1709, %v1744
    %v1750 = vmul.f32 %v1710, %v1745
    %v1751 = vmul.f32 %v1711, %v1746
    %v1752 = vmul.f32 %v1747, %v1685
    %v1753 = vmul.f32 %v1748, %v1685
    %v1754 = vmul.f32 %v1749, %v1685
    %v1755 = vmul.f32 %v1750, %v1685
    %v1756 = vmul.f32 %v1751, %v1685
    %v1757 = vadd.f32 %v1752, %v1686
    %v1758 = vadd.f32 %v1753, %v1686
    %v1759 = vadd.f32 %v1754, %v1686
    %v1760 = vadd.f32 %v1755, %v1686
    %v1761 = vadd.f32 %v1756, %v1686
    %v1762 = vld [vmem:[%s3 + $0x18] sm:$0xff]
    %v1763 = vld [vmem:[%s3 + $0x20] sm:$0xff]
    %v1764 = vld [vmem:[%s3 + $0x78] sm:$0xff]
    %v1765 = vld [vmem:[%s3 + $0x80] sm:$0xff]
    %v1766 = vld [vmem:[%s3 + $0xd8] sm:$0xff]
    %v1767 = vld [vmem:[%s3 + $0xe0] sm:$0xff]
    %v1768 = vld [vmem:[%s3 + $0x138] sm:$0xff]
    %v1769 = vld [vmem:[%s3 + $0x140] sm:$0xff]
    %v1770 = vld [vmem:[%s3 + $0x198] sm:$0xff]
    %v1771 = vld [vmem:[%s3 + $0x1a0] sm:$0xff]
    %v1772 = vld [vmem:[%s3 + $0x1f8] sm:$0xff]
    %v1773 = vld [vmem:[%s3 + $0x200] sm:$0xff]
    %v1774 = vld [vmem:[%s3 + $0x258] sm:$0xff]
    %v1775 = vld [vmem:[%s3 + $0x260] sm:$0xff]
    %v1776 = vld [vmem:[%s3 + $0x2b8] sm:$0xff]
    %v1777 = vld [vmem:[%s3 + $0x2c0] sm:$0xff]
    %s1778 = scalar_lea.vmem %s2, 26
    %v1779 = vld [vmem:[%s1778] ss:$8 sm:$0x3]
    %v1781 = vlaneseq
    %v1782 = vshrl.u32 %v1781, 7
    %v1783 = vsub.s32 0, %v1782
    %v1784 = vrot.slane %v1779, %v1783
    %v1785 = vlaneseq
    %v1786 = vshrl.u32 %v1785, 7
    %v1787 = vsub.s32 1, %v1786
    %v1788 = vrot.slane %v1779, %v1787
    %v1792 = vsel %vm47, %v1757, 0
    %v1795 = vsel %vm47, %v1758, 0
    %v1798 = vsel %vm47, %v1759, 0
    %v1801 = vsel %vm47, %v1760, 0
    %v1804 = vsel %vm47, %v1761, 0
    %1806 = vmatprep.subr.mxu0 %v1763
    %1807 = vmatpush1.msra.mxu0 %v1762
    %1808 = vmatprep.subr.mxu0 %v1765
    %1809 = vmatpush1.msra.mxu0 %v1764
    %1810 = vmatprep.subr.mxu0 %v1767
    %1811 = vmatpush1.msra.mxu0 %v1766
    %1812 = vmatprep.subr.mxu0 %v1769
    %1813 = vmatpush1.msra.mxu0 %v1768
    %1814 = vmatprep.subr.mxu0 %v1771
    %1815 = vmatpush1.msra.mxu0 %v1770
    %1816 = vmatprep.subr.mxu0 %v1773
    %1817 = vmatpush1.msra.mxu0 %v1772
    %1818 = vmatprep.subr.mxu0 %v1775
    %1819 = vmatpush1.msra.mxu0 %v1774
    %1820 = vmatprep.subr.mxu0 %v1777
    %1821 = vmatpush1.msra.mxu0 %v1776
    %1822 = vmatprep.subr.mxu0 0.0
    %1823 = vmatpush1.msra.mxu0 0.0
    %1824 = vmatprep.subr.mxu0 0.0
    %1825 = vmatpush1.msra.mxu0 0.0
    %1826 = vmatprep.subr.mxu0 0.0
    %1827 = vmatpush1.msra.mxu0 0.0
    %1828 = vmatprep.subr.mxu0 0.0
    %1829 = vmatpush1.msra.mxu0 0.0
    %1830 = vmatprep.subr.mxu0 0.0
    %1831 = vmatpush1.msra.mxu0 0.0
    %1832 = vmatprep.subr.mxu0 0.0
    %1833 = vmatpush1.msra.mxu0 0.0
    %1834 = vmatprep.subr.mxu0 0.0
    %1835 = vmatpush1.msra.mxu0 0.0
    %1836 = vmatprep.subr.mxu0 0.0
    %1837 = vmatpush1.msra.mxu0 0.0
    %1838 = vmatprep.subr.mxu0 0.0
    %1839 = vmatpush1.msra.mxu0 0.0
    %1840 = vmatprep.subr.mxu0 0.0
    %1841 = vmatpush1.msra.mxu0 0.0
    %1842 = vmatprep.subr.mxu0 0.0
    %1843 = vmatpush1.msra.mxu0 0.0
    %1844 = vmatprep.subr.mxu0 0.0
    %1845 = vmatpush1.msra.mxu0 0.0
    %1846 = vmatprep.subr.mxu0 0.0
    %1847 = vmatpush1.msra.mxu0 0.0
    %1848 = vmatprep.subr.mxu0 0.0
    %1849 = vmatpush1.msra.mxu0 0.0
    %1850 = vmatprep.subr.mxu0 0.0
    %1851 = vmatpush1.msra.mxu0 0.0
    %1852 = vmatprep.subr.mxu0 0.0
    %1853 = vmatpush1.msra.mxu0 0.0
    %1854 = vmatprep.subr.mxu0 0.0
    %1855 = vmatpush1.msra.mxu0 0.0
    %1856 = vmatprep.subr.mxu0 0.0
    %1857 = vmatpush1.msra.mxu0 0.0
    %1858 = vmatprep.subr.mxu0 0.0
    %1859 = vmatpush1.msra.mxu0 0.0
    %1860 = vmatprep.subr.mxu0 0.0
    %1861 = vmatpush1.msra.mxu0 0.0
    %1862 = vmatprep.subr.mxu0 0.0
    %1863 = vmatpush1.msra.mxu0 0.0
    %1864 = vmatprep.subr.mxu0 0.0
    %1865 = vmatpush1.msra.mxu0 0.0
    %1866 = vmatprep.subr.mxu0 0.0
    %1867 = vmatpush1.msra.mxu0 0.0
    %1868 = vmatprep.subr.mxu0 0.0
    %1869 = vmatpush1.msra.mxu0 0.0
    %1870 = vmatprep.mubr.f32.mxu0 0.0
    %1871 = vmatmul.mubr.f32.gmra.mrb[0].mxu0 %v1792
    %v1872 = vpop.f32.mrb[0].mxu0
    %v1873 = vadd.f32 %v1784, %v1872
    %v1874 = vpop.f32.mrb[0].mxu0
    %v1875 = vadd.f32 %v1788, %v1874
    %1876 = vmatprep.mubr.f32.mxu0 0.0
    %1877 = vmatmul.mubr.f32.gmra.mrb[0].mxu0 %v1795
    %v1878 = vpop.f32.mrb[0].mxu0
    %v1879 = vadd.f32 %v1784, %v1878
    %v1880 = vpop.f32.mrb[0].mxu0
    %v1881 = vadd.f32 %v1788, %v1880
    %1882 = vmatprep.mubr.f32.mxu0 0.0
    %1883 = vmatmul.mubr.f32.gmra.mrb[0].mxu0 %v1798
    %v1884 = vpop.f32.mrb[0].mxu0
    %v1885 = vadd.f32 %v1784, %v1884
    %v1886 = vpop.f32.mrb[0].mxu0
    %v1887 = vadd.f32 %v1788, %v1886
    %1888 = vmatprep.mubr.f32.mxu0 0.0
    %1889 = vmatmul.mubr.f32.gmra.mrb[0].mxu0 %v1801
    %v1890 = vpop.f32.mrb[0].mxu0
    %v1891 = vadd.f32 %v1784, %v1890
    %v1892 = vpop.f32.mrb[0].mxu0
    %v1893 = vadd.f32 %v1788, %v1892
    %1894 = vmatprep.mubr.f32.mxu0 0.0
    %1895 = vmatmul.mubr.f32.gmra.mrb[0].mxu0 %v1804
    %v1896 = vpop.f32.mrb[0].mxu0
    %v1897 = vadd.f32 %v1784, %v1896
    %v1898 = vpop.f32.mrb[0].mxu0
    %v1899 = vadd.f32 %v1788, %v1898
    %1900 = vdwg.mxu0
    %v1901 = vmul.f32 %v1873, %v159
    %v1902 = vmul.f32 %v1879, %v159
    %v1903 = vmul.f32 %v1885, %v159
    %v1904 = vmul.f32 %v1891, %v159
    %v1905 = vmul.f32 %v1897, %v159
    %v1906 = vmul.f32 %v1873, %v164
    %v1907 = vmul.f32 %v1879, %v164
    %v1908 = vmul.f32 %v1885, %v164
    %v1909 = vmul.f32 %v1891, %v164
    %v1910 = vmul.f32 %v1897, %v164
    %v1911 = vmul.f32 %v1873, %v169
    %v1912 = vmul.f32 %v1879, %v169
    %v1913 = vmul.f32 %v1885, %v169
    %v1914 = vmul.f32 %v1891, %v169
    %v1915 = vmul.f32 %v1897, %v169
    %v1916 = vmul.f32 %v1873, %v174
    %v1917 = vmul.f32 %v1879, %v174
    %v1918 = vmul.f32 %v1885, %v174
    %v1919 = vmul.f32 %v1891, %v174
    %v1920 = vmul.f32 %v1897, %v174
    %1926 = vrot.lane.b32.xlu0 %v1873, 64
    %v1927 = vpop.permute.xlu0 %1926
    %1928 = vrot.lane.b32.xlu0 %v1879, 64
    %v1929 = vpop.permute.xlu0 %1928
    %1930 = vrot.lane.b32.xlu0 %v1885, 64
    %v1931 = vpop.permute.xlu0 %1930
    %1932 = vrot.lane.b32.xlu0 %v1891, 64
    %v1933 = vpop.permute.xlu0 %1932
    %1934 = vrot.lane.b32.xlu0 %v1897, 64
    %v1935 = vpop.permute.xlu0 %1934
    %v1937 = vsel %vm47, %v1901, 0
    %v1940 = vsel %vm47, %v1902, 0
    %v1943 = vsel %vm47, %v1903, 0
    %v1946 = vsel %vm47, %v1904, 0
    %v1949 = vsel %vm47, %v1905, 0
    %v1952 = vsel %vm47, %v1906, 0
    %v1955 = vsel %vm47, %v1907, 0
    %v1958 = vsel %vm47, %v1908, 0
    %v1961 = vsel %vm47, %v1909, 0
    %v1964 = vsel %vm47, %v1910, 0
    %v1967 = vsel %vm47, %v1911, 0
    %v1970 = vsel %vm47, %v1912, 0
    %v1973 = vsel %vm47, %v1913, 0
    %v1976 = vsel %vm47, %v1914, 0
    %v1979 = vsel %vm47, %v1915, 0
    %v1982 = vsel %vm47, %v1916, 0
    %v1985 = vsel %vm47, %v1917, 0
    %v1988 = vsel %vm47, %v1918, 0
    %v1991 = vsel %vm47, %v1919, 0
    %v1994 = vsel %vm47, %v1920, 0
    %v1996 = vsel %vm47, %v1927, 0
    %v1998 = vsel %vm47, %v1929, 0
    %v2000 = vsel %vm47, %v1931, 0
    %v2002 = vsel %vm47, %v1933, 0
    %v2004 = vsel %vm47, %v1935, 0
    %2006 = vmatprep.subr.mxu0 0.0
    %2007 = vmatpush1.xpose.msra.mxu0 %v1996
    %2008 = vmatprep.subr.mxu0 0.0
    %2009 = vmatpush1.xpose.msra.mxu0 %v1998
    %2010 = vmatprep.subr.mxu0 0.0
    %2011 = vmatpush1.xpose.msra.mxu0 %v2000
    %2012 = vmatprep.subr.mxu0 0.0
    %2013 = vmatpush1.xpose.msra.mxu0 %v2002
    %2014 = vmatprep.subr.mxu0 0.0
    %2015 = vmatpush1.xpose.msra.mxu0 %v2004
    %2016 = vmatprep.subr.mxu0 0.0
    %2017 = vmatpush1.xpose.msra.mxu0 0.0
    %2018 = vmatprep.subr.mxu0 0.0
    %2019 = vmatpush1.xpose.msra.mxu0 0.0
    %2020 = vmatprep.subr.mxu0 0.0
    %2021 = vmatpush1.xpose.msra.mxu0 0.0
    %2022 = vmatprep.subr.mxu0 0.0
    %2023 = vmatpush1.xpose.msra.mxu0 0.0
    %2024 = vmatprep.subr.mxu0 0.0
    %2025 = vmatpush1.xpose.msra.mxu0 0.0
    %2026 = vmatprep.subr.mxu0 0.0
    %2027 = vmatpush1.xpose.msra.mxu0 0.0
    %2028 = vmatprep.subr.mxu0 0.0
    %2029 = vmatpush1.xpose.msra.mxu0 0.0
    %2030 = vmatprep.subr.mxu0 0.0
    %2031 = vmatpush1.xpose.msra.mxu0 0.0
    %2032 = vmatprep.subr.mxu0 0.0
    %2033 = vmatpush1.xpose.msra.mxu0 0.0
    %2034 = vmatprep.subr.mxu0 0.0
    %2035 = vmatpush1.xpose.msra.mxu0 0.0
    %2036 = vmatprep.subr.mxu0 0.0
    %2037 = vmatpush1.xpose.msra.mxu0 0.0
    %2038 = vmatprep.subr.mxu0 0.0
    %2039 = vmatpush1.xpose.msra.mxu0 0.0
    %2040 = vmatprep.subr.mxu0 0.0
    %2041 = vmatpush1.xpose.msra.mxu0 0.0
    %2042 = vmatprep.subr.mxu0 0.0
    %2043 = vmatpush1.xpose.msra.mxu0 0.0
    %2044 = vmatprep.subr.mxu0 0.0
    %2045 = vmatpush1.xpose.msra.mxu0 0.0
    %2046 = vmatprep.subr.mxu0 0.0
    %2047 = vmatpush1.xpose.msra.mxu0 0.0
    %2048 = vmatprep.subr.mxu0 0.0
    %2049 = vmatpush1.xpose.msra.mxu0 0.0
    %2050 = vmatprep.subr.mxu0 0.0
    %2051 = vmatpush1.xpose.msra.mxu0 0.0
    %2052 = vmatprep.subr.mxu0 0.0
    %2053 = vmatpush1.xpose.msra.mxu0 0.0
    %2054 = vmatprep.subr.mxu0 0.0
    %2055 = vmatpush1.xpose.msra.mxu0 0.0
    %2056 = vmatprep.subr.mxu0 0.0
    %2057 = vmatpush1.xpose.msra.mxu0 0.0
    %2058 = vmatprep.subr.mxu0 0.0
    %2059 = vmatpush1.xpose.msra.mxu0 0.0
    %2060 = vmatprep.subr.mxu0 0.0
    %2061 = vmatpush1.xpose.msra.mxu0 0.0
    %2062 = vmatprep.subr.mxu0 0.0
    %2063 = vmatpush1.xpose.msra.mxu0 0.0
    %2064 = vmatprep.subr.mxu0 0.0
    %2065 = vmatpush1.xpose.msra.mxu0 0.0
    %2066 = vmatprep.subr.mxu0 0.0
    %2067 = vmatpush1.xpose.msra.mxu0 0.0
    %2068 = vmatprep.subr.mxu0 0.0
    %2069 = vmatpush1.xpose.msra.mxu0 0.0
    %2070 = vmatprep.mubr.f32.mxu0 0.0
    %2071 = vmatmul.mubr.f32.gmra.mrb[0].mxu0 %v1937
    %v2072 = vpop.f32.mrb[0].mxu0
    %v2073 = vadd.f32 0.0, %v2072
    %v2074 = vpop.f32.mrb[0].mxu0
    %2075 = vmatprep.mubr.f32.mxu0 0.0
    %2076 = vmatmul.mubr.f32.gmra.mrb[0].mxu0 %v1940
    %v2077 = vpop.f32.mrb[0].mxu0
    %v2078 = vadd.f32 0.0, %v2077
    %v2079 = vpop.f32.mrb[0].mxu0
    %2080 = vmatprep.mubr.f32.mxu0 0.0
    %2081 = vmatmul.mubr.f32.gmra.mrb[0].mxu0 %v1943
    %v2082 = vpop.f32.mrb[0].mxu0
    %v2083 = vadd.f32 0.0, %v2082
    %v2084 = vpop.f32.mrb[0].mxu0
    %2085 = vmatprep.mubr.f32.mxu0 0.0
    %2086 = vmatmul.mubr.f32.gmra.mrb[0].mxu0 %v1946
    %v2087 = vpop.f32.mrb[0].mxu0
    %v2088 = vadd.f32 0.0, %v2087
    %v2089 = vpop.f32.mrb[0].mxu0
    %2090 = vmatprep.mubr.f32.mxu0 0.0
    %2091 = vmatmul.mubr.f32.gmra.mrb[0].mxu0 %v1949
    %v2092 = vpop.f32.mrb[0].mxu0
    %v2093 = vadd.f32 0.0, %v2092
    %v2094 = vpop.f32.mrb[0].mxu0
    %2095 = vmatprep.mubr.f32.mxu0 0.0
    %2096 = vmatmul.mubr.f32.gmra.mrb[0].mxu0 %v1952
    %v2097 = vpop.f32.mrb[0].mxu0
    %v2098 = vadd.f32 0.0, %v2097
    %v2099 = vpop.f32.mrb[0].mxu0
    %2100 = vmatprep.mubr.f32.mxu0 0.0
    %2101 = vmatmul.mubr.f32.gmra.mrb[0].mxu0 %v1955
    %v2102 = vpop.f32.mrb[0].mxu0
    %v2103 = vadd.f32 0.0, %v2102
    %v2104 = vpop.f32.mrb[0].mxu0
    %2105 = vmatprep.mubr.f32.mxu0 0.0
    %2106 = vmatmul.mubr.f32.gmra.mrb[0].mxu0 %v1958
    %v2107 = vpop.f32.mrb[0].mxu0
    %v2108 = vadd.f32 0.0, %v2107
    %v2109 = vpop.f32.mrb[0].mxu0
    %2110 = vmatprep.mubr.f32.mxu0 0.0
    %2111 = vmatmul.mubr.f32.gmra.mrb[0].mxu0 %v1961
    %v2112 = vpop.f32.mrb[0].mxu0
    %v2113 = vadd.f32 0.0, %v2112
    %v2114 = vpop.f32.mrb[0].mxu0
    %2115 = vmatprep.mubr.f32.mxu0 0.0
    %2116 = vmatmul.mubr.f32.gmra.mrb[0].mxu0 %v1964
    %v2117 = vpop.f32.mrb[0].mxu0
    %v2118 = vadd.f32 0.0, %v2117
    %v2119 = vpop.f32.mrb[0].mxu0
    %2120 = vmatprep.mubr.f32.mxu0 0.0
    %2121 = vmatmul.mubr.f32.gmra.mrb[0].mxu0 %v1967
    %v2122 = vpop.f32.mrb[0].mxu0
    %v2123 = vadd.f32 0.0, %v2122
    %v2124 = vpop.f32.mrb[0].mxu0
    %2125 = vmatprep.mubr.f32.mxu0 0.0
    %2126 = vmatmul.mubr.f32.gmra.mrb[0].mxu0 %v1970
    %v2127 = vpop.f32.mrb[0].mxu0
    %v2128 = vadd.f32 0.0, %v2127
    %v2129 = vpop.f32.mrb[0].mxu0
    %2130 = vmatprep.mubr.f32.mxu0 0.0
    %2131 = vmatmul.mubr.f32.gmra.mrb[0].mxu0 %v1973
    %v2132 = vpop.f32.mrb[0].mxu0
    %v2133 = vadd.f32 0.0, %v2132
    %v2134 = vpop.f32.mrb[0].mxu0
    %2135 = vmatprep.mubr.f32.mxu0 0.0
    %2136 = vmatmul.mubr.f32.gmra.mrb[0].mxu0 %v1976
    %v2137 = vpop.f32.mrb[0].mxu0
    %v2138 = vadd.f32 0.0, %v2137
    %v2139 = vpop.f32.mrb[0].mxu0
    %2140 = vmatprep.mubr.f32.mxu0 0.0
    %2141 = vmatmul.mubr.f32.gmra.mrb[0].mxu0 %v1979
    %v2142 = vpop.f32.mrb[0].mxu0
    %v2143 = vadd.f32 0.0, %v2142
    %v2144 = vpop.f32.mrb[0].mxu0
    %2145 = vmatprep.mubr.f32.mxu0 0.0
    %2146 = vmatmul.mubr.f32.gmra.mrb[0].mxu0 %v1982
    %v2147 = vpop.f32.mrb[0].mxu0
    %v2148 = vadd.f32 0.0, %v2147
    %v2149 = vpop.f32.mrb[0].mxu0
    %2150 = vmatprep.mubr.f32.mxu0 0.0
    %2151 = vmatmul.mubr.f32.gmra.mrb[0].mxu0 %v1985
    %v2152 = vpop.f32.mrb[0].mxu0
    %v2153 = vadd.f32 0.0, %v2152
    %v2154 = vpop.f32.mrb[0].mxu0
    %2155 = vmatprep.mubr.f32.mxu0 0.0
    %2156 = vmatmul.mubr.f32.gmra.mrb[0].mxu0 %v1988
    %v2157 = vpop.f32.mrb[0].mxu0
    %v2158 = vadd.f32 0.0, %v2157
    %v2159 = vpop.f32.mrb[0].mxu0
    %2160 = vmatprep.mubr.f32.mxu0 0.0
    %2161 = vmatmul.mubr.f32.gmra.mrb[0].mxu0 %v1991
    %v2162 = vpop.f32.mrb[0].mxu0
    %v2163 = vadd.f32 0.0, %v2162
    %v2164 = vpop.f32.mrb[0].mxu0
    %2165 = vmatprep.mubr.f32.mxu0 0.0
    %2166 = vmatmul.mubr.f32.gmra.mrb[0].mxu0 %v1994
    %v2167 = vpop.f32.mrb[0].mxu0
    %v2168 = vadd.f32 0.0, %v2167
    %v2169 = vpop.f32.mrb[0].mxu0
    %2170 = vdwg.mxu0
    %v2171 = vmul.f32 %v2073, 0.25
    %v2172 = vmul.f32 %v2078, 0.25
    %v2173 = vmul.f32 %v2083, 0.25
    %v2174 = vmul.f32 %v2088, 0.25
    %v2175 = vmul.f32 %v2093, 0.25
    %v2176 = vmul.f32 %v2098, 0.25
    %v2177 = vmul.f32 %v2103, 0.25
    %v2178 = vmul.f32 %v2108, 0.25
    %v2179 = vmul.f32 %v2113, 0.25
    %v2180 = vmul.f32 %v2118, 0.25
    %v2181 = vmul.f32 %v2123, 0.25
    %v2182 = vmul.f32 %v2128, 0.25
    %v2183 = vmul.f32 %v2133, 0.25
    %v2184 = vmul.f32 %v2138, 0.25
    %v2185 = vmul.f32 %v2143, 0.25
    %v2186 = vmul.f32 %v2148, 0.25
    %v2187 = vmul.f32 %v2153, 0.25
    %v2188 = vmul.f32 %v2158, 0.25
    %v2189 = vmul.f32 %v2163, 0.25
    %v2190 = vmul.f32 %v2168, 0.25
    %v2191 = vadd.f32 %v2171, %v688
    %v2192 = vadd.f32 %v2172, %v690
    %v2193 = vadd.f32 %v2173, %v692
    %v2194 = vadd.f32 %v2174, %v694
    %v2195 = vadd.f32 %v2175, %v696
    %v2196 = vadd.f32 %v2176, %v688
    %v2197 = vadd.f32 %v2177, %v690
    %v2198 = vadd.f32 %v2178, %v692
    %v2199 = vadd.f32 %v2179, %v694
    %v2200 = vadd.f32 %v2180, %v696
    %v2201 = vadd.f32 %v2181, %v688
    %v2202 = vadd.f32 %v2182, %v690
    %v2203 = vadd.f32 %v2183, %v692
    %v2204 = vadd.f32 %v2184, %v694
    %v2205 = vadd.f32 %v2185, %v696
    %v2206 = vadd.f32 %v2186, %v688
    %v2207 = vadd.f32 %v2187, %v690
    %v2208 = vadd.f32 %v2188, %v692
    %v2209 = vadd.f32 %v2189, %v694
    %v2210 = vadd.f32 %v2190, %v696
    %v2211 = vsel %vm722, %v2191, -inf
    %2212 = vmax.xlane.f32.xlu0 %v2211
    %v2213 = vpop.xlane.xlu0 %2212
    %v2214 = vsel %vm722, %v2192, -inf
    %2215 = vmax.xlane.f32.xlu0 %v2214
    %v2216 = vpop.xlane.xlu0 %2215
    %v2217 = vsel %vm722, %v2193, -inf
    %2218 = vmax.xlane.f32.xlu0 %v2217
    %v2219 = vpop.xlane.xlu0 %2218
    %v2220 = vsel %vm722, %v2194, -inf
    %2221 = vmax.xlane.f32.xlu0 %v2220
    %v2222 = vpop.xlane.xlu0 %2221
    %v2223 = vsel %vm722, %v2195, -inf
    %2224 = vmax.xlane.f32.xlu0 %v2223
    %v2225 = vpop.xlane.xlu0 %2224
    %v2226 = vsel %vm722, %v2196, -inf
    %2227 = vmax.xlane.f32.xlu0 %v2226
    %v2228 = vpop.xlane.xlu0 %2227
    %v2229 = vsel %vm722, %v2197, -inf
    %2230 = vmax.xlane.f32.xlu0 %v2229
    %v2231 = vpop.xlane.xlu0 %2230
    %v2232 = vsel %vm722, %v2198, -inf
    %2233 = vmax.xlane.f32.xlu0 %v2232
    %v2234 = vpop.xlane.xlu0 %2233
    %v2235 = vsel %vm722, %v2199, -inf
    %2236 = vmax.xlane.f32.xlu0 %v2235
    %v2237 = vpop.xlane.xlu0 %2236
    %v2238 = vsel %vm722, %v2200, -inf
    %2239 = vmax.xlane.f32.xlu0 %v2238
    %v2240 = vpop.xlane.xlu0 %2239
    %v2241 = vsel %vm722, %v2201, -inf
    %2242 = vmax.xlane.f32.xlu0 %v2241
    %v2243 = vpop.xlane.xlu0 %2242
    %v2244 = vsel %vm722, %v2202, -inf
    %2245 = vmax.xlane.f32.xlu0 %v2244
    %v2246 = vpop.xlane.xlu0 %2245
    %v2247 = vsel %vm722, %v2203, -inf
    %2248 = vmax.xlane.f32.xlu0 %v2247
    %v2249 = vpop.xlane.xlu0 %2248
    %v2250 = vsel %vm722, %v2204, -inf
    %2251 = vmax.xlane.f32.xlu0 %v2250
    %v2252 = vpop.xlane.xlu0 %2251
    %v2253 = vsel %vm722, %v2205, -inf
    %2254 = vmax.xlane.f32.xlu0 %v2253
    %v2255 = vpop.xlane.xlu0 %2254
    %v2256 = vsel %vm722, %v2206, -inf
    %2257 = vmax.xlane.f32.xlu0 %v2256
    %v2258 = vpop.xlane.xlu0 %2257
    %v2259 = vsel %vm722, %v2207, -inf
    %2260 = vmax.xlane.f32.xlu0 %v2259
    %v2261 = vpop.xlane.xlu0 %2260
    %v2262 = vsel %vm722, %v2208, -inf
    %2263 = vmax.xlane.f32.xlu0 %v2262
    %v2264 = vpop.xlane.xlu0 %2263
    %v2265 = vsel %vm722, %v2209, -inf
    %2266 = vmax.xlane.f32.xlu0 %v2265
    %v2267 = vpop.xlane.xlu0 %2266
    %v2268 = vsel %vm722, %v2210, -inf
    %2269 = vmax.xlane.f32.xlu0 %v2268
    %v2270 = vpop.xlane.xlu0 %2269
    %v2271 = vsub.f32 %v2191, %v2213
    %v2272 = vsub.f32 %v2192, %v2216
    %v2273 = vsub.f32 %v2193, %v2219
    %v2274 = vsub.f32 %v2194, %v2222
    %v2275 = vsub.f32 %v2195, %v2225
    %v2276 = vsub.f32 %v2196, %v2228
    %v2277 = vsub.f32 %v2197, %v2231
    %v2278 = vsub.f32 %v2198, %v2234
    %v2279 = vsub.f32 %v2199, %v2237
    %v2280 = vsub.f32 %v2200, %v2240
    %v2281 = vsub.f32 %v2201, %v2243
    %v2282 = vsub.f32 %v2202, %v2246
    %v2283 = vsub.f32 %v2203, %v2249
    %v2284 = vsub.f32 %v2204, %v2252
    %v2285 = vsub.f32 %v2205, %v2255
    %v2286 = vsub.f32 %v2206, %v2258
    %v2287 = vsub.f32 %v2207, %v2261
    %v2288 = vsub.f32 %v2208, %v2264
    %v2289 = vsub.f32 %v2209, %v2267
    %v2290 = vsub.f32 %v2210, %v2270
    %v2291 = vmul.f32 %v2271, 1.442695
    %v2292 = vpow.pop %v2291
    %v2293 = vmul.f32 %v2272, 1.442695
    %v2294 = vpow.pop %v2293
    %v2295 = vmul.f32 %v2273, 1.442695
    %v2296 = vpow.pop %v2295
    %v2297 = vmul.f32 %v2274, 1.442695
    %v2298 = vpow.pop %v2297
    %v2299 = vmul.f32 %v2275, 1.442695
    %v2300 = vpow.pop %v2299
    %v2301 = vmul.f32 %v2276, 1.442695
    %v2302 = vpow.pop %v2301
    %v2303 = vmul.f32 %v2277, 1.442695
    %v2304 = vpow.pop %v2303
    %v2305 = vmul.f32 %v2278, 1.442695
    %v2306 = vpow.pop %v2305
    %v2307 = vmul.f32 %v2279, 1.442695
    %v2308 = vpow.pop %v2307
    %v2309 = vmul.f32 %v2280, 1.442695
    %v2310 = vpow.pop %v2309
    %v2311 = vmul.f32 %v2281, 1.442695
    %v2312 = vpow.pop %v2311
    %v2313 = vmul.f32 %v2282, 1.442695
    %v2314 = vpow.pop %v2313
    %v2315 = vmul.f32 %v2283, 1.442695
    %v2316 = vpow.pop %v2315
    %v2317 = vmul.f32 %v2284, 1.442695
    %v2318 = vpow.pop %v2317
    %v2319 = vmul.f32 %v2285, 1.442695
    %v2320 = vpow.pop %v2319
    %v2321 = vmul.f32 %v2286, 1.442695
    %v2322 = vpow.pop %v2321
    %v2323 = vmul.f32 %v2287, 1.442695
    %v2324 = vpow.pop %v2323
    %v2325 = vmul.f32 %v2288, 1.442695
    %v2326 = vpow.pop %v2325
    %v2327 = vmul.f32 %v2289, 1.442695
    %v2328 = vpow.pop %v2327
    %v2329 = vmul.f32 %v2290, 1.442695
    %v2330 = vpow.pop %v2329
    %v2331 = vsel %vm722, %v2292, 0.0
    %2332 = vadd.xlane.f32.xlu0 %v2331
    %v2333 = vpop.xlane.xlu0 %2332
    %v2334 = vsel %vm722, %v2294, 0.0
    %2335 = vadd.xlane.f32.xlu0 %v2334
    %v2336 = vpop.xlane.xlu0 %2335
    %v2337 = vsel %vm722, %v2296, 0.0
    %2338 = vadd.xlane.f32.xlu0 %v2337
    %v2339 = vpop.xlane.xlu0 %2338
    %v2340 = vsel %vm722, %v2298, 0.0
    %2341 = vadd.xlane.f32.xlu0 %v2340
    %v2342 = vpop.xlane.xlu0 %2341
    %v2343 = vsel %vm722, %v2300, 0.0
    %2344 = vadd.xlane.f32.xlu0 %v2343
    %v2345 = vpop.xlane.xlu0 %2344
    %v2346 = vsel %vm722, %v2302, 0.0
    %2347 = vadd.xlane.f32.xlu0 %v2346
    %v2348 = vpop.xlane.xlu0 %2347
    %v2349 = vsel %vm722, %v2304, 0.0
    %2350 = vadd.xlane.f32.xlu0 %v2349
    %v2351 = vpop.xlane.xlu0 %2350
    %v2352 = vsel %vm722, %v2306, 0.0
    %2353 = vadd.xlane.f32.xlu0 %v2352
    %v2354 = vpop.xlane.xlu0 %2353
    %v2355 = vsel %vm722, %v2308, 0.0
    %2356 = vadd.xlane.f32.xlu0 %v2355
    %v2357 = vpop.xlane.xlu0 %2356
    %v2358 = vsel %vm722, %v2310, 0.0
    %2359 = vadd.xlane.f32.xlu0 %v2358
    %v2360 = vpop.xlane.xlu0 %2359
    %v2361 = vsel %vm722, %v2312, 0.0
    %2362 = vadd.xlane.f32.xlu0 %v2361
    %v2363 = vpop.xlane.xlu0 %2362
    %v2364 = vsel %vm722, %v2314, 0.0
    %2365 = vadd.xlane.f32.xlu0 %v2364
    %v2366 = vpop.xlane.xlu0 %2365
    %v2367 = vsel %vm722, %v2316, 0.0
    %2368 = vadd.xlane.f32.xlu0 %v2367
    %v2369 = vpop.xlane.xlu0 %2368
    %v2370 = vsel %vm722, %v2318, 0.0
    %2371 = vadd.xlane.f32.xlu0 %v2370
    %v2372 = vpop.xlane.xlu0 %2371
    %v2373 = vsel %vm722, %v2320, 0.0
    %2374 = vadd.xlane.f32.xlu0 %v2373
    %v2375 = vpop.xlane.xlu0 %2374
    %v2376 = vsel %vm722, %v2322, 0.0
    %2377 = vadd.xlane.f32.xlu0 %v2376
    %v2378 = vpop.xlane.xlu0 %2377
    %v2379 = vsel %vm722, %v2324, 0.0
    %2380 = vadd.xlane.f32.xlu0 %v2379
    %v2381 = vpop.xlane.xlu0 %2380
    %v2382 = vsel %vm722, %v2326, 0.0
    %2383 = vadd.xlane.f32.xlu0 %v2382
    %v2384 = vpop.xlane.xlu0 %2383
    %v2385 = vsel %vm722, %v2328, 0.0
    %2386 = vadd.xlane.f32.xlu0 %v2385
    %v2387 = vpop.xlane.xlu0 %2386
    %v2388 = vsel %vm722, %v2330, 0.0
    %2389 = vadd.xlane.f32.xlu0 %v2388
    %v2390 = vpop.xlane.xlu0 %2389
    %v2391 = vrcp.pop %v2333
    %v2392 = vrcp.pop %v2336
    %v2393 = vrcp.pop %v2339
    %v2394 = vrcp.pop %v2342
    %v2395 = vrcp.pop %v2345
    %v2396 = vrcp.pop %v2348
    %v2397 = vrcp.pop %v2351
    %v2398 = vrcp.pop %v2354
    %v2399 = vrcp.pop %v2357
    %v2400 = vrcp.pop %v2360
    %v2401 = vrcp.pop %v2363
    %v2402 = vrcp.pop %v2366
    %v2403 = vrcp.pop %v2369
    %v2404 = vrcp.pop %v2372
    %v2405 = vrcp.pop %v2375
    %v2406 = vrcp.pop %v2378
    %v2407 = vrcp.pop %v2381
    %v2408 = vrcp.pop %v2384
    %v2409 = vrcp.pop %v2387
    %v2410 = vrcp.pop %v2390
    %v2411 = vmul.f32 %v2292, %v2391
    %v2412 = vmul.f32 %v2294, %v2392
    %v2413 = vmul.f32 %v2296, %v2393
    %v2414 = vmul.f32 %v2298, %v2394
    %v2415 = vmul.f32 %v2300, %v2395
    %v2416 = vmul.f32 %v2302, %v2396
    %v2417 = vmul.f32 %v2304, %v2397
    %v2418 = vmul.f32 %v2306, %v2398
    %v2419 = vmul.f32 %v2308, %v2399
    %v2420 = vmul.f32 %v2310, %v2400
    %v2421 = vmul.f32 %v2312, %v2401
    %v2422 = vmul.f32 %v2314, %v2402
    %v2423 = vmul.f32 %v2316, %v2403
    %v2424 = vmul.f32 %v2318, %v2404
    %v2425 = vmul.f32 %v2320, %v2405
    %v2426 = vmul.f32 %v2322, %v2406
    %v2427 = vmul.f32 %v2324, %v2407
    %v2428 = vmul.f32 %v2326, %v2408
    %v2429 = vmul.f32 %v2328, %v2409
    %v2430 = vmul.f32 %v2330, %v2410
    %v2432 = vsel %vm722, %v2411, 0
    %v2435 = vsel %vm722, %v2412, 0
    %v2438 = vsel %vm722, %v2413, 0
    %v2441 = vsel %vm722, %v2414, 0
    %v2444 = vsel %vm722, %v2415, 0
    %v2447 = vsel %vm722, %v2416, 0
    %v2450 = vsel %vm722, %v2417, 0
    %v2453 = vsel %vm722, %v2418, 0
    %v2456 = vsel %vm722, %v2419, 0
    %v2459 = vsel %vm722, %v2420, 0
    %v2462 = vsel %vm722, %v2421, 0
    %v2465 = vsel %vm722, %v2422, 0
    %v2468 = vsel %vm722, %v2423, 0
    %v2471 = vsel %vm722, %v2424, 0
    %v2474 = vsel %vm722, %v2425, 0
    %v2477 = vsel %vm722, %v2426, 0
    %v2480 = vsel %vm722, %v2427, 0
    %v2483 = vsel %vm722, %v2428, 0
    %v2486 = vsel %vm722, %v2429, 0
    %v2489 = vsel %vm722, %v2430, 0
    %2491 = vmatprep.subr.mxu0 0.0
    %2492 = vmatpush1.msra.mxu0 %v1875
    %2493 = vmatprep.subr.mxu0 0.0
    %2494 = vmatpush1.msra.mxu0 %v1881
    %2495 = vmatprep.subr.mxu0 0.0
    %2496 = vmatpush1.msra.mxu0 %v1887
    %2497 = vmatprep.subr.mxu0 0.0
    %2498 = vmatpush1.msra.mxu0 %v1893
    %2499 = vmatprep.subr.mxu0 0.0
    %2500 = vmatpush1.msra.mxu0 %v1899
    %2501 = vmatprep.subr.mxu0 0.0
    %2502 = vmatpush1.msra.mxu0 0.0
    %2503 = vmatprep.subr.mxu0 0.0
    %2504 = vmatpush1.msra.mxu0 0.0
    %2505 = vmatprep.subr.mxu0 0.0
    %2506 = vmatpush1.msra.mxu0 0.0
    %2507 = vmatprep.subr.mxu0 0.0
    %2508 = vmatpush1.msra.mxu0 0.0
    %2509 = vmatprep.subr.mxu0 0.0
    %2510 = vmatpush1.msra.mxu0 0.0
    %2511 = vmatprep.subr.mxu0 0.0
    %2512 = vmatpush1.msra.mxu0 0.0
    %2513 = vmatprep.subr.mxu0 0.0
    %2514 = vmatpush1.msra.mxu0 0.0
    %2515 = vmatprep.subr.mxu0 0.0
    %2516 = vmatpush1.msra.mxu0 0.0
    %2517 = vmatprep.subr.mxu0 0.0
    %2518 = vmatpush1.msra.mxu0 0.0
    %2519 = vmatprep.subr.mxu0 0.0
    %2520 = vmatpush1.msra.mxu0 0.0
    %2521 = vmatprep.subr.mxu0 0.0
    %2522 = vmatpush1.msra.mxu0 0.0
    %2523 = vmatprep.subr.mxu0 0.0
    %2524 = vmatpush1.msra.mxu0 0.0
    %2525 = vmatprep.subr.mxu0 0.0
    %2526 = vmatpush1.msra.mxu0 0.0
    %2527 = vmatprep.subr.mxu0 0.0
    %2528 = vmatpush1.msra.mxu0 0.0
    %2529 = vmatprep.subr.mxu0 0.0
    %2530 = vmatpush1.msra.mxu0 0.0
    %2531 = vmatprep.subr.mxu0 0.0
    %2532 = vmatpush1.msra.mxu0 0.0
    %2533 = vmatprep.subr.mxu0 0.0
    %2534 = vmatpush1.msra.mxu0 0.0
    %2535 = vmatprep.subr.mxu0 0.0
    %2536 = vmatpush1.msra.mxu0 0.0
    %2537 = vmatprep.subr.mxu0 0.0
    %2538 = vmatpush1.msra.mxu0 0.0
    %2539 = vmatprep.subr.mxu0 0.0
    %2540 = vmatpush1.msra.mxu0 0.0
    %2541 = vmatprep.subr.mxu0 0.0
    %2542 = vmatpush1.msra.mxu0 0.0
    %2543 = vmatprep.subr.mxu0 0.0
    %2544 = vmatpush1.msra.mxu0 0.0
    %2545 = vmatprep.subr.mxu0 0.0
    %2546 = vmatpush1.msra.mxu0 0.0
    %2547 = vmatprep.subr.mxu0 0.0
    %2548 = vmatpush1.msra.mxu0 0.0
    %2549 = vmatprep.subr.mxu0 0.0
    %2550 = vmatpush1.msra.mxu0 0.0
    %2551 = vmatprep.subr.mxu0 0.0
    %2552 = vmatpush1.msra.mxu0 0.0
    %2553 = vmatprep.subr.mxu0 0.0
    %2554 = vmatpush1.msra.mxu0 0.0
    %2555 = vmatprep.mubr.f32.mxu0 0.0
    %2556 = vmatmul.mubr.f32.gmra.mrb[0].mxu0 %v2432
    %v2557 = vpop.f32.mrb[0].mxu0
    %v2558 = vadd.f32 0.0, %v2557
    %v2559 = vpop.f32.mrb[0].mxu0
    %2560 = vmatprep.mubr.f32.mxu0 0.0
    %2561 = vmatmul.mubr.f32.gmra.mrb[0].mxu0 %v2435
    %v2562 = vpop.f32.mrb[0].mxu0
    %v2563 = vadd.f32 0.0, %v2562
    %v2564 = vpop.f32.mrb[0].mxu0
    %2565 = vmatprep.mubr.f32.mxu0 0.0
    %2566 = vmatmul.mubr.f32.gmra.mrb[0].mxu0 %v2438
    %v2567 = vpop.f32.mrb[0].mxu0
    %v2568 = vadd.f32 0.0, %v2567
    %v2569 = vpop.f32.mrb[0].mxu0
    %2570 = vmatprep.mubr.f32.mxu0 0.0
    %2571 = vmatmul.mubr.f32.gmra.mrb[0].mxu0 %v2441
    %v2572 = vpop.f32.mrb[0].mxu0
    %v2573 = vadd.f32 0.0, %v2572
    %v2574 = vpop.f32.mrb[0].mxu0
    %2575 = vmatprep.mubr.f32.mxu0 0.0
    %2576 = vmatmul.mubr.f32.gmra.mrb[0].mxu0 %v2444
    %v2577 = vpop.f32.mrb[0].mxu0
    %v2578 = vadd.f32 0.0, %v2577
    %v2579 = vpop.f32.mrb[0].mxu0
    %2580 = vmatprep.mubr.f32.mxu0 0.0
    %2581 = vmatmul.mubr.f32.gmra.mrb[0].mxu0 %v2447
    %v2582 = vpop.f32.mrb[0].mxu0
    %v2583 = vadd.f32 0.0, %v2582
    %v2584 = vpop.f32.mrb[0].mxu0
    %2585 = vmatprep.mubr.f32.mxu0 0.0
    %2586 = vmatmul.mubr.f32.gmra.mrb[0].mxu0 %v2450
    %v2587 = vpop.f32.mrb[0].mxu0
    %v2588 = vadd.f32 0.0, %v2587
    %v2589 = vpop.f32.mrb[0].mxu0
    %2590 = vmatprep.mubr.f32.mxu0 0.0
    %2591 = vmatmul.mubr.f32.gmra.mrb[0].mxu0 %v2453
    %v2592 = vpop.f32.mrb[0].mxu0
    %v2593 = vadd.f32 0.0, %v2592
    %v2594 = vpop.f32.mrb[0].mxu0
    %2595 = vmatprep.mubr.f32.mxu0 0.0
    %2596 = vmatmul.mubr.f32.gmra.mrb[0].mxu0 %v2456
    %v2597 = vpop.f32.mrb[0].mxu0
    %v2598 = vadd.f32 0.0, %v2597
    %v2599 = vpop.f32.mrb[0].mxu0
    %2600 = vmatprep.mubr.f32.mxu0 0.0
    %2601 = vmatmul.mubr.f32.gmra.mrb[0].mxu0 %v2459
    %v2602 = vpop.f32.mrb[0].mxu0
    %v2603 = vadd.f32 0.0, %v2602
    %v2604 = vpop.f32.mrb[0].mxu0
    %2605 = vmatprep.mubr.f32.mxu0 0.0
    %2606 = vmatmul.mubr.f32.gmra.mrb[0].mxu0 %v2462
    %v2607 = vpop.f32.mrb[0].mxu0
    %v2608 = vadd.f32 0.0, %v2607
    %v2609 = vpop.f32.mrb[0].mxu0
    %2610 = vmatprep.mubr.f32.mxu0 0.0
    %2611 = vmatmul.mubr.f32.gmra.mrb[0].mxu0 %v2465
    %v2612 = vpop.f32.mrb[0].mxu0
    %v2613 = vadd.f32 0.0, %v2612
    %v2614 = vpop.f32.mrb[0].mxu0
    %2615 = vmatprep.mubr.f32.mxu0 0.0
    %2616 = vmatmul.mubr.f32.gmra.mrb[0].mxu0 %v2468
    %v2617 = vpop.f32.mrb[0].mxu0
    %v2618 = vadd.f32 0.0, %v2617
    %v2619 = vpop.f32.mrb[0].mxu0
    %2620 = vmatprep.mubr.f32.mxu0 0.0
    %2621 = vmatmul.mubr.f32.gmra.mrb[0].mxu0 %v2471
    %v2622 = vpop.f32.mrb[0].mxu0
    %v2623 = vadd.f32 0.0, %v2622
    %v2624 = vpop.f32.mrb[0].mxu0
    %2625 = vmatprep.mubr.f32.mxu0 0.0
    %2626 = vmatmul.mubr.f32.gmra.mrb[0].mxu0 %v2474
    %v2627 = vpop.f32.mrb[0].mxu0
    %v2628 = vadd.f32 0.0, %v2627
    %v2629 = vpop.f32.mrb[0].mxu0
    %2630 = vmatprep.mubr.f32.mxu0 0.0
    %2631 = vmatmul.mubr.f32.gmra.mrb[0].mxu0 %v2477
    %v2632 = vpop.f32.mrb[0].mxu0
    %v2633 = vadd.f32 0.0, %v2632
    %v2634 = vpop.f32.mrb[0].mxu0
    %2635 = vmatprep.mubr.f32.mxu0 0.0
    %2636 = vmatmul.mubr.f32.gmra.mrb[0].mxu0 %v2480
    %v2637 = vpop.f32.mrb[0].mxu0
    %v2638 = vadd.f32 0.0, %v2637
    %v2639 = vpop.f32.mrb[0].mxu0
    %2640 = vmatprep.mubr.f32.mxu0 0.0
    %2641 = vmatmul.mubr.f32.gmra.mrb[0].mxu0 %v2483
    %v2642 = vpop.f32.mrb[0].mxu0
    %v2643 = vadd.f32 0.0, %v2642
    %v2644 = vpop.f32.mrb[0].mxu0
    %2645 = vmatprep.mubr.f32.mxu0 0.0
    %2646 = vmatmul.mubr.f32.gmra.mrb[0].mxu0 %v2486
    %v2647 = vpop.f32.mrb[0].mxu0
    %v2648 = vadd.f32 0.0, %v2647
    %v2649 = vpop.f32.mrb[0].mxu0
    %2650 = vmatprep.mubr.f32.mxu0 0.0
    %2651 = vmatmul.mubr.f32.gmra.mrb[0].mxu0 %v2489
    %v2652 = vpop.f32.mrb[0].mxu0
    %v2653 = vadd.f32 0.0, %v2652
    %v2654 = vpop.f32.mrb[0].mxu0
    %2655 = vdwg.mxu0
    %v2656 = vmul.f32 %v2558, %v159
    %v2657 = vmul.f32 %v2563, %v159
    %v2658 = vmul.f32 %v2568, %v159
    %v2659 = vmul.f32 %v2573, %v159
    %v2660 = vmul.f32 %v2578, %v159
    %v2661 = vadd.f32 %v2656, 0.0
    %v2662 = vadd.f32 %v2657, 0.0
    %v2663 = vadd.f32 %v2658, 0.0
    %v2664 = vadd.f32 %v2659, 0.0
    %v2665 = vadd.f32 %v2660, 0.0
    %v2666 = vmul.f32 %v2583, %v164
    %v2667 = vmul.f32 %v2588, %v164
    %v2668 = vmul.f32 %v2593, %v164
    %v2669 = vmul.f32 %v2598, %v164
    %v2670 = vmul.f32 %v2603, %v164
    %v2671 = vadd.f32 %v2661, %v2666
    %v2672 = vadd.f32 %v2662, %v2667
    %v2673 = vadd.f32 %v2663, %v2668
    %v2674 = vadd.f32 %v2664, %v2669
    %v2675 = vadd.f32 %v2665, %v2670
    %v2676 = vmul.f32 %v2608, %v169
    %v2677 = vmul.f32 %v2613, %v169
    %v2678 = vmul.f32 %v2618, %v169
    %v2679 = vmul.f32 %v2623, %v169
    %v2680 = vmul.f32 %v2628, %v169
    %v2681 = vadd.f32 %v2671, %v2676
    %v2682 = vadd.f32 %v2672, %v2677
    %v2683 = vadd.f32 %v2673, %v2678
    %v2684 = vadd.f32 %v2674, %v2679
    %v2685 = vadd.f32 %v2675, %v2680
    %v2686 = vmul.f32 %v2633, %v174
    %v2687 = vmul.f32 %v2638, %v174
    %v2688 = vmul.f32 %v2643, %v174
    %v2689 = vmul.f32 %v2648, %v174
    %v2690 = vmul.f32 %v2653, %v174
    %v2691 = vadd.f32 %v2681, %v2686
    %v2692 = vadd.f32 %v2682, %v2687
    %v2693 = vadd.f32 %v2683, %v2688
    %v2694 = vadd.f32 %v2684, %v2689
    %v2695 = vadd.f32 %v2685, %v2690
    %v2696 = vld [vmem:[%s3 + $0x30] sm:$0xff]
    %v2697 = vld [vmem:[%s3 + $0x90] sm:$0xff]
    %v2698 = vld [vmem:[%s3 + $0xf0] sm:$0xff]
    %v2699 = vld [vmem:[%s3 + $0x150] sm:$0xff]
    %v2700 = vld [vmem:[%s3 + $0x1b0] sm:$0xff]
    %v2701 = vld [vmem:[%s3 + $0x210] sm:$0xff]
    %v2702 = vld [vmem:[%s3 + $0x270] sm:$0xff]
    %v2703 = vld [vmem:[%s3 + $0x2d0] sm:$0xff]
    %v2705 = vsel %vm47, %v2691, 0
    %v2708 = vsel %vm47, %v2692, 0
    %v2711 = vsel %vm47, %v2693, 0
    %v2714 = vsel %vm47, %v2694, 0
    %v2717 = vsel %vm47, %v2695, 0
    %2719 = vmatprep.subr.mxu0 0.0
    %2720 = vmatpush1.msra.mxu0 %v2696
    %2721 = vmatprep.subr.mxu0 0.0
    %2722 = vmatpush1.msra.mxu0 %v2697
    %2723 = vmatprep.subr.mxu0 0.0
    %2724 = vmatpush1.msra.mxu0 %v2698
    %2725 = vmatprep.subr.mxu0 0.0
    %2726 = vmatpush1.msra.mxu0 %v2699
    %2727 = vmatprep.subr.mxu0 0.0
    %2728 = vmatpush1.msra.mxu0 %v2700
    %2729 = vmatprep.subr.mxu0 0.0
    %2730 = vmatpush1.msra.mxu0 %v2701
    %2731 = vmatprep.subr.mxu0 0.0
    %2732 = vmatpush1.msra.mxu0 %v2702
    %2733 = vmatprep.subr.mxu0 0.0
    %2734 = vmatpush1.msra.mxu0 %v2703
    %2735 = vmatprep.subr.mxu0 0.0
    %2736 = vmatpush1.msra.mxu0 0.0
    %2737 = vmatprep.subr.mxu0 0.0
    %2738 = vmatpush1.msra.mxu0 0.0
    %2739 = vmatprep.subr.mxu0 0.0
    %2740 = vmatpush1.msra.mxu0 0.0
    %2741 = vmatprep.subr.mxu0 0.0
    %2742 = vmatpush1.msra.mxu0 0.0
    %2743 = vmatprep.subr.mxu0 0.0
    %2744 = vmatpush1.msra.mxu0 0.0
    %2745 = vmatprep.subr.mxu0 0.0
    %2746 = vmatpush1.msra.mxu0 0.0
    %2747 = vmatprep.subr.mxu0 0.0
    %2748 = vmatpush1.msra.mxu0 0.0
    %2749 = vmatprep.subr.mxu0 0.0
    %2750 = vmatpush1.msra.mxu0 0.0
    %2751 = vmatprep.subr.mxu0 0.0
    %2752 = vmatpush1.msra.mxu0 0.0
    %2753 = vmatprep.subr.mxu0 0.0
    %2754 = vmatpush1.msra.mxu0 0.0
    %2755 = vmatprep.subr.mxu0 0.0
    %2756 = vmatpush1.msra.mxu0 0.0
    %2757 = vmatprep.subr.mxu0 0.0
    %2758 = vmatpush1.msra.mxu0 0.0
    %2759 = vmatprep.subr.mxu0 0.0
    %2760 = vmatpush1.msra.mxu0 0.0
    %2761 = vmatprep.subr.mxu0 0.0
    %2762 = vmatpush1.msra.mxu0 0.0
    %2763 = vmatprep.subr.mxu0 0.0
    %2764 = vmatpush1.msra.mxu0 0.0
    %2765 = vmatprep.subr.mxu0 0.0
    %2766 = vmatpush1.msra.mxu0 0.0
    %2767 = vmatprep.subr.mxu0 0.0
    %2768 = vmatpush1.msra.mxu0 0.0
    %2769 = vmatprep.subr.mxu0 0.0
    %2770 = vmatpush1.msra.mxu0 0.0
    %2771 = vmatprep.subr.mxu0 0.0
    %2772 = vmatpush1.msra.mxu0 0.0
    %2773 = vmatprep.subr.mxu0 0.0
    %2774 = vmatpush1.msra.mxu0 0.0
    %2775 = vmatprep.subr.mxu0 0.0
    %2776 = vmatpush1.msra.mxu0 0.0
    %2777 = vmatprep.subr.mxu0 0.0
    %2778 = vmatpush1.msra.mxu0 0.0
    %2779 = vmatprep.subr.mxu0 0.0
    %2780 = vmatpush1.msra.mxu0 0.0
    %2781 = vmatprep.subr.mxu0 0.0
    %2782 = vmatpush1.msra.mxu0 0.0
    %2783 = vmatprep.mubr.f32.mxu0 0.0
    %2784 = vmatmul.mubr.f32.gmra.mrb[0].mxu0 %v2705
    %v2785 = vpop.f32.mrb[0].mxu0
    %v2786 = vadd.f32 0.0, %v2785
    %v2787 = vpop.f32.mrb[0].mxu0
    %2788 = vmatprep.mubr.f32.mxu0 0.0
    %2789 = vmatmul.mubr.f32.gmra.mrb[0].mxu0 %v2708
    %v2790 = vpop.f32.mrb[0].mxu0
    %v2791 = vadd.f32 0.0, %v2790
    %v2792 = vpop.f32.mrb[0].mxu0
    %2793 = vmatprep.mubr.f32.mxu0 0.0
    %2794 = vmatmul.mubr.f32.gmra.mrb[0].mxu0 %v2711
    %v2795 = vpop.f32.mrb[0].mxu0
    %v2796 = vadd.f32 0.0, %v2795
    %v2797 = vpop.f32.mrb[0].mxu0
    %2798 = vmatprep.mubr.f32.mxu0 0.0
    %2799 = vmatmul.mubr.f32.gmra.mrb[0].mxu0 %v2714
    %v2800 = vpop.f32.mrb[0].mxu0
    %v2801 = vadd.f32 0.0, %v2800
    %v2802 = vpop.f32.mrb[0].mxu0
    %2803 = vmatprep.mubr.f32.mxu0 0.0
    %2804 = vmatmul.mubr.f32.gmra.mrb[0].mxu0 %v2717
    %v2805 = vpop.f32.mrb[0].mxu0
    %v2806 = vadd.f32 0.0, %v2805
    %v2807 = vpop.f32.mrb[0].mxu0
    %2808 = vdwg.mxu0
    %v2809 = vadd.f32 %v1680, %v2786
    %v2810 = vadd.f32 %v1681, %v2791
    %v2811 = vadd.f32 %v1682, %v2796
    %v2812 = vadd.f32 %v1683, %v2801
    %v2813 = vadd.f32 %v1684, %v2806
    %v2814 = vld [vmem:[%s2 + $0x1b] ss:$0 sm:$0xff]
    %v2815 = vadd.f32 %v2809, %v2814
    %v2816 = vadd.f32 %v2810, %v2814
    %v2817 = vadd.f32 %v2811, %v2814
    %v2818 = vadd.f32 %v2812, %v2814
    %v2819 = vadd.f32 %v2813, %v2814
    %v2820 = vld [vmem:[%s2 + $0x1c] ss:$0 sm:$0xff]
    %v2821 = vld [vmem:[%s2 + $0x1d] ss:$0 sm:$0xff]
    %v2822 = vsel %vm47, %v2815, 0.0
    %2823 = vadd.xlane.f32.xlu0 %v2822
    %v2824 = vpop.xlane.xlu0 %2823
    %v2825 = vsel %vm47, %v2816, 0.0
    %2826 = vadd.xlane.f32.xlu0 %v2825
    %v2827 = vpop.xlane.xlu0 %2826
    %v2828 = vsel %vm47, %v2817, 0.0
    %2829 = vadd.xlane.f32.xlu0 %v2828
    %v2830 = vpop.xlane.xlu0 %2829
    %v2831 = vsel %vm47, %v2818, 0.0
    %2832 = vadd.xlane.f32.xlu0 %v2831
    %v2833 = vpop.xlane.xlu0 %2832
    %v2834 = vsel %vm47, %v2819, 0.0
    %2835 = vadd.xlane.f32.xlu0 %v2834
    %v2836 = vpop.xlane.xlu0 %2835
    %v2837 = vmul.f32 %v2824, %v192
    %v2838 = vmul.f32 %v2827, %v192
    %v2839 = vmul.f32 %v2830, %v192
    %v2840 = vmul.f32 %v2833, %v192
    %v2841 = vmul.f32 %v2836, %v192
    %v2842 = vsub.f32 %v2815, %v2837
    %v2843 = vsub.f32 %v2816, %v2838
    %v2844 = vsub.f32 %v2817, %v2839
    %v2845 = vsub.f32 %v2818, %v2840
    %v2846 = vsub.f32 %v2819, %v2841
    %v2847 = vmul.f32 %v2842, %v2842
    %v2848 = vmul.f32 %v2843, %v2843
    %v2849 = vmul.f32 %v2844, %v2844
    %v2850 = vmul.f32 %v2845, %v2845
    %v2851 = vmul.f32 %v2846, %v2846
    %v2852 = vsel %vm47, %v2847, 0.0
    %2853 = vadd.xlane.f32.xlu0 %v2852
    %v2854 = vpop.xlane.xlu0 %2853
    %v2855 = vsel %vm47, %v2848, 0.0
    %2856 = vadd.xlane.f32.xlu0 %v2855
    %v2857 = vpop.xlane.xlu0 %2856
    %v2858 = vsel %vm47, %v2849, 0.0
    %2859 = vadd.xlane.f32.xlu0 %v2858
    %v2860 = vpop.xlane.xlu0 %2859
    %v2861 = vsel %vm47, %v2850, 0.0
    %2862 = vadd.xlane.f32.xlu0 %v2861
    %v2863 = vpop.xlane.xlu0 %2862
    %v2864 = vsel %vm47, %v2851, 0.0
    %2865 = vadd.xlane.f32.xlu0 %v2864
    %v2866 = vpop.xlane.xlu0 %2865
    %v2867 = vmul.f32 %v2854, %v192
    %v2868 = vmul.f32 %v2857, %v192
    %v2869 = vmul.f32 %v2860, %v192
    %v2870 = vmul.f32 %v2863, %v192
    %v2871 = vmul.f32 %v2866, %v192
    %v2872 = vadd.f32 %v2867, 1e-05
    %v2873 = vadd.f32 %v2868, 1e-05
    %v2874 = vadd.f32 %v2869, 1e-05
    %v2875 = vadd.f32 %v2870, 1e-05
    %v2876 = vadd.f32 %v2871, 1e-05
    %v2877 = vrsqrt.pop %v2872
    %v2878 = vrsqrt.pop %v2873
    %v2879 = vrsqrt.pop %v2874
    %v2880 = vrsqrt.pop %v2875
    %v2881 = vrsqrt.pop %v2876
    %v2882 = vmul.f32 %v2842, %v2877
    %v2883 = vmul.f32 %v2843, %v2878
    %v2884 = vmul.f32 %v2844, %v2879
    %v2885 = vmul.f32 %v2845, %v2880
    %v2886 = vmul.f32 %v2846, %v2881
    %v2887 = vmul.f32 %v2882, %v2820
    %v2888 = vmul.f32 %v2883, %v2820
    %v2889 = vmul.f32 %v2884, %v2820
    %v2890 = vmul.f32 %v2885, %v2820
    %v2891 = vmul.f32 %v2886, %v2820
    %v2892 = vadd.f32 %v2887, %v2821
    %v2893 = vadd.f32 %v2888, %v2821
    %v2894 = vadd.f32 %v2889, %v2821
    %v2895 = vadd.f32 %v2890, %v2821
    %v2896 = vadd.f32 %v2891, %v2821
    %v2897 = vld [vmem:[%s3 + $0x40] sm:$0xff]
    %v2898 = vld [vmem:[%s3 + $0xa0] sm:$0xff]
    %v2899 = vld [vmem:[%s3 + $0x100] sm:$0xff]
    %v2900 = vld [vmem:[%s3 + $0x160] sm:$0xff]
    %v2901 = vld [vmem:[%s3 + $0x1c0] sm:$0xff]
    %v2902 = vld [vmem:[%s3 + $0x220] sm:$0xff]
    %v2903 = vld [vmem:[%s3 + $0x280] sm:$0xff]
    %v2904 = vld [vmem:[%s3 + $0x2e0] sm:$0xff]
    %v2905 = vld [vmem:[%s2 + $0x1e] ss:$0 sm:$0xff]
    %v2907 = vsel %vm47, %v2892, 0
    %v2910 = vsel %vm47, %v2893, 0
    %v2913 = vsel %vm47, %v2894, 0
    %v2916 = vsel %vm47, %v2895, 0
    %v2919 = vsel %vm47, %v2896, 0
    %2921 = vmatprep.subr.mxu0 0.0
    %2922 = vmatpush1.msra.mxu0 %v2897
    %2923 = vmatprep.subr.mxu0 0.0
    %2924 = vmatpush1.msra.mxu0 %v2898
    %2925 = vmatprep.subr.mxu0 0.0
    %2926 = vmatpush1.msra.mxu0 %v2899
    %2927 = vmatprep.subr.mxu0 0.0
    %2928 = vmatpush1.msra.mxu0 %v2900
    %2929 = vmatprep.subr.mxu0 0.0
    %2930 = vmatpush1.msra.mxu0 %v2901
    %2931 = vmatprep.subr.mxu0 0.0
    %2932 = vmatpush1.msra.mxu0 %v2902
    %2933 = vmatprep.subr.mxu0 0.0
    %2934 = vmatpush1.msra.mxu0 %v2903
    %2935 = vmatprep.subr.mxu0 0.0
    %2936 = vmatpush1.msra.mxu0 %v2904
    %2937 = vmatprep.subr.mxu0 0.0
    %2938 = vmatpush1.msra.mxu0 0.0
    %2939 = vmatprep.subr.mxu0 0.0
    %2940 = vmatpush1.msra.mxu0 0.0
    %2941 = vmatprep.subr.mxu0 0.0
    %2942 = vmatpush1.msra.mxu0 0.0
    %2943 = vmatprep.subr.mxu0 0.0
    %2944 = vmatpush1.msra.mxu0 0.0
    %2945 = vmatprep.subr.mxu0 0.0
    %2946 = vmatpush1.msra.mxu0 0.0
    %2947 = vmatprep.subr.mxu0 0.0
    %2948 = vmatpush1.msra.mxu0 0.0
    %2949 = vmatprep.subr.mxu0 0.0
    %2950 = vmatpush1.msra.mxu0 0.0
    %2951 = vmatprep.subr.mxu0 0.0
    %2952 = vmatpush1.msra.mxu0 0.0
    %2953 = vmatprep.subr.mxu0 0.0
    %2954 = vmatpush1.msra.mxu0 0.0
    %2955 = vmatprep.subr.mxu0 0.0
    %2956 = vmatpush1.msra.mxu0 0.0
    %2957 = vmatprep.subr.mxu0 0.0
    %2958 = vmatpush1.msra.mxu0 0.0
    %2959 = vmatprep.subr.mxu0 0.0
    %2960 = vmatpush1.msra.mxu0 0.0
    %2961 = vmatprep.subr.mxu0 0.0
    %2962 = vmatpush1.msra.mxu0 0.0
    %2963 = vmatprep.subr.mxu0 0.0
    %2964 = vmatpush1.msra.mxu0 0.0
    %2965 = vmatprep.subr.mxu0 0.0
    %2966 = vmatpush1.msra.mxu0 0.0
    %2967 = vmatprep.subr.mxu0 0.0
    %2968 = vmatpush1.msra.mxu0 0.0
    %2969 = vmatprep.subr.mxu0 0.0
    %2970 = vmatpush1.msra.mxu0 0.0
    %2971 = vmatprep.subr.mxu0 0.0
    %2972 = vmatpush1.msra.mxu0 0.0
    %2973 = vmatprep.subr.mxu0 0.0
    %2974 = vmatpush1.msra.mxu0 0.0
    %2975 = vmatprep.subr.mxu0 0.0
    %2976 = vmatpush1.msra.mxu0 0.0
    %2977 = vmatprep.subr.mxu0 0.0
    %2978 = vmatpush1.msra.mxu0 0.0
    %2979 = vmatprep.subr.mxu0 0.0
    %2980 = vmatpush1.msra.mxu0 0.0
    %2981 = vmatprep.subr.mxu0 0.0
    %2982 = vmatpush1.msra.mxu0 0.0
    %2983 = vmatprep.subr.mxu0 0.0
    %2984 = vmatpush1.msra.mxu0 0.0
    %2985 = vmatprep.mubr.f32.mxu0 0.0
    %2986 = vmatmul.mubr.f32.gmra.mrb[0].mxu0 %v2907
    %v2987 = vpop.f32.mrb[0].mxu0
    %v2988 = vadd.f32 %v2905, %v2987
    %v2989 = vpop.f32.mrb[0].mxu0
    %2990 = vmatprep.mubr.f32.mxu0 0.0
    %2991 = vmatmul.mubr.f32.gmra.mrb[0].mxu0 %v2910
    %v2992 = vpop.f32.mrb[0].mxu0
    %v2993 = vadd.f32 %v2905, %v2992
    %v2994 = vpop.f32.mrb[0].mxu0
    %2995 = vmatprep.mubr.f32.mxu0 0.0
    %2996 = vmatmul.mubr.f32.gmra.mrb[0].mxu0 %v2913
    %v2997 = vpop.f32.mrb[0].mxu0
    %v2998 = vadd.f32 %v2905, %v2997
    %v2999 = vpop.f32.mrb[0].mxu0
    %3000 = vmatprep.mubr.f32.mxu0 0.0
    %3001 = vmatmul.mubr.f32.gmra.mrb[0].mxu0 %v2916
    %v3002 = vpop.f32.mrb[0].mxu0
    %v3003 = vadd.f32 %v2905, %v3002
    %v3004 = vpop.f32.mrb[0].mxu0
    %3005 = vmatprep.mubr.f32.mxu0 0.0
    %3006 = vmatmul.mubr.f32.gmra.mrb[0].mxu0 %v2919
    %v3007 = vpop.f32.mrb[0].mxu0
    %v3008 = vadd.f32 %v2905, %v3007
    %v3009 = vpop.f32.mrb[0].mxu0
    %3010 = vdwg.mxu0
    %v3011 = vmul.f32 %v2988, %v2988
    %v3012 = vmul.f32 %v2993, %v2993
    %v3013 = vmul.f32 %v2998, %v2998
    %v3014 = vmul.f32 %v3003, %v3003
    %v3015 = vmul.f32 %v3008, %v3008
    %v3016 = vmul.f32 %v2988, %v3011
    %v3017 = vmul.f32 %v2993, %v3012
    %v3018 = vmul.f32 %v2998, %v3013
    %v3019 = vmul.f32 %v3003, %v3014
    %v3020 = vmul.f32 %v3008, %v3015
    %v3021 = vmul.f32 %v3016, 0.044715
    %v3022 = vmul.f32 %v3017, 0.044715
    %v3023 = vmul.f32 %v3018, 0.044715
    %v3024 = vmul.f32 %v3019, 0.044715
    %v3025 = vmul.f32 %v3020, 0.044715
    %v3026 = vadd.f32 %v2988, %v3021
    %v3027 = vadd.f32 %v2993, %v3022
    %v3028 = vadd.f32 %v2998, %v3023
    %v3029 = vadd.f32 %v3003, %v3024
    %v3030 = vadd.f32 %v3008, %v3025
    %v3031 = vmul.f32 %v3026, 0.7978846
    %v3032 = vmul.f32 %v3027, 0.7978846
    %v3033 = vmul.f32 %v3028, 0.7978846
    %v3034 = vmul.f32 %v3029, 0.7978846
    %v3035 = vmul.f32 %v3030, 0.7978846
    %v3036 = vtanh.pop %v3031
    %v3037 = vtanh.pop %v3032
    %v3038 = vtanh.pop %v3033
    %v3039 = vtanh.pop %v3034
    %v3040 = vtanh.pop %v3035
    %v3041 = vadd.f32 %v3036, 1.0
    %v3042 = vadd.f32 %v3037, 1.0
    %v3043 = vadd.f32 %v3038, 1.0
    %v3044 = vadd.f32 %v3039, 1.0
    %v3045 = vadd.f32 %v3040, 1.0
    %v3046 = vmul.f32 %v3041, 0.5
    %v3047 = vmul.f32 %v3042, 0.5
    %v3048 = vmul.f32 %v3043, 0.5
    %v3049 = vmul.f32 %v3044, 0.5
    %v3050 = vmul.f32 %v3045, 0.5
    %v3051 = vmul.f32 %v2988, %v3046
    %v3052 = vmul.f32 %v2993, %v3047
    %v3053 = vmul.f32 %v2998, %v3048
    %v3054 = vmul.f32 %v3003, %v3049
    %v3055 = vmul.f32 %v3008, %v3050
    %v3056 = vld [vmem:[%s4 + $0x80] sm:$0xff]
    %v3057 = vld [vmem:[%s4 + $0x88] sm:$0xff]
    %v3058 = vld [vmem:[%s4 + $0x90] sm:$0xff]
    %v3059 = vld [vmem:[%s4 + $0x98] sm:$0xff]
    %v3060 = vld [vmem:[%s4 + $0xa0] sm:$0xff]
    %v3061 = vld [vmem:[%s4 + $0xa8] sm:$0xff]
    %v3062 = vld [vmem:[%s4 + $0xb0] sm:$0xff]
    %v3063 = vld [vmem:[%s4 + $0xb8] sm:$0xff]
    %v3064 = vld [vmem:[%s4 + $0xc0] sm:$0xff]
    %v3065 = vld [vmem:[%s4 + $0xc8] sm:$0xff]
    %v3066 = vld [vmem:[%s4 + $0xd0] sm:$0xff]
    %v3067 = vld [vmem:[%s4 + $0xd8] sm:$0xff]
    %v3068 = vld [vmem:[%s4 + $0xe0] sm:$0xff]
    %v3069 = vld [vmem:[%s4 + $0xe8] sm:$0xff]
    %v3070 = vld [vmem:[%s4 + $0xf0] sm:$0xff]
    %v3071 = vld [vmem:[%s4 + $0xf8] sm:$0xff]
    %3072 = vmatprep.subr.mxu0 0.0
    %3073 = vmatpush1.msra.mxu0 %v3056
    %3074 = vmatprep.subr.mxu0 0.0
    %3075 = vmatpush1.msra.mxu0 %v3057
    %3076 = vmatprep.subr.mxu0 0.0
    %3077 = vmatpush1.msra.mxu0 %v3058
    %3078 = vmatprep.subr.mxu0 0.0
    %3079 = vmatpush1.msra.mxu0 %v3059
    %3080 = vmatprep.subr.mxu0 0.0
    %3081 = vmatpush1.msra.mxu0 %v3060
    %3082 = vmatprep.subr.mxu0 0.0
    %3083 = vmatpush1.msra.mxu0 %v3061
    %3084 = vmatprep.subr.mxu0 0.0
    %3085 = vmatpush1.msra.mxu0 %v3062
    %3086 = vmatprep.subr.mxu0 0.0
    %3087 = vmatpush1.msra.mxu0 %v3063
    %3088 = vmatprep.subr.mxu0 0.0
    %3089 = vmatpush1.msra.mxu0 %v3064
    %3090 = vmatprep.subr.mxu0 0.0
    %3091 = vmatpush1.msra.mxu0 %v3065
    %3092 = vmatprep.subr.mxu0 0.0
    %3093 = vmatpush1.msra.mxu0 %v3066
    %3094 = vmatprep.subr.mxu0 0.0
    %3095 = vmatpush1.msra.mxu0 %v3067
    %3096 = vmatprep.subr.mxu0 0.0
    %3097 = vmatpush1.msra.mxu0 %v3068
    %3098 = vmatprep.subr.mxu0 0.0
    %3099 = vmatpush1.msra.mxu0 %v3069
    %3100 = vmatprep.subr.mxu0 0.0
    %3101 = vmatpush1.msra.mxu0 %v3070
    %3102 = vmatprep.subr.mxu0 0.0
    %3103 = vmatpush1.msra.mxu0 %v3071
    %3104 = vmatprep.subr.mxu0 0.0
    %3105 = vmatpush1.msra.mxu0 0.0
    %3106 = vmatprep.subr.mxu0 0.0
    %3107 = vmatpush1.msra.mxu0 0.0
    %3108 = vmatprep.subr.mxu0 0.0
    %3109 = vmatpush1.msra.mxu0 0.0
    %3110 = vmatprep.subr.mxu0 0.0
    %3111 = vmatpush1.msra.mxu0 0.0
    %3112 = vmatprep.subr.mxu0 0.0
    %3113 = vmatpush1.msra.mxu0 0.0
    %3114 = vmatprep.subr.mxu0 0.0
    %3115 = vmatpush1.msra.mxu0 0.0
    %3116 = vmatprep.subr.mxu0 0.0
    %3117 = vmatpush1.msra.mxu0 0.0
    %3118 = vmatprep.subr.mxu0 0.0
    %3119 = vmatpush1.msra.mxu0 0.0
    %3120 = vmatprep.subr.mxu0 0.0
    %3121 = vmatpush1.msra.mxu0 0.0
    %3122 = vmatprep.subr.mxu0 0.0
    %3123 = vmatpush1.msra.mxu0 0.0
    %3124 = vmatprep.subr.mxu0 0.0
    %3125 = vmatpush1.msra.mxu0 0.0
    %3126 = vmatprep.subr.mxu0 0.0
    %3127 = vmatpush1.msra.mxu0 0.0
    %3128 = vmatprep.subr.mxu0 0.0
    %3129 = vmatpush1.msra.mxu0 0.0
    %3130 = vmatprep.subr.mxu0 0.0
    %3131 = vmatpush1.msra.mxu0 0.0
    %3132 = vmatprep.subr.mxu0 0.0
    %3133 = vmatpush1.msra.mxu0 0.0
    %3134 = vmatprep.subr.mxu0 0.0
    %3135 = vmatpush1.msra.mxu0 0.0
    %3136 = vmatprep.mubr.f32.mxu0 0.0
    %3137 = vmatmul.mubr.f32.gmra.mrb[0].mxu0 %v3051
    %v3138 = vpop.f32.mrb[0].mxu0
    %v3139 = vadd.f32 0.0, %v3138
    %v3140 = vpop.f32.mrb[0].mxu0
    %3141 = vmatprep.mubr.f32.mxu0 0.0
    %3142 = vmatmul.mubr.f32.gmra.mrb[0].mxu0 %v3052
    %v3143 = vpop.f32.mrb[0].mxu0
    %v3144 = vadd.f32 0.0, %v3143
    %v3145 = vpop.f32.mrb[0].mxu0
    %3146 = vmatprep.mubr.f32.mxu0 0.0
    %3147 = vmatmul.mubr.f32.gmra.mrb[0].mxu0 %v3053
    %v3148 = vpop.f32.mrb[0].mxu0
    %v3149 = vadd.f32 0.0, %v3148
    %v3150 = vpop.f32.mrb[0].mxu0
    %3151 = vmatprep.mubr.f32.mxu0 0.0
    %3152 = vmatmul.mubr.f32.gmra.mrb[0].mxu0 %v3054
    %v3153 = vpop.f32.mrb[0].mxu0
    %v3154 = vadd.f32 0.0, %v3153
    %v3155 = vpop.f32.mrb[0].mxu0
    %3156 = vmatprep.mubr.f32.mxu0 0.0
    %3157 = vmatmul.mubr.f32.gmra.mrb[0].mxu0 %v3055
    %v3158 = vpop.f32.mrb[0].mxu0
    %v3159 = vadd.f32 0.0, %v3158
    %v3160 = vpop.f32.mrb[0].mxu0
    %3161 = vdwg.mxu0
    %v3162 = vadd.f32 %v2815, %v3139
    %v3163 = vadd.f32 %v2816, %v3144
    %v3164 = vadd.f32 %v2817, %v3149
    %v3165 = vadd.f32 %v2818, %v3154
    %v3166 = vadd.f32 %v2819, %v3159
    %v3167 = vld [vmem:[%s2 + $0x1f] ss:$0 sm:$0xff]
    %v3168 = vadd.f32 %v3162, %v3167
    %v3169 = vadd.f32 %v3163, %v3167
    %v3170 = vadd.f32 %v3164, %v3167
    %v3171 = vadd.f32 %v3165, %v3167
    %v3172 = vadd.f32 %v3166, %v3167
    %v3173 = vld [vmem:[%s2 + $0x30] ss:$0 sm:$0xff]
    %v3174 = vld [vmem:[%s2 + $0x31] ss:$0 sm:$0xff]
    %v3175 = vsel %vm47, %v3168, 0.0
    %3176 = vadd.xlane.f32.xlu0 %v3175
    %v3177 = vpop.xlane.xlu0 %3176
    %v3178 = vsel %vm47, %v3169, 0.0
    %3179 = vadd.xlane.f32.xlu0 %v3178
    %v3180 = vpop.xlane.xlu0 %3179
    %v3181 = vsel %vm47, %v3170, 0.0
    %3182 = vadd.xlane.f32.xlu0 %v3181
    %v3183 = vpop.xlane.xlu0 %3182
    %v3184 = vsel %vm47, %v3171, 0.0
    %3185 = vadd.xlane.f32.xlu0 %v3184
    %v3186 = vpop.xlane.xlu0 %3185
    %v3187 = vsel %vm47, %v3172, 0.0
    %3188 = vadd.xlane.f32.xlu0 %v3187
    %v3189 = vpop.xlane.xlu0 %3188
    %v3190 = vmul.f32 %v3177, %v192
    %v3191 = vmul.f32 %v3180, %v192
    %v3192 = vmul.f32 %v3183, %v192
    %v3193 = vmul.f32 %v3186, %v192
    %v3194 = vmul.f32 %v3189, %v192
    %v3195 = vsub.f32 %v3168, %v3190
    %v3196 = vsub.f32 %v3169, %v3191
    %v3197 = vsub.f32 %v3170, %v3192
    %v3198 = vsub.f32 %v3171, %v3193
    %v3199 = vsub.f32 %v3172, %v3194
    %v3200 = vmul.f32 %v3195, %v3195
    %v3201 = vmul.f32 %v3196, %v3196
    %v3202 = vmul.f32 %v3197, %v3197
    %v3203 = vmul.f32 %v3198, %v3198
    %v3204 = vmul.f32 %v3199, %v3199
    %v3205 = vsel %vm47, %v3200, 0.0
    %3206 = vadd.xlane.f32.xlu0 %v3205
    %v3207 = vpop.xlane.xlu0 %3206
    %v3208 = vsel %vm47, %v3201, 0.0
    %3209 = vadd.xlane.f32.xlu0 %v3208
    %v3210 = vpop.xlane.xlu0 %3209
    %v3211 = vsel %vm47, %v3202, 0.0
    %3212 = vadd.xlane.f32.xlu0 %v3211
    %v3213 = vpop.xlane.xlu0 %3212
    %v3214 = vsel %vm47, %v3203, 0.0
    %3215 = vadd.xlane.f32.xlu0 %v3214
    %v3216 = vpop.xlane.xlu0 %3215
    %v3217 = vsel %vm47, %v3204, 0.0
    %3218 = vadd.xlane.f32.xlu0 %v3217
    %v3219 = vpop.xlane.xlu0 %3218
    %v3220 = vmul.f32 %v3207, %v192
    %v3221 = vmul.f32 %v3210, %v192
    %v3222 = vmul.f32 %v3213, %v192
    %v3223 = vmul.f32 %v3216, %v192
    %v3224 = vmul.f32 %v3219, %v192
    %v3225 = vadd.f32 %v3220, 1e-05
    %v3226 = vadd.f32 %v3221, 1e-05
    %v3227 = vadd.f32 %v3222, 1e-05
    %v3228 = vadd.f32 %v3223, 1e-05
    %v3229 = vadd.f32 %v3224, 1e-05
    %v3230 = vrsqrt.pop %v3225
    %v3231 = vrsqrt.pop %v3226
    %v3232 = vrsqrt.pop %v3227
    %v3233 = vrsqrt.pop %v3228
    %v3234 = vrsqrt.pop %v3229
    %v3235 = vmul.f32 %v3195, %v3230
    %v3236 = vmul.f32 %v3196, %v3231
    %v3237 = vmul.f32 %v3197, %v3232
    %v3238 = vmul.f32 %v3198, %v3233
    %v3239 = vmul.f32 %v3199, %v3234
    %v3240 = vmul.f32 %v3235, %v3173
    %v3241 = vmul.f32 %v3236, %v3173
    %v3242 = vmul.f32 %v3237, %v3173
    %v3243 = vmul.f32 %v3238, %v3173
    %v3244 = vmul.f32 %v3239, %v3173
    %v3245 = vadd.f32 %v3240, %v3174
    %v3246 = vadd.f32 %v3241, %v3174
    %v3247 = vadd.f32 %v3242, %v3174
    %v3248 = vadd.f32 %v3243, %v3174
    %v3249 = vadd.f32 %v3244, %v3174
    %v3250 = vsel %vm47, %v3245, 0.0
    %3251 = vadd.xlane.f32.xlu0 %v3250
    %v3252 = vpop.xlane.xlu0 %3251
    %v3253 = vsel %vm47, %v3246, 0.0
    %3254 = vadd.xlane.f32.xlu0 %v3253
    %v3255 = vpop.xlane.xlu0 %3254
    %v3256 = vsel %vm47, %v3247, 0.0
    %3257 = vadd.xlane.f32.xlu0 %v3256
    %v3258 = vpop.xlane.xlu0 %3257
    %v3259 = vsel %vm47, %v3248, 0.0
    %3260 = vadd.xlane.f32.xlu0 %v3259
    %v3261 = vpop.xlane.xlu0 %3260
    %v3262 = vsel %vm47, %v3249, 0.0
    %3263 = vadd.xlane.f32.xlu0 %v3262
    %v3264 = vpop.xlane.xlu0 %3263
    %v3265 = vmul.f32 %v3245, %v3245
    %v3266 = vmul.f32 %v3246, %v3246
    %v3267 = vmul.f32 %v3247, %v3247
    %v3268 = vmul.f32 %v3248, %v3248
    %v3269 = vmul.f32 %v3249, %v3249
    %v3270 = vsel %vm47, %v3265, 0.0
    %3271 = vadd.xlane.f32.xlu0 %v3270
    %v3272 = vpop.xlane.xlu0 %3271
    %v3273 = vsel %vm47, %v3266, 0.0
    %3274 = vadd.xlane.f32.xlu0 %v3273
    %v3275 = vpop.xlane.xlu0 %3274
    %v3276 = vsel %vm47, %v3267, 0.0
    %3277 = vadd.xlane.f32.xlu0 %v3276
    %v3278 = vpop.xlane.xlu0 %3277
    %v3279 = vsel %vm47, %v3268, 0.0
    %3280 = vadd.xlane.f32.xlu0 %v3279
    %v3281 = vpop.xlane.xlu0 %3280
    %v3282 = vsel %vm47, %v3269, 0.0
    %3283 = vadd.xlane.f32.xlu0 %v3282
    %v3284 = vpop.xlane.xlu0 %3283
    %vm3285 = vcmask 7168
    %v3286 = vsel %vm3285, %v3252, %v3272
    %v3287 = vsel %vm3285, %v3255, %v3275
    %v3288 = vsel %vm3285, %v3258, %v3278
    %v3289 = vsel %vm3285, %v3261, %v3281
    %v3290 = vsel %vm3285, %v3264, %v3284
    %3296 = vrot.lane.b32.xlu0 %v24, 24
    %v3297 = vpop.permute.xlu0 %3296
    %3298 = vrot.lane.b32.xlu0 %v29, 24
    %v3299 = vpop.permute.xlu0 %3298
    %3300 = vrot.lane.b32.xlu0 %v25, 24
    %v3301 = vpop.permute.xlu0 %3300
    %3302 = vrot.lane.b32.xlu0 %v30, 24
    %v3303 = vpop.permute.xlu0 %3302
    %3304 = vrot.lane.b32.xlu0 %v26, 24
    %v3305 = vpop.permute.xlu0 %3304
    %3306 = vrot.lane.b32.xlu0 %v31, 24
    %v3307 = vpop.permute.xlu0 %3306
    %3308 = vrot.lane.b32.xlu0 %v27, 24
    %v3309 = vpop.permute.xlu0 %3308
    %3310 = vrot.lane.b32.xlu0 %v32, 24
    %v3311 = vpop.permute.xlu0 %3310
    %3312 = vrot.lane.b32.xlu0 %v28, 24
    %v3313 = vpop.permute.xlu0 %3312
    %3314 = vrot.lane.b32.xlu0 %v33, 24
    %v3315 = vpop.permute.xlu0 %3314
    %vm3316 = vcmask 195584
    %v3317 = vsel %vm3316, %v3297, %v3299
    %v3318 = vsel %vm3316, %v3301, %v3303
    %v3319 = vsel %vm3316, %v3305, %v3307
    %v3320 = vsel %vm3316, %v3309, %v3311
    %v3321 = vsel %vm3316, %v3313, %v3315
    %v3322 = vsel %vm722, %v3317, 0
    %v3324 = vsel %vm722, %v3318, 0
    %v3326 = vsel %vm722, %v3319, 0
    %v3328 = vsel %vm722, %v3320, 0
    %v3330 = vsel %vm722, %v3321, 0
    %3332 = vmatprep.subr.mxu0 0.0
    %3333 = vmatpush1.msra.mxu0 %v3286
    %3334 = vmatprep.subr.mxu0 0.0
    %3335 = vmatpush1.msra.mxu0 %v3287
    %3336 = vmatprep.subr.mxu0 0.0
    %3337 = vmatpush1.msra.mxu0 %v3288
    %3338 = vmatprep.subr.mxu0 0.0
    %3339 = vmatpush1.msra.mxu0 %v3289
    %3340 = vmatprep.subr.mxu0 0.0
    %3341 = vmatpush1.msra.mxu0 %v3290
    %3342 = vmatprep.subr.mxu0 0.0
    %3343 = vmatpush1.msra.mxu0 0.0
    %3344 = vmatprep.subr.mxu0 0.0
    %3345 = vmatpush1.msra.mxu0 0.0
    %3346 = vmatprep.subr.mxu0 0.0
    %3347 = vmatpush1.msra.mxu0 0.0
    %3348 = vmatprep.subr.mxu0 0.0
    %3349 = vmatpush1.msra.mxu0 0.0
    %3350 = vmatprep.subr.mxu0 0.0
    %3351 = vmatpush1.msra.mxu0 0.0
    %3352 = vmatprep.subr.mxu0 0.0
    %3353 = vmatpush1.msra.mxu0 0.0
    %3354 = vmatprep.subr.mxu0 0.0
    %3355 = vmatpush1.msra.mxu0 0.0
    %3356 = vmatprep.subr.mxu0 0.0
    %3357 = vmatpush1.msra.mxu0 0.0
    %3358 = vmatprep.subr.mxu0 0.0
    %3359 = vmatpush1.msra.mxu0 0.0
    %3360 = vmatprep.subr.mxu0 0.0
    %3361 = vmatpush1.msra.mxu0 0.0
    %3362 = vmatprep.subr.mxu0 0.0
    %3363 = vmatpush1.msra.mxu0 0.0
    %3364 = vmatprep.subr.mxu0 0.0
    %3365 = vmatpush1.msra.mxu0 0.0
    %3366 = vmatprep.subr.mxu0 0.0
    %3367 = vmatpush1.msra.mxu0 0.0
    %3368 = vmatprep.subr.mxu0 0.0
    %3369 = vmatpush1.msra.mxu0 0.0
    %3370 = vmatprep.subr.mxu0 0.0
    %3371 = vmatpush1.msra.mxu0 0.0
    %3372 = vmatprep.subr.mxu0 0.0
    %3373 = vmatpush1.msra.mxu0 0.0
    %3374 = vmatprep.subr.mxu0 0.0
    %3375 = vmatpush1.msra.mxu0 0.0
    %3376 = vmatprep.subr.mxu0 0.0
    %3377 = vmatpush1.msra.mxu0 0.0
    %3378 = vmatprep.subr.mxu0 0.0
    %3379 = vmatpush1.msra.mxu0 0.0
    %3380 = vmatprep.subr.mxu0 0.0
    %3381 = vmatpush1.msra.mxu0 0.0
    %3382 = vmatprep.subr.mxu0 0.0
    %3383 = vmatpush1.msra.mxu0 0.0
    %3384 = vmatprep.subr.mxu0 0.0
    %3385 = vmatpush1.msra.mxu0 0.0
    %3386 = vmatprep.subr.mxu0 0.0
    %3387 = vmatpush1.msra.mxu0 0.0
    %3388 = vmatprep.subr.mxu0 0.0
    %3389 = vmatpush1.msra.mxu0 0.0
    %3390 = vmatprep.subr.mxu0 0.0
    %3391 = vmatpush1.msra.mxu0 0.0
    %3392 = vmatprep.subr.mxu0 0.0
    %3393 = vmatpush1.msra.mxu0 0.0
    %3394 = vmatprep.subr.mxu0 0.0
    %3395 = vmatpush1.msra.mxu0 0.0
    %3396 = vmatprep.mubr.f32.mxu0 0.0
    %3397 = vmatmul.mubr.f32.gmra.mrb[0].mxu0 %v3322
    %v3398 = vpop.f32.mrb[0].mxu0
    %v3399 = vadd.f32 0.0, %v3398
    %v3400 = vpop.f32.mrb[0].mxu0
    %3401 = vmatprep.mubr.f32.mxu0 0.0
    %3402 = vmatmul.mubr.f32.gmra.mrb[0].mxu0 %v3324
    %v3403 = vpop.f32.mrb[0].mxu0
    %v3404 = vadd.f32 0.0, %v3403
    %v3405 = vpop.f32.mrb[0].mxu0
    %3406 = vmatprep.mubr.f32.mxu0 0.0
    %3407 = vmatmul.mubr.f32.gmra.mrb[0].mxu0 %v3326
    %v3408 = vpop.f32.mrb[0].mxu0
    %v3409 = vadd.f32 0.0, %v3408
    %v3410 = vpop.f32.mrb[0].mxu0
    %3411 = vmatprep.mubr.f32.mxu0 0.0
    %3412 = vmatmul.mubr.f32.gmra.mrb[0].mxu0 %v3328
    %v3413 = vpop.f32.mrb[0].mxu0
    %v3414 = vadd.f32 0.0, %v3413
    %v3415 = vpop.f32.mrb[0].mxu0
    %3416 = vmatprep.mubr.f32.mxu0 0.0
    %3417 = vmatmul.mubr.f32.gmra.mrb[0].mxu0 %v3330
    %v3418 = vpop.f32.mrb[0].mxu0
    %v3419 = vadd.f32 0.0, %v3418
    %v3420 = vpop.f32.mrb[0].mxu0
    %3421 = vdwg.mxu0
    %v3422 = vmul.f32 %v3399, %v3399
    %v3423 = vmul.f32 %v3404, %v3404
    %v3424 = vmul.f32 %v3409, %v3409
    %v3425 = vmul.f32 %v3414, %v3414
    %v3426 = vmul.f32 %v3419, %v3419
    %3432 = vrot.lane.b32.xlu0 %v3422, 1
    %v3433 = vpop.permute.xlu0 %3432
    %3434 = vrot.lane.b32.xlu0 %v3423, 1
    %v3435 = vpop.permute.xlu0 %3434
    %3436 = vrot.lane.b32.xlu0 %v3424, 1
    %v3437 = vpop.permute.xlu0 %3436
    %3438 = vrot.lane.b32.xlu0 %v3425, 1
    %v3439 = vpop.permute.xlu0 %3438
    %3440 = vrot.lane.b32.xlu0 %v3426, 1
    %v3441 = vpop.permute.xlu0 %3440
    %v3447 = vsub.f32 %v3399, %v3433
    %v3448 = vsub.f32 %v3404, %v3435
    %v3449 = vsub.f32 %v3409, %v3437
    %v3450 = vsub.f32 %v3414, %v3439
    %v3451 = vsub.f32 %v3419, %v3441
    %v3452 = vmax.f32 %v3447, 0.0
    %v3453 = vmax.f32 %v3448, 0.0
    %v3454 = vmax.f32 %v3449, 0.0
    %v3455 = vmax.f32 %v3450, 0.0
    %v3456 = vmax.f32 %v3451, 0.0
    %3458 = vset.pattern.permute.xlu0 0
    %3459 = vperm.xlu0 %3458, %v3399
    %v3460 = vpop.permute.xlu0 %3459
    %3463 = vset.pattern.permute.xlu0 0
    %3464 = vperm.xlu0 %3463, %v3404
    %v3465 = vpop.permute.xlu0 %3464
    %3468 = vset.pattern.permute.xlu0 0
    %3469 = vperm.xlu0 %3468, %v3409
    %v3470 = vpop.permute.xlu0 %3469
    %3473 = vset.pattern.permute.xlu0 0
    %3474 = vperm.xlu0 %3473, %v3414
    %v3475 = vpop.permute.xlu0 %3474
    %3478 = vset.pattern.permute.xlu0 0
    %3479 = vperm.xlu0 %3478, %v3419
    %v3480 = vpop.permute.xlu0 %3479
    %v3482 = vsub.f32 %v3245, %v3460
    %v3483 = vsub.f32 %v3246, %v3465
    %v3484 = vsub.f32 %v3247, %v3470
    %v3485 = vsub.f32 %v3248, %v3475
    %v3486 = vsub.f32 %v3249, %v3480
    %v3487 = vadd.f32 %v3452, 1e-05
    %v3488 = vadd.f32 %v3453, 1e-05
    %v3489 = vadd.f32 %v3454, 1e-05
    %v3490 = vadd.f32 %v3455, 1e-05
    %v3491 = vadd.f32 %v3456, 1e-05
    %v3492 = vrsqrt.pop %v3487
    %v3493 = vrsqrt.pop %v3488
    %v3494 = vrsqrt.pop %v3489
    %v3495 = vrsqrt.pop %v3490
    %v3496 = vrsqrt.pop %v3491
    %3498 = vset.pattern.permute.xlu0 1
    %3499 = vperm.xlu0 %3498, %v3492
    %v3500 = vpop.permute.xlu0 %3499
    %3503 = vset.pattern.permute.xlu0 1
    %3504 = vperm.xlu0 %3503, %v3493
    %v3505 = vpop.permute.xlu0 %3504
    %3508 = vset.pattern.permute.xlu0 1
    %3509 = vperm.xlu0 %3508, %v3494
    %v3510 = vpop.permute.xlu0 %3509
    %3513 = vset.pattern.permute.xlu0 1
    %3514 = vperm.xlu0 %3513, %v3495
    %v3515 = vpop.permute.xlu0 %3514
    %3518 = vset.pattern.permute.xlu0 1
    %3519 = vperm.xlu0 %3518, %v3496
    %v3520 = vpop.permute.xlu0 %3519
    %v3522 = vmul.f32 %v3482, %v3500
    %v3523 = vmul.f32 %v3483, %v3505
    %v3524 = vmul.f32 %v3484, %v3510
    %v3525 = vmul.f32 %v3485, %v3515
    %v3526 = vmul.f32 %v3486, %v3520
    %3527 = vset.pattern.permute.xlu0 16
    %3528 = vperm.xlu0 %3527, %v29
    %v3529 = vpop.permute.xlu0 %3528
    %3531 = vset.pattern.permute.xlu0 16
    %3532 = vperm.xlu0 %3531, %v30
    %v3533 = vpop.permute.xlu0 %3532
    %3535 = vset.pattern.permute.xlu0 16
    %3536 = vperm.xlu0 %3535, %v31
    %v3537 = vpop.permute.xlu0 %3536
    %3539 = vset.pattern.permute.xlu0 16
    %3540 = vperm.xlu0 %3539, %v32
    %v3541 = vpop.permute.xlu0 %3540
    %3543 = vset.pattern.permute.xlu0 16
    %3544 = vperm.xlu0 %3543, %v33
    %v3545 = vpop.permute.xlu0 %3544
    %v3547 = vmul.f32 %v3522, %v3529
    %v3548 = vmul.f32 %v3523, %v3533
    %v3549 = vmul.f32 %v3524, %v3537
    %v3550 = vmul.f32 %v3525, %v3541
    %v3551 = vmul.f32 %v3526, %v3545
    %3552 = vset.pattern.permute.xlu0 17
    %3553 = vperm.xlu0 %3552, %v29
    %v3554 = vpop.permute.xlu0 %3553
    %3556 = vset.pattern.permute.xlu0 17
    %3557 = vperm.xlu0 %3556, %v30
    %v3558 = vpop.permute.xlu0 %3557
    %3560 = vset.pattern.permute.xlu0 17
    %3561 = vperm.xlu0 %3560, %v31
    %v3562 = vpop.permute.xlu0 %3561
    %3564 = vset.pattern.permute.xlu0 17
    %3565 = vperm.xlu0 %3564, %v32
    %v3566 = vpop.permute.xlu0 %3565
    %3568 = vset.pattern.permute.xlu0 17
    %3569 = vperm.xlu0 %3568, %v33
    %v3570 = vpop.permute.xlu0 %3569
    %v3572 = vadd.f32 %v3547, %v3554
    %v3573 = vadd.f32 %v3548, %v3558
    %v3574 = vadd.f32 %v3549, %v3562
    %v3575 = vadd.f32 %v3550, %v3566
    %v3576 = vadd.f32 %v3551, %v3570
    %v3577 = vld [vmem:[%s2 + $0x30] sm:$0x60]
    %v3579 = vrot.slane %v3577, 5
    %v3580 = vsel %vm722, %v3579, 0
    %3582 = vmatprep.subr.mxu0 0.0
    %3583 = vmatpush1.msra.mxu0 %v3572
    %3584 = vmatprep.subr.mxu0 0.0
    %3585 = vmatpush1.msra.mxu0 %v3573
    %3586 = vmatprep.subr.mxu0 0.0
    %3587 = vmatpush1.msra.mxu0 %v3574
    %3588 = vmatprep.subr.mxu0 0.0
    %3589 = vmatpush1.msra.mxu0 %v3575
    %3590 = vmatprep.subr.mxu0 0.0
    %3591 = vmatpush1.msra.mxu0 %v3576
    %3592 = vmatprep.subr.mxu0 0.0
    %3593 = vmatpush1.msra.mxu0 0.0
    %3594 = vmatprep.subr.mxu0 0.0
    %3595 = vmatpush1.msra.mxu0 0.0
    %3596 = vmatprep.subr.mxu0 0.0
    %3597 = vmatpush1.msra.mxu0 0.0
    %3598 = vmatprep.subr.mxu0 0.0
    %3599 = vmatpush1.msra.mxu0 0.0
    %3600 = vmatprep.subr.mxu0 0.0
    %3601 = vmatpush1.msra.mxu0 0.0
    %3602 = vmatprep.subr.mxu0 0.0
    %3603 = vmatpush1.msra.mxu0 0.0
    %3604 = vmatprep.subr.mxu0 0.0
    %3605 = vmatpush1.msra.mxu0 0.0
    %3606 = vmatprep.subr.mxu0 0.0
    %3607 = vmatpush1.msra.mxu0 0.0
    %3608 = vmatprep.subr.mxu0 0.0
    %3609 = vmatpush1.msra.mxu0 0.0
    %3610 = vmatprep.subr.mxu0 0.0
    %3611 = vmatpush1.msra.mxu0 0.0
    %3612 = vmatprep.subr.mxu0 0.0
    %3613 = vmatpush1.msra.mxu0 0.0
    %3614 = vmatprep.subr.mxu0 0.0
    %3615 = vmatpush1.msra.mxu0 0.0
    %3616 = vmatprep.subr.mxu0 0.0
    %3617 = vmatpush1.msra.mxu0 0.0
    %3618 = vmatprep.subr.mxu0 0.0
    %3619 = vmatpush1.msra.mxu0 0.0
    %3620 = vmatprep.subr.mxu0 0.0
    %3621 = vmatpush1.msra.mxu0 0.0
    %3622 = vmatprep.subr.mxu0 0.0
    %3623 = vmatpush1.msra.mxu0 0.0
    %3624 = vmatprep.subr.mxu0 0.0
    %3625 = vmatpush1.msra.mxu0 0.0
    %3626 = vmatprep.subr.mxu0 0.0
    %3627 = vmatpush1.msra.mxu0 0.0
    %3628 = vmatprep.subr.mxu0 0.0
    %3629 = vmatpush1.msra.mxu0 0.0
    %3630 = vmatprep.subr.mxu0 0.0
    %3631 = vmatpush1.msra.mxu0 0.0
    %3632 = vmatprep.subr.mxu0 0.0
    %3633 = vmatpush1.msra.mxu0 0.0
    %3634 = vmatprep.subr.mxu0 0.0
    %3635 = vmatpush1.msra.mxu0 0.0
    %3636 = vmatprep.subr.mxu0 0.0
    %3637 = vmatpush1.msra.mxu0 0.0
    %3638 = vmatprep.subr.mxu0 0.0
    %3639 = vmatpush1.msra.mxu0 0.0
    %3640 = vmatprep.subr.mxu0 0.0
    %3641 = vmatpush1.msra.mxu0 0.0
    %3642 = vmatprep.subr.mxu0 0.0
    %3643 = vmatpush1.msra.mxu0 0.0
    %3644 = vmatprep.subr.mxu0 0.0
    %3645 = vmatpush1.msra.mxu0 0.0
    %3646 = vmatprep.mubr.f32.mxu0 0.0
    %3647 = vmatmul.mubr.f32.gmra.mrb[0].mxu0 %v3580
    %v3648 = vpop.f32.mrb[0].mxu0
    %v3649 = vadd.f32 0.0, %v3648
    %v3650 = vpop.f32.mrb[0].mxu0
    %3651 = vdwg.mxu0
    %v3652 = vld [vmem:[%s3 + $0x48] sm:$0xff]
    %v3653 = vld [vmem:[%s3 + $0x50] sm:$0xff]
    %v3654 = vld [vmem:[%s3 + $0x58] sm:$0xff]
    %v3655 = vld [vmem:[%s3 + $0xa8] sm:$0xff]
    %v3656 = vld [vmem:[%s3 + $0xb0] sm:$0xff]
    %v3657 = vld [vmem:[%s3 + $0xb8] sm:$0xff]
    %v3658 = vld [vmem:[%s3 + $0x108] sm:$0xff]
    %v3659 = vld [vmem:[%s3 + $0x110] sm:$0xff]
    %v3660 = vld [vmem:[%s3 + $0x118] sm:$0xff]
    %v3661 = vld [vmem:[%s3 + $0x168] sm:$0xff]
    %v3662 = vld [vmem:[%s3 + $0x170] sm:$0xff]
    %v3663 = vld [vmem:[%s3 + $0x178] sm:$0xff]
    %v3664 = vld [vmem:[%s3 + $0x1c8] sm:$0xff]
    %v3665 = vld [vmem:[%s3 + $0x1d0] sm:$0xff]
    %v3666 = vld [vmem:[%s3 + $0x1d8] sm:$0xff]
    %v3667 = vld [vmem:[%s3 + $0x228] sm:$0xff]
    %v3668 = vld [vmem:[%s3 + $0x230] sm:$0xff]
    %v3669 = vld [vmem:[%s3 + $0x238] sm:$0xff]
    %v3670 = vld [vmem:[%s3 + $0x288] sm:$0xff]
    %v3671 = vld [vmem:[%s3 + $0x290] sm:$0xff]
    %v3672 = vld [vmem:[%s3 + $0x298] sm:$0xff]
    %v3673 = vld [vmem:[%s3 + $0x2e8] sm:$0xff]
    %v3674 = vld [vmem:[%s3 + $0x2f0] sm:$0xff]
    %v3675 = vld [vmem:[%s3 + $0x2f8] sm:$0xff]
    %s3676 = scalar_lea.vmem %s2, 50
    %v3677 = vld [vmem:[%s3676] ss:$8 sm:$0x7]
    %v3679 = vlaneseq
    %v3680 = vshrl.u32 %v3679, 7
    %v3681 = vsub.s32 0, %v3680
    %v3682 = vrot.slane %v3677, %v3681
    %v3683 = vlaneseq
    %v3684 = vshrl.u32 %v3683, 7
    %v3685 = vsub.s32 1, %v3684
    %v3686 = vrot.slane %v3677, %v3685
    %v3687 = vlaneseq
    %v3688 = vshrl.u32 %v3687, 7
    %v3689 = vsub.s32 2, %v3688
    %v3690 = vrot.slane %v3677, %v3689
    %v3695 = vsel %vm47, %v3649, 0
    %3697 = vmatprep.subr.mxu0 %v3653
    %3698 = vmatpush1.msra.mxu0 %v3652
    %3699 = vmatprep.subr.mxu0 %v3656
    %3700 = vmatpush1.msra.mxu0 %v3655
    %3701 = vmatprep.subr.mxu0 %v3659
    %3702 = vmatpush1.msra.mxu0 %v3658
    %3703 = vmatprep.subr.mxu0 %v3662
    %3704 = vmatpush1.msra.mxu0 %v3661
    %3705 = vmatprep.subr.mxu0 %v3665
    %3706 = vmatpush1.msra.mxu0 %v3664
    %3707 = vmatprep.subr.mxu0 %v3668
    %3708 = vmatpush1.msra.mxu0 %v3667
    %3709 = vmatprep.subr.mxu0 %v3671
    %3710 = vmatpush1.msra.mxu0 %v3670
    %3711 = vmatprep.subr.mxu0 %v3674
    %3712 = vmatpush1.msra.mxu0 %v3673
    %3713 = vmatprep.subr.mxu0 0.0
    %3714 = vmatpush1.msra.mxu0 0.0
    %3715 = vmatprep.subr.mxu0 0.0
    %3716 = vmatpush1.msra.mxu0 0.0
    %3717 = vmatprep.subr.mxu0 0.0
    %3718 = vmatpush1.msra.mxu0 0.0
    %3719 = vmatprep.subr.mxu0 0.0
    %3720 = vmatpush1.msra.mxu0 0.0
    %3721 = vmatprep.subr.mxu0 0.0
    %3722 = vmatpush1.msra.mxu0 0.0
    %3723 = vmatprep.subr.mxu0 0.0
    %3724 = vmatpush1.msra.mxu0 0.0
    %3725 = vmatprep.subr.mxu0 0.0
    %3726 = vmatpush1.msra.mxu0 0.0
    %3727 = vmatprep.subr.mxu0 0.0
    %3728 = vmatpush1.msra.mxu0 0.0
    %3729 = vmatprep.subr.mxu0 0.0
    %3730 = vmatpush1.msra.mxu0 0.0
    %3731 = vmatprep.subr.mxu0 0.0
    %3732 = vmatpush1.msra.mxu0 0.0
    %3733 = vmatprep.subr.mxu0 0.0
    %3734 = vmatpush1.msra.mxu0 0.0
    %3735 = vmatprep.subr.mxu0 0.0
    %3736 = vmatpush1.msra.mxu0 0.0
    %3737 = vmatprep.subr.mxu0 0.0
    %3738 = vmatpush1.msra.mxu0 0.0
    %3739 = vmatprep.subr.mxu0 0.0
    %3740 = vmatpush1.msra.mxu0 0.0
    %3741 = vmatprep.subr.mxu0 0.0
    %3742 = vmatpush1.msra.mxu0 0.0
    %3743 = vmatprep.subr.mxu0 0.0
    %3744 = vmatpush1.msra.mxu0 0.0
    %3745 = vmatprep.subr.mxu0 0.0
    %3746 = vmatpush1.msra.mxu0 0.0
    %3747 = vmatprep.subr.mxu0 0.0
    %3748 = vmatpush1.msra.mxu0 0.0
    %3749 = vmatprep.subr.mxu0 0.0
    %3750 = vmatpush1.msra.mxu0 0.0
    %3751 = vmatprep.subr.mxu0 0.0
    %3752 = vmatpush1.msra.mxu0 0.0
    %3753 = vmatprep.subr.mxu0 0.0
    %3754 = vmatpush1.msra.mxu0 0.0
    %3755 = vmatprep.subr.mxu0 0.0
    %3756 = vmatpush1.msra.mxu0 0.0
    %3757 = vmatprep.subr.mxu0 0.0
    %3758 = vmatpush1.msra.mxu0 0.0
    %3759 = vmatprep.subr.mxu0 0.0
    %3760 = vmatpush1.msra.mxu0 0.0
    %3761 = vmatprep.mubr.f32.mxu0 0.0
    %3762 = vmatmul.mubr.f32.gmra.mrb[0].mxu0 %v3695
    %v3763 = vpop.f32.mrb[0].mxu0
    %v3764 = vadd.f32 %v3682, %v3763
    %v3765 = vpop.f32.mrb[0].mxu0
    %v3766 = vadd.f32 %v3686, %v3765
    %3767 = vdwg.mxu0
    %3768 = vmatprep.subr.mxu0 0.0
    %3769 = vmatpush1.msra.mxu0 %v3654
    %3770 = vmatprep.subr.mxu0 0.0
    %3771 = vmatpush1.msra.mxu0 %v3657
    %3772 = vmatprep.subr.mxu0 0.0
    %3773 = vmatpush1.msra.mxu0 %v3660
    %3774 = vmatprep.subr.mxu0 0.0
    %3775 = vmatpush1.msra.mxu0 %v3663
    %3776 = vmatprep.subr.mxu0 0.0
    %3777 = vmatpush1.msra.mxu0 %v3666
    %3778 = vmatprep.subr.mxu0 0.0
    %3779 = vmatpush1.msra.mxu0 %v3669
    %3780 = vmatprep.subr.mxu0 0.0
    %3781 = vmatpush1.msra.mxu0 %v3672
    %3782 = vmatprep.subr.mxu0 0.0
    %3783 = vmatpush1.msra.mxu0 %v3675
    %3784 = vmatprep.subr.mxu0 0.0
    %3785 = vmatpush1.msra.mxu0 0.0
    %3786 = vmatprep.subr.mxu0 0.0
    %3787 = vmatpush1.msra.mxu0 0.0
    %3788 = vmatprep.subr.mxu0 0.0
    %3789 = vmatpush1.msra.mxu0 0.0
    %3790 = vmatprep.subr.mxu0 0.0
    %3791 = vmatpush1.msra.mxu0 0.0
    %3792 = vmatprep.subr.mxu0 0.0
    %3793 = vmatpush1.msra.mxu0 0.0
    %3794 = vmatprep.subr.mxu0 0.0
    %3795 = vmatpush1.msra.mxu0 0.0
    %3796 = vmatprep.subr.mxu0 0.0
    %3797 = vmatpush1.msra.mxu0 0.0
    %3798 = vmatprep.subr.mxu0 0.0
    %3799 = vmatpush1.msra.mxu0 0.0
    %3800 = vmatprep.subr.mxu0 0.0
    %3801 = vmatpush1.msra.mxu0 0.0
    %3802 = vmatprep.subr.mxu0 0.0
    %3803 = vmatpush1.msra.mxu0 0.0
    %3804 = vmatprep.subr.mxu0 0.0
    %3805 = vmatpush1.msra.mxu0 0.0
    %3806 = vmatprep.subr.mxu0 0.0
    %3807 = vmatpush1.msra.mxu0 0.0
    %3808 = vmatprep.subr.mxu0 0.0
    %3809 = vmatpush1.msra.mxu0 0.0
    %3810 = vmatprep.subr.mxu0 0.0
    %3811 = vmatpush1.msra.mxu0 0.0
    %3812 = vmatprep.subr.mxu0 0.0
    %3813 = vmatpush1.msra.mxu0 0.0
    %3814 = vmatprep.subr.mxu0 0.0
    %3815 = vmatpush1.msra.mxu0 0.0
    %3816 = vmatprep.subr.mxu0 0.0
    %3817 = vmatpush1.msra.mxu0 0.0
    %3818 = vmatprep.subr.mxu0 0.0
    %3819 = vmatpush1.msra.mxu0 0.0
    %3820 = vmatprep.subr.mxu0 0.0
    %3821 = vmatpush1.msra.mxu0 0.0
    %3822 = vmatprep.subr.mxu0 0.0
    %3823 = vmatpush1.msra.mxu0 0.0
    %3824 = vmatprep.subr.mxu0 0.0
    %3825 = vmatpush1.msra.mxu0 0.0
    %3826 = vmatprep.subr.mxu0 0.0
    %3827 = vmatpush1.msra.mxu0 0.0
    %3828 = vmatprep.subr.mxu0 0.0
    %3829 = vmatpush1.msra.mxu0 0.0
    %3830 = vmatprep.subr.mxu0 0.0
    %3831 = vmatpush1.msra.mxu0 0.0
    %3832 = vmatprep.mubr.f32.mxu0 0.0
    %3833 = vmatmul.mubr.f32.gmra.mrb[0].mxu0 %v3695
    %v3834 = vpop.f32.mrb[0].mxu0
    %v3835 = vadd.f32 %v3690, %v3834
    %v3836 = vpop.f32.mrb[0].mxu0
    %3837 = vdwg.mxu0
    %v3838 = vmax.f32 %v3764, 0.0
    %v3839 = vmax.f32 %v3766, 0.0
    %v3840 = vmax.f32 %v3835, 0.0
    %v3841 = vld [vmem:[%s5] sm:$0xff]
    %v3842 = vld [vmem:[%s5 + $0x8] sm:$0xff]
    %v3843 = vld [vmem:[%s5 + $0x10] sm:$0xff]
    %v3844 = vld [vmem:[%s5 + $0x18] sm:$0xff]
    %v3845 = vld [vmem:[%s5 + $0x20] sm:$0xff]
    %v3846 = vld [vmem:[%s5 + $0x28] sm:$0xff]
    %v3847 = vld [vmem:[%s5 + $0x30] sm:$0xff]
    %v3848 = vld [vmem:[%s5 + $0x38] sm:$0xff]
    %v3849 = vld [vmem:[%s5 + $0x40] sm:$0xff]
    %v3850 = vld [vmem:[%s5 + $0x48] sm:$0xff]
    %v3851 = vld [vmem:[%s5 + $0x50] sm:$0xff]
    %v3852 = vld [vmem:[%s5 + $0x58] sm:$0xff]
    %v3853 = vld [vmem:[%s5 + $0x60] sm:$0xff]
    %v3854 = vld [vmem:[%s5 + $0x68] sm:$0xff]
    %v3855 = vld [vmem:[%s5 + $0x70] sm:$0xff]
    %v3856 = vld [vmem:[%s5 + $0x78] sm:$0xff]
    %v3857 = vld [vmem:[%s5 + $0x80] sm:$0xff]
    %v3858 = vld [vmem:[%s5 + $0x88] sm:$0xff]
    %v3859 = vld [vmem:[%s5 + $0x90] sm:$0xff]
    %v3860 = vld [vmem:[%s5 + $0x98] sm:$0xff]
    %v3861 = vld [vmem:[%s5 + $0xa0] sm:$0xff]
    %v3862 = vld [vmem:[%s5 + $0xa8] sm:$0xff]
    %v3863 = vld [vmem:[%s5 + $0xb0] sm:$0xff]
    %v3864 = vld [vmem:[%s5 + $0xb8] sm:$0xff]
    %v3865 = vld [vmem:[%s5 + $0xc0] sm:$0xff]
    %v3866 = vld [vmem:[%s5 + $0xc8] sm:$0xff]
    %v3867 = vld [vmem:[%s5 + $0xd0] sm:$0xff]
    %v3868 = vld [vmem:[%s5 + $0xd8] sm:$0xff]
    %v3869 = vld [vmem:[%s5 + $0xe0] sm:$0xff]
    %v3870 = vld [vmem:[%s5 + $0xe8] sm:$0xff]
    %v3871 = vld [vmem:[%s5 + $0xf0] sm:$0xff]
    %v3872 = vld [vmem:[%s5 + $0xf8] sm:$0xff]
    %v3873 = vld [vmem:[%s5 + $0x100] sm:$0xff]
    %v3874 = vld [vmem:[%s5 + $0x108] sm:$0xff]
    %v3875 = vld [vmem:[%s5 + $0x110] sm:$0xff]
    %v3876 = vld [vmem:[%s5 + $0x118] sm:$0xff]
    %v3877 = vld [vmem:[%s5 + $0x120] sm:$0xff]
    %v3878 = vld [vmem:[%s5 + $0x128] sm:$0xff]
    %v3879 = vld [vmem:[%s5 + $0x130] sm:$0xff]
    %v3880 = vld [vmem:[%s5 + $0x138] sm:$0xff]
    %v3881 = vld [vmem:[%s5 + $0x140] sm:$0xff]
    %v3882 = vld [vmem:[%s5 + $0x148] sm:$0xff]
    %v3883 = vld [vmem:[%s5 + $0x150] sm:$0xff]
    %v3884 = vld [vmem:[%s5 + $0x158] sm:$0xff]
    %v3885 = vld [vmem:[%s5 + $0x160] sm:$0xff]
    %v3886 = vld [vmem:[%s5 + $0x168] sm:$0xff]
    %v3887 = vld [vmem:[%s5 + $0x170] sm:$0xff]
    %v3888 = vld [vmem:[%s5 + $0x178] sm:$0xff]
    %v3889 = vld [vmem:[%s2 + $0x33] ss:$0 sm:$0xff]
    %3890 = vmatprep.subr.mxu0 0.0
    %3891 = vmatpush1.msra.mxu0 %v3841
    %3892 = vmatprep.subr.mxu0 0.0
    %3893 = vmatpush1.msra.mxu0 %v3842
    %3894 = vmatprep.subr.mxu0 0.0
    %3895 = vmatpush1.msra.mxu0 %v3843
    %3896 = vmatprep.subr.mxu0 0.0
    %3897 = vmatpush1.msra.mxu0 %v3844
    %3898 = vmatprep.subr.mxu0 0.0
    %3899 = vmatpush1.msra.mxu0 %v3845
    %3900 = vmatprep.subr.mxu0 0.0
    %3901 = vmatpush1.msra.mxu0 %v3846
    %3902 = vmatprep.subr.mxu0 0.0
    %3903 = vmatpush1.msra.mxu0 %v3847
    %3904 = vmatprep.subr.mxu0 0.0
    %3905 = vmatpush1.msra.mxu0 %v3848
    %3906 = vmatprep.subr.mxu0 0.0
    %3907 = vmatpush1.msra.mxu0 %v3849
    %3908 = vmatprep.subr.mxu0 0.0
    %3909 = vmatpush1.msra.mxu0 %v3850
    %3910 = vmatprep.subr.mxu0 0.0
    %3911 = vmatpush1.msra.mxu0 %v3851
    %3912 = vmatprep.subr.mxu0 0.0
    %3913 = vmatpush1.msra.mxu0 %v3852
    %3914 = vmatprep.subr.mxu0 0.0
    %3915 = vmatpush1.msra.mxu0 %v3853
    %3916 = vmatprep.subr.mxu0 0.0
    %3917 = vmatpush1.msra.mxu0 %v3854
    %3918 = vmatprep.subr.mxu0 0.0
    %3919 = vmatpush1.msra.mxu0 %v3855
    %3920 = vmatprep.subr.mxu0 0.0
    %3921 = vmatpush1.msra.mxu0 %v3856
    %3922 = vmatprep.subr.mxu0 0.0
    %3923 = vmatpush1.msra.mxu0 %v3857
    %3924 = vmatprep.subr.mxu0 0.0
    %3925 = vmatpush1.msra.mxu0 %v3858
    %3926 = vmatprep.subr.mxu0 0.0
    %3927 = vmatpush1.msra.mxu0 %v3859
    %3928 = vmatprep.subr.mxu0 0.0
    %3929 = vmatpush1.msra.mxu0 %v3860
    %3930 = vmatprep.subr.mxu0 0.0
    %3931 = vmatpush1.msra.mxu0 %v3861
    %3932 = vmatprep.subr.mxu0 0.0
    %3933 = vmatpush1.msra.mxu0 %v3862
    %3934 = vmatprep.subr.mxu0 0.0
    %3935 = vmatpush1.msra.mxu0 %v3863
    %3936 = vmatprep.subr.mxu0 0.0
    %3937 = vmatpush1.msra.mxu0 %v3864
    %3938 = vmatprep.subr.mxu0 0.0
    %3939 = vmatpush1.msra.mxu0 %v3865
    %3940 = vmatprep.subr.mxu0 0.0
    %3941 = vmatpush1.msra.mxu0 %v3866
    %3942 = vmatprep.subr.mxu0 0.0
    %3943 = vmatpush1.msra.mxu0 %v3867
    %3944 = vmatprep.subr.mxu0 0.0
    %3945 = vmatpush1.msra.mxu0 %v3868
    %3946 = vmatprep.subr.mxu0 0.0
    %3947 = vmatpush1.msra.mxu0 %v3869
    %3948 = vmatprep.subr.mxu0 0.0
    %3949 = vmatpush1.msra.mxu0 %v3870
    %3950 = vmatprep.subr.mxu0 0.0
    %3951 = vmatpush1.msra.mxu0 %v3871
    %3952 = vmatprep.subr.mxu0 0.0
    %3953 = vmatpush1.msra.mxu0 %v3872
    %3954 = vmatprep.mubr.f32.mxu0 %v3839
    %3955 = vmatmul.mubr.f32.gmra.mrb[0].mxu0 %v3838
    %v3956 = vpop.f32.mrb[0].mxu0
    %v3957 = vadd.f32 %v3889, %v3956
    %v3958 = vpop.f32.mrb[0].mxu0
    %3959 = vdwg.mxu0
    %3960 = vmatprep.subr.mxu0 0.0
    %3961 = vmatpush1.msra.mxu0 %v3873
    %3962 = vmatprep.subr.mxu0 0.0
    %3963 = vmatpush1.msra.mxu0 %v3874
    %3964 = vmatprep.subr.mxu0 0.0
    %3965 = vmatpush1.msra.mxu0 %v3875
    %3966 = vmatprep.subr.mxu0 0.0
    %3967 = vmatpush1.msra.mxu0 %v3876
    %3968 = vmatprep.subr.mxu0 0.0
    %3969 = vmatpush1.msra.mxu0 %v3877
    %3970 = vmatprep.subr.mxu0 0.0
    %3971 = vmatpush1.msra.mxu0 %v3878
    %3972 = vmatprep.subr.mxu0 0.0
    %3973 = vmatpush1.msra.mxu0 %v3879
    %3974 = vmatprep.subr.mxu0 0.0
    %3975 = vmatpush1.msra.mxu0 %v3880
    %3976 = vmatprep.subr.mxu0 0.0
    %3977 = vmatpush1.msra.mxu0 %v3881
    %3978 = vmatprep.subr.mxu0 0.0
    %3979 = vmatpush1.msra.mxu0 %v3882
    %3980 = vmatprep.subr.mxu0 0.0
    %3981 = vmatpush1.msra.mxu0 %v3883
    %3982 = vmatprep.subr.mxu0 0.0
    %3983 = vmatpush1.msra.mxu0 %v3884
    %3984 = vmatprep.subr.mxu0 0.0
    %3985 = vmatpush1.msra.mxu0 %v3885
    %3986 = vmatprep.subr.mxu0 0.0
    %3987 = vmatpush1.msra.mxu0 %v3886
    %3988 = vmatprep.subr.mxu0 0.0
    %3989 = vmatpush1.msra.mxu0 %v3887
    %3990 = vmatprep.subr.mxu0 0.0
    %3991 = vmatpush1.msra.mxu0 %v3888
    %3992 = vmatprep.subr.mxu0 0.0
    %3993 = vmatpush1.msra.mxu0 0.0
    %3994 = vmatprep.subr.mxu0 0.0
    %3995 = vmatpush1.msra.mxu0 0.0
    %3996 = vmatprep.subr.mxu0 0.0
    %3997 = vmatpush1.msra.mxu0 0.0
    %3998 = vmatprep.subr.mxu0 0.0
    %3999 = vmatpush1.msra.mxu0 0.0
    %4000 = vmatprep.subr.mxu0 0.0
    %4001 = vmatpush1.msra.mxu0 0.0
    %4002 = vmatprep.subr.mxu0 0.0
    %4003 = vmatpush1.msra.mxu0 0.0
    %4004 = vmatprep.subr.mxu0 0.0
    %4005 = vmatpush1.msra.mxu0 0.0
    %4006 = vmatprep.subr.mxu0 0.0
    %4007 = vmatpush1.msra.mxu0 0.0
    %4008 = vmatprep.subr.mxu0 0.0
    %4009 = vmatpush1.msra.mxu0 0.0
    %4010 = vmatprep.subr.mxu0 0.0
    %4011 = vmatpush1.msra.mxu0 0.0
    %4012 = vmatprep.subr.mxu0 0.0
    %4013 = vmatpush1.msra.mxu0 0.0
    %4014 = vmatprep.subr.mxu0 0.0
    %4015 = vmatpush1.msra.mxu0 0.0
    %4016 = vmatprep.subr.mxu0 0.0
    %4017 = vmatpush1.msra.mxu0 0.0
    %4018 = vmatprep.subr.mxu0 0.0
    %4019 = vmatpush1.msra.mxu0 0.0
    %4020 = vmatprep.subr.mxu0 0.0
    %4021 = vmatpush1.msra.mxu0 0.0
    %4022 = vmatprep.subr.mxu0 0.0
    %4023 = vmatpush1.msra.mxu0 0.0
    %4024 = vmatprep.mubr.f32.mxu0 0.0
    %4025 = vmatmul.mubr.f32.gmra.mrb[0].mxu0 %v3840
    %v4026 = vpop.f32.mrb[0].mxu0
    %v4027 = vadd.f32 %v3957, %v4026
    %v4028 = vpop.f32.mrb[0].mxu0
    %4029 = vdwg.mxu0
    %v4030 = vmax.f32 %v4027, 0.0
    %v4031 = vld [vmem:[%s5 + $0x180] sm:$0xff]
    %v4032 = vld [vmem:[%s5 + $0x188] sm:$0xff]
    %v4033 = vld [vmem:[%s5 + $0x190] sm:$0xff]
    %v4034 = vld [vmem:[%s2 + $0x34] ss:$0 sm:$0xff]
    %v4036 = vsel %vm3316, %v4030, 0
    %4038 = vmatprep.subr.mxu0 0.0
    %4039 = vmatpush1.msra.mxu0 %v4031
    %4040 = vmatprep.subr.mxu0 0.0
    %4041 = vmatpush1.msra.mxu0 %v4032
    %4042 = vmatprep.subr.mxu0 0.0
    %4043 = vmatpush1.msra.mxu0 %v4033
    %4044 = vmatprep.subr.mxu0 0.0
    %4045 = vmatpush1.msra.mxu0 0.0
    %4046 = vmatprep.subr.mxu0 0.0
    %4047 = vmatpush1.msra.mxu0 0.0
    %4048 = vmatprep.subr.mxu0 0.0
    %4049 = vmatpush1.msra.mxu0 0.0
    %4050 = vmatprep.subr.mxu0 0.0
    %4051 = vmatpush1.msra.mxu0 0.0
    %4052 = vmatprep.subr.mxu0 0.0
    %4053 = vmatpush1.msra.mxu0 0.0
    %4054 = vmatprep.subr.mxu0 0.0
    %4055 = vmatpush1.msra.mxu0 0.0
    %4056 = vmatprep.subr.mxu0 0.0
    %4057 = vmatpush1.msra.mxu0 0.0
    %4058 = vmatprep.subr.mxu0 0.0
    %4059 = vmatpush1.msra.mxu0 0.0
    %4060 = vmatprep.subr.mxu0 0.0
    %4061 = vmatpush1.msra.mxu0 0.0
    %4062 = vmatprep.subr.mxu0 0.0
    %4063 = vmatpush1.msra.mxu0 0.0
    %4064 = vmatprep.subr.mxu0 0.0
    %4065 = vmatpush1.msra.mxu0 0.0
    %4066 = vmatprep.subr.mxu0 0.0
    %4067 = vmatpush1.msra.mxu0 0.0
    %4068 = vmatprep.subr.mxu0 0.0
    %4069 = vmatpush1.msra.mxu0 0.0
    %4070 = vmatprep.subr.mxu0 0.0
    %4071 = vmatpush1.msra.mxu0 0.0
    %4072 = vmatprep.subr.mxu0 0.0
    %4073 = vmatpush1.msra.mxu0 0.0
    %4074 = vmatprep.subr.mxu0 0.0
    %4075 = vmatpush1.msra.mxu0 0.0
    %4076 = vmatprep.subr.mxu0 0.0
    %4077 = vmatpush1.msra.mxu0 0.0
    %4078 = vmatprep.subr.mxu0 0.0
    %4079 = vmatpush1.msra.mxu0 0.0
    %4080 = vmatprep.subr.mxu0 0.0
    %4081 = vmatpush1.msra.mxu0 0.0
    %4082 = vmatprep.subr.mxu0 0.0
    %4083 = vmatpush1.msra.mxu0 0.0
    %4084 = vmatprep.subr.mxu0 0.0
    %4085 = vmatpush1.msra.mxu0 0.0
    %4086 = vmatprep.subr.mxu0 0.0
    %4087 = vmatpush1.msra.mxu0 0.0
    %4088 = vmatprep.subr.mxu0 0.0
    %4089 = vmatpush1.msra.mxu0 0.0
    %4090 = vmatprep.subr.mxu0 0.0
    %4091 = vmatpush1.msra.mxu0 0.0
    %4092 = vmatprep.subr.mxu0 0.0
    %4093 = vmatpush1.msra.mxu0 0.0
    %4094 = vmatprep.subr.mxu0 0.0
    %4095 = vmatpush1.msra.mxu0 0.0
    %4096 = vmatprep.subr.mxu0 0.0
    %4097 = vmatpush1.msra.mxu0 0.0
    %4098 = vmatprep.subr.mxu0 0.0
    %4099 = vmatpush1.msra.mxu0 0.0
    %4100 = vmatprep.subr.mxu0 0.0
    %4101 = vmatpush1.msra.mxu0 0.0
    %4102 = vmatprep.mubr.f32.mxu0 0.0
    %4103 = vmatmul.mubr.f32.gmra.mrb[0].mxu0 %v4036
    %v4104 = vpop.f32.mrb[0].mxu0
    %v4105 = vadd.f32 %v4034, %v4104
    %v4106 = vpop.f32.mrb[0].mxu0
    %4107 = vdwg.mxu0
    %vm4108 = vcmask 17408
    %4109 = vst.msk [vmem:[#allocation2] sm:$0x3] %vm4108, %v4105
    // Predicated region
    $region26: #{mae_finetune_forward.1} parent=1 // pred_check
      _
    $region27: #{mae_finetune_forward.1} parent=1 // pred_check_branch
      %4111 = sbr.rel (0) target = $region29
    $region28: #{mae_finetune_forward.1} parent=1 // pred_region
      %s4113 = ssub.s32 32, 32
      %4114 = vsyncadd [#allocation3], %s4113
      %s4116 = sshll.u32 [#allocation2], 4
      %s4117 = int_to_ptr.vmem [resolvable:$true] %s4116
      %4119 = dma.vmem_to_hbm [thread:$0]  %s4117, 32, %s6, [#allocation3]
    $region29: #{mae_finetune_forward.1} parent=1 // pred_fallthru
      _
    // Predicated region
    $region30: #{mae_finetune_forward.1} parent=1 // pred_check
      _
    $region31: #{mae_finetune_forward.1} parent=1 // pred_check_branch
      %4121 = sbr.rel (0) target = $region33
    $region32: #{mae_finetune_forward.1} parent=1 // pred_region
      %4122 = dma.done [#allocation3], 32
    $region33: #{mae_finetune_forward.1} parent=1 // pred_fallthru
      _
    %4123 = vsyncpa [#allocation3], 1

</llo_original>
